<compile_context>
chip_gen: v7x
topology: tpu7x:2x2x1
jax: 0.10.0
libtpu: 0.0.40
codegen_flags: <defaults>
</compile_context>

<pallas_src>
import functools
import math

import jax
import jax.numpy as jnp
from jax import lax
from jax.experimental import pallas as pl
from jax.experimental.pallas import tpu as pltpu

# ---- model hyperparameters (small, consistent with the module signature) ----
DIM      = 32          # dim
DEPTH    = 2           # depth
HEADS    = 4           # heads
DIM_HEAD = 8           # dim_head
MLP_DIM  = 64          # mlp_dim
INNER    = HEADS * DIM_HEAD     # 32  (project_out=True since heads != 1)
EPS      = 1e-5                 # nn.LayerNorm default
SCALE    = DIM_HEAD ** -0.5

BATCH = 2
SEQ   = 8

# row indices inside the packed per-layer (DEPTH, 6, DIM) vector slab
_LN1_G, _LN1_B, _BOUT, _LN2_G, _LN2_B, _B2 = range(6)


# --------------------------- kernel helpers ---------------------------------
def _layernorm(x, gamma, beta):
    mean = jnp.mean(x, axis=-1, keepdims=True)
    var = jnp.mean((x - mean) ** 2, axis=-1, keepdims=True)
    return (x - mean) * lax.rsqrt(var + EPS) * gamma + beta


def _gelu_exact(x):
    # matches torch.nn.GELU() (erf-based, not tanh approximation)
    return 0.5 * x * (1.0 + lax.erf(x * (1.0 / math.sqrt(2.0))))


# ------------------------------ fused kernel ---------------------------------
def _transformer_kernel(x_ref, vecs_ref, wqkv_ref, wout_ref, w1_ref, b1_ref,
                        w2_ref, norm_gb_ref, o_ref, *, batch, seq):
    bn = batch * seq
    x = x_ref[...].astype(jnp.float32)                          # (B*N, D)

    for l in range(DEPTH):                                      # static unroll over layers
        vd   = vecs_ref[l]                                      # (6, D) packed vectors
        wqkv = wqkv_ref[l]                                      # (D, 3*INNER), Q pre-scaled
        wout = wout_ref[l]                                      # (INNER, D)

        # ------------- attention block: PreNorm -> MHA -> proj, + residual ----
        xn = _layernorm(x, vd[_LN1_G:_LN1_G + 1, :], vd[_LN1_B:_LN1_B + 1, :])
        qkv = jnp.dot(xn, wqkv, preferred_element_type=jnp.float32)   # (B*N, 3*INNER)

        # leading-dim reshapes only (last dim preserved -> no relayout)
        q = qkv[:, :INNER].reshape(batch, seq, INNER)
        k = qkv[:, INNER:2 * INNER].reshape(batch, seq, INNER)
        v = qkv[:, 2 * INNER:].reshape(batch, seq, INNER)

        attn_out = jnp.zeros((bn, DIM), jnp.float32)
        for h in range(HEADS):                                  # static unroll over heads
            sl = slice(h * DIM_HEAD, (h + 1) * DIM_HEAD)
            qh, kh, vh = q[:, :, sl], k[:, :, sl], v[:, :, sl]
            # batched over B, contracts last dims — no transposes needed
            dots = jnp.einsum('bid,bjd->bij', qh, kh,
                              preferred_element_type=jnp.float32)      # (B, N, N)
            dots = dots - jnp.max(dots, axis=-1, keepdims=True)
            e = jnp.exp(dots)
            attn = e / jnp.sum(e, axis=-1, keepdims=True)
            oh = jnp.einsum('bij,bjd->bid', attn, vh,
                            preferred_element_type=jnp.float32)        # (B, N, Dh)
            # project this head directly through its (sublane-aligned) rows of
            # W_out and accumulate — avoids transpose + concatenate.
            attn_out = attn_out + jnp.dot(oh.reshape(bn, DIM_HEAD), wout[sl, :],
                                          preferred_element_type=jnp.float32)
        x = x + attn_out + vd[_BOUT:_BOUT + 1, :]               # residual + out-proj bias

        # ------------- feed-forward block: PreNorm -> MLP, + residual --------
        xn = _layernorm(x, vd[_LN2_G:_LN2_G + 1, :], vd[_LN2_B:_LN2_B + 1, :])
        hidden = jnp.dot(xn, w1_ref[l], preferred_element_type=jnp.float32) + b1_ref[l]
        hidden = _gelu_exact(hidden)
        x = x + jnp.dot(hidden, w2_ref[l], preferred_element_type=jnp.float32) \
              + vd[_B2:_B2 + 1, :]

    # final LayerNorm, fused into the same kernel
    ngb = norm_gb_ref[...]                                      # (2, D)
    o_ref[...] = _layernorm(x, ngb[0:1, :], ngb[1:2, :]).astype(o_ref.dtype)


# ---------------------------- pallas wrapper ---------------------------------
def transformer_forward(x, packed):
    B, N, D = x.shape
    x2 = x.reshape(B * N, D)                                    # free metadata reshape
    kernel = functools.partial(_transformer_kernel, batch=B, seq=N)
    vmem = pl.BlockSpec(memory_space=pltpu.MemorySpace.VMEM)    # whole array, VMEM-resident
    out = pl.pallas_call(
        kernel,
        out_shape=jax.ShapeDtypeStruct((B * N, D), x.dtype),
        in_specs=[vmem] * 8,
        out_specs=vmem,
        compiler_params=pltpu.CompilerParams(vmem_limit_bytes=32 * 1024 * 1024),
    )(x2, packed["vecs"], packed["wqkv"], packed["wout"],
      packed["w1"], packed["b1"], packed["w2"], packed["norm_gb"])
    return out.reshape(B, N, D)


# ------------------------- deterministic parameters --------------------------
def init_params(key):
    layers = []
    for _ in range(DEPTH):
        key, k1, k2, k3, k4 = jax.random.split(key, 5)
        layers.append(dict(
            ln1_g=jnp.ones((DIM,), jnp.float32),
            ln1_b=jnp.zeros((DIM,), jnp.float32),
            wqkv=0.02 * jax.random.normal(k1, (DIM, 3 * INNER), jnp.float32),
            wout=0.02 * jax.random.normal(k2, (INNER, DIM), jnp.float32),
            bout=jnp.zeros((DIM,), jnp.float32),
            ln2_g=jnp.ones((DIM,), jnp.float32),
            ln2_b=jnp.zeros((DIM,), jnp.float32),
            w1=0.02 * jax.random.normal(k3, (DIM, MLP_DIM), jnp.float32),
            b1=jnp.zeros((MLP_DIM,), jnp.float32),
            w2=0.02 * jax.random.normal(k4, (MLP_DIM, DIM), jnp.float32),
            b2=jnp.zeros((DIM,), jnp.float32),
        ))
    return dict(layers=layers,
                norm_g=jnp.ones((DIM,), jnp.float32),
                norm_b=jnp.zeros((DIM,), jnp.float32))


def pack_params(params):
    """One-time packing: stack per-layer weights along DEPTH, pack the nine
    width-D vectors into two small slabs, and fold the softmax scale into the
    Q columns of W_qkv (not a per-call op)."""
    L = params["layers"]
    stack = lambda name: jnp.stack([lp[name] for lp in L], axis=0)

    wqkv = stack("wqkv")                                        # (DEPTH, D, 3*INNER)
    wqkv = wqkv.at[:, :, :INNER].multiply(SCALE)                # fold dim_head^-0.5 into Q

    vecs = jnp.stack([
        jnp.stack([lp["ln1_g"], lp["ln1_b"], lp["bout"],
                   lp["ln2_g"], lp["ln2_b"], lp["b2"]], axis=0)
        for lp in L], axis=0)                                   # (DEPTH, 6, D)

    return dict(
        vecs=vecs,
        wqkv=wqkv,
        wout=stack("wout"),                                     # (DEPTH, INNER, D)
        w1=stack("w1"),                                         # (DEPTH, D, MLP_DIM)
        b1=stack("b1")[:, None, :],                             # (DEPTH, 1, MLP_DIM)
        w2=stack("w2"),                                         # (DEPTH, MLP_DIM, D)
        norm_gb=jnp.stack([params["norm_g"], params["norm_b"]], axis=0),  # (2, D)
    )


# --------------------------- pure-JAX reference -------------------------------
def reference_forward(x, params):
    def ln(x, g, b):
        m = jnp.mean(x, axis=-1, keepdims=True)
        v = jnp.mean((x - m) ** 2, axis=-1, keepdims=True)
        return (x - m) * lax.rsqrt(v + EPS) * g + b

    for lp in params["layers"]:
        xn = ln(x, lp["ln1_g"], lp["ln1_b"])
        qkv = xn @ lp["wqkv"]
        q, k, v = jnp.split(qkv, 3, axis=-1)

        def heads(t):
            B, N, _ = t.shape
            return t.reshape(B, N, HEADS, DIM_HEAD).transpose(0, 2, 1, 3)

        q, k, v = heads(q), heads(k), heads(v)
        dots = jnp.einsum("bhid,bhjd->bhij", q, k) * SCALE
        attn = jax.nn.softmax(dots, axis=-1)
        out = jnp.einsum("bhij,bhjd->bhid", attn, v)
        out = out.transpose(0, 2, 1, 3).reshape(x.shape[0], x.shape[1], INNER)
        x = out @ lp["wout"] + lp["bout"] + x

        xn = ln(x, lp["ln2_g"], lp["ln2_b"])
        h = xn @ lp["w1"] + lp["b1"]
        h = 0.5 * h * (1.0 + lax.erf(h / math.sqrt(2.0)))
        x = h @ lp["w2"] + lp["b2"] + x
    return ln(x, params["norm_g"], params["norm_b"])


# ------------------------------------ main ------------------------------------
if __name__ == "__main__":
    key = jax.random.PRNGKey(0)
    key_x, key_p = jax.random.split(key)
    x = jax.random.normal(key_x, (BATCH, SEQ, DIM), jnp.float32)
    params = init_params(key_p)
    packed = pack_params(params)        # one-time: stack along DEPTH + fold scale

    fwd = jax.jit(transformer_forward)
    out = jax.block_until_ready(fwd(x, packed))

    ref = reference_forward(x, params)
    assert out.shape == (BATCH, SEQ, DIM)
    assert jnp.allclose(out, ref, atol=1e-4, rtol=1e-4), "mismatch vs pure-JAX reference"

    print("KERNEL_OK")
</pallas_src>

<mosaic_0001>
module attributes {stable_mosaic.version = 11 : i64} {
  func.func @_transformer_kernel(%arg0: memref<16x32xf32, #tpu.memory_space<vmem>>, %arg1: memref<2x6x32xf32, #tpu.memory_space<vmem>>, %arg2: memref<2x32x96xf32, #tpu.memory_space<vmem>>, %arg3: memref<2x32x32xf32, #tpu.memory_space<vmem>>, %arg4: memref<2x32x64xf32, #tpu.memory_space<vmem>>, %arg5: memref<2x1x64xf32, #tpu.memory_space<vmem>>, %arg6: memref<2x64x32xf32, #tpu.memory_space<vmem>>, %arg7: memref<2x32xf32, #tpu.memory_space<vmem>>, %arg8: memref<16x32xf32, #tpu.memory_space<vmem>>) attributes {dimension_semantics = [], scalar_prefetch = 0 : i64, scratch_operands = 0 : i64, tpu.core_type = #tpu.core_type<tc>} {
    %c0 = arith.constant 0 : index
    %c0_0 = arith.constant 0 : index
    %0 = vector.load %arg0[%c0, %c0_0] : memref<16x32xf32, #tpu.memory_space<vmem>>, vector<16x32xf32>
    %c0_1 = arith.constant 0 : index
    %c0_2 = arith.constant 0 : index
    %c0_3 = arith.constant 0 : index
    %1 = vector.load %arg1[%c0_1, %c0_2, %c0_3] : memref<2x6x32xf32, #tpu.memory_space<vmem>>, vector<1x6x32xf32>
    %2 = vector.shape_cast %1 : vector<1x6x32xf32> to vector<6x32xf32>
    %c0_4 = arith.constant 0 : index
    %c0_5 = arith.constant 0 : index
    %c0_6 = arith.constant 0 : index
    %3 = vector.load %arg2[%c0_4, %c0_5, %c0_6] : memref<2x32x96xf32, #tpu.memory_space<vmem>>, vector<1x32x96xf32>
    %4 = vector.shape_cast %3 : vector<1x32x96xf32> to vector<32x96xf32>
    %c0_7 = arith.constant 0 : index
    %c0_8 = arith.constant 0 : index
    %c0_9 = arith.constant 0 : index
    %5 = vector.load %arg3[%c0_7, %c0_8, %c0_9] : memref<2x32x32xf32, #tpu.memory_space<vmem>>, vector<1x32x32xf32>
    %6 = vector.shape_cast %5 : vector<1x32x32xf32> to vector<32x32xf32>
    %7 = vector.extract_strided_slice %2 {offsets = [0, 0], sizes = [1, 32], strides = [1, 1]} : vector<6x32xf32> to vector<1x32xf32>
    %8 = vector.extract_strided_slice %2 {offsets = [1, 0], sizes = [1, 32], strides = [1, 1]} : vector<6x32xf32> to vector<1x32xf32>
    %cst = arith.constant dense<0.000000e+00> : vector<16xf32>
    %9 = vector.multi_reduction <add>, %0, %cst [1] : vector<16x32xf32> to vector<16xf32>
    %10 = vector.shape_cast %9 : vector<16xf32> to vector<16x1xf32>
    %cst_10 = arith.constant 3.200000e+01 : f32
    %11 = vector.broadcast %cst_10 : f32 to vector<16x1xf32>
    %12 = arith.divf %10, %11 : vector<16x1xf32>
    %13 = vector.broadcast %12 : vector<16x1xf32> to vector<16x32xf32>
    %14 = arith.subf %0, %13 : vector<16x32xf32>
    %15 = arith.mulf %14, %14 : vector<16x32xf32>
    %cst_11 = arith.constant dense<0.000000e+00> : vector<16xf32>
    %16 = vector.multi_reduction <add>, %15, %cst_11 [1] : vector<16x32xf32> to vector<16xf32>
    %17 = vector.shape_cast %16 : vector<16xf32> to vector<16x1xf32>
    %cst_12 = arith.constant 3.200000e+01 : f32
    %18 = vector.broadcast %cst_12 : f32 to vector<16x1xf32>
    %19 = arith.divf %17, %18 : vector<16x1xf32>
    %20 = vector.broadcast %12 : vector<16x1xf32> to vector<16x32xf32>
    %21 = arith.subf %0, %20 : vector<16x32xf32>
    %cst_13 = arith.constant 9.99999974E-6 : f32
    %22 = vector.broadcast %cst_13 : f32 to vector<16x1xf32>
    %23 = arith.addf %19, %22 : vector<16x1xf32>
    %24 = math.rsqrt %23 : vector<16x1xf32>
    %25 = vector.broadcast %24 : vector<16x1xf32> to vector<16x32xf32>
    %26 = arith.mulf %21, %25 : vector<16x32xf32>
    %27 = vector.broadcast %7 : vector<1x32xf32> to vector<16x32xf32>
    %28 = arith.mulf %26, %27 : vector<16x32xf32>
    %29 = vector.broadcast %8 : vector<1x32xf32> to vector<16x32xf32>
    %30 = arith.addf %28, %29 : vector<16x32xf32>
    %cst_14 = arith.constant dense<0.000000e+00> : vector<16x96xf32>
    %31 = tpu.matmul %30, %4, %cst_14 {dimension_numbers = #tpu.dot_dimension_numbers<[1], [0], [0], [1], [0, 0, 1, 1], [], []>} : vector<16x32xf32>, vector<32x96xf32>, vector<16x96xf32> -> vector<16x96xf32>
    %32 = vector.extract_strided_slice %31 {offsets = [0, 0], sizes = [16, 32], strides = [1, 1]} : vector<16x96xf32> to vector<16x32xf32>
    %33 = vector.shape_cast %32 : vector<16x32xf32> to vector<2x8x32xf32>
    %34 = vector.extract_strided_slice %31 {offsets = [0, 32], sizes = [16, 32], strides = [1, 1]} : vector<16x96xf32> to vector<16x32xf32>
    %35 = vector.shape_cast %34 : vector<16x32xf32> to vector<2x8x32xf32>
    %36 = vector.extract_strided_slice %31 {offsets = [0, 64], sizes = [16, 32], strides = [1, 1]} : vector<16x96xf32> to vector<16x32xf32>
    %37 = vector.shape_cast %36 : vector<16x32xf32> to vector<2x8x32xf32>
    %cst_15 = arith.constant 0.000000e+00 : f32
    %38 = vector.broadcast %cst_15 : f32 to vector<16x32xf32>
    %39 = vector.extract_strided_slice %33 {offsets = [0, 0, 0], sizes = [2, 8, 8], strides = [1, 1, 1]} : vector<2x8x32xf32> to vector<2x8x8xf32>
    %40 = vector.extract_strided_slice %35 {offsets = [0, 0, 0], sizes = [2, 8, 8], strides = [1, 1, 1]} : vector<2x8x32xf32> to vector<2x8x8xf32>
    %41 = vector.extract_strided_slice %37 {offsets = [0, 0, 0], sizes = [2, 8, 8], strides = [1, 1, 1]} : vector<2x8x32xf32> to vector<2x8x8xf32>
    "tpu.trace_start"() <{level = 10 : i32, message = "bid,bjd->bij"}> : () -> ()
    %cst_16 = arith.constant dense<0.000000e+00> : vector<2x8x8xf32>
    %42 = tpu.matmul %39, %40, %cst_16 {dimension_numbers = #tpu.dot_dimension_numbers<[2], [2], [1], [1], [0, 0, 0, 1, 1, 1], [0], [0]>} : vector<2x8x8xf32>, vector<2x8x8xf32>, vector<2x8x8xf32> -> vector<2x8x8xf32>
    "tpu.trace_stop"() : () -> ()
    %cst_17 = arith.constant dense<0xFF800000> : vector<2x8xf32>
    %43 = vector.multi_reduction <maximumf>, %42, %cst_17 [2] : vector<2x8x8xf32> to vector<2x8xf32>
    %44 = vector.shape_cast %43 : vector<2x8xf32> to vector<2x8x1xf32>
    %45 = vector.broadcast %44 : vector<2x8x1xf32> to vector<2x8x8xf32>
    %46 = arith.subf %42, %45 : vector<2x8x8xf32>
    %47 = math.exp %46 : vector<2x8x8xf32>
    %cst_18 = arith.constant dense<0.000000e+00> : vector<2x8xf32>
    %48 = vector.multi_reduction <add>, %47, %cst_18 [2] : vector<2x8x8xf32> to vector<2x8xf32>
    %49 = vector.shape_cast %48 : vector<2x8xf32> to vector<2x8x1xf32>
    %50 = vector.broadcast %49 : vector<2x8x1xf32> to vector<2x8x8xf32>
    %51 = arith.divf %47, %50 : vector<2x8x8xf32>
    "tpu.trace_start"() <{level = 10 : i32, message = "bij,bjd->bid"}> : () -> ()
    %cst_19 = arith.constant dense<0.000000e+00> : vector<2x8x8xf32>
    %52 = tpu.matmul %51, %41, %cst_19 {dimension_numbers = #tpu.dot_dimension_numbers<[2], [1], [1], [2], [0, 0, 0, 1, 1, 2], [0], [0]>} : vector<2x8x8xf32>, vector<2x8x8xf32>, vector<2x8x8xf32> -> vector<2x8x8xf32>
    "tpu.trace_stop"() : () -> ()
    %53 = vector.shape_cast %52 : vector<2x8x8xf32> to vector<16x8xf32>
    %54 = vector.extract_strided_slice %6 {offsets = [0, 0], sizes = [8, 32], strides = [1, 1]} : vector<32x32xf32> to vector<8x32xf32>
    %cst_20 = arith.constant dense<0.000000e+00> : vector<16x32xf32>
    %55 = tpu.matmul %53, %54, %cst_20 {dimension_numbers = #tpu.dot_dimension_numbers<[1], [0], [0], [1], [0, 0, 1, 1], [], []>} : vector<16x8xf32>, vector<8x32xf32>, vector<16x32xf32> -> vector<16x32xf32>
    %56 = arith.addf %38, %55 : vector<16x32xf32>
    %57 = vector.extract_strided_slice %33 {offsets = [0, 0, 8], sizes = [2, 8, 8], strides = [1, 1, 1]} : vector<2x8x32xf32> to vector<2x8x8xf32>
    %58 = vector.extract_strided_slice %35 {offsets = [0, 0, 8], sizes = [2, 8, 8], strides = [1, 1, 1]} : vector<2x8x32xf32> to vector<2x8x8xf32>
    %59 = vector.extract_strided_slice %37 {offsets = [0, 0, 8], sizes = [2, 8, 8], strides = [1, 1, 1]} : vector<2x8x32xf32> to vector<2x8x8xf32>
    "tpu.trace_start"() <{level = 10 : i32, message = "bid,bjd->bij"}> : () -> ()
    %cst_21 = arith.constant dense<0.000000e+00> : vector<2x8x8xf32>
    %60 = tpu.matmul %57, %58, %cst_21 {dimension_numbers = #tpu.dot_dimension_numbers<[2], [2], [1], [1], [0, 0, 0, 1, 1, 1], [0], [0]>} : vector<2x8x8xf32>, vector<2x8x8xf32>, vector<2x8x8xf32> -> vector<2x8x8xf32>
    "tpu.trace_stop"() : () -> ()
    %cst_22 = arith.constant dense<0xFF800000> : vector<2x8xf32>
    %61 = vector.multi_reduction <maximumf>, %60, %cst_22 [2] : vector<2x8x8xf32> to vector<2x8xf32>
    %62 = vector.shape_cast %61 : vector<2x8xf32> to vector<2x8x1xf32>
    %63 = vector.broadcast %62 : vector<2x8x1xf32> to vector<2x8x8xf32>
    %64 = arith.subf %60, %63 : vector<2x8x8xf32>
    %65 = math.exp %64 : vector<2x8x8xf32>
    %cst_23 = arith.constant dense<0.000000e+00> : vector<2x8xf32>
    %66 = vector.multi_reduction <add>, %65, %cst_23 [2] : vector<2x8x8xf32> to vector<2x8xf32>
    %67 = vector.shape_cast %66 : vector<2x8xf32> to vector<2x8x1xf32>
    %68 = vector.broadcast %67 : vector<2x8x1xf32> to vector<2x8x8xf32>
    %69 = arith.divf %65, %68 : vector<2x8x8xf32>
    "tpu.trace_start"() <{level = 10 : i32, message = "bij,bjd->bid"}> : () -> ()
    %cst_24 = arith.constant dense<0.000000e+00> : vector<2x8x8xf32>
    %70 = tpu.matmul %69, %59, %cst_24 {dimension_numbers = #tpu.dot_dimension_numbers<[2], [1], [1], [2], [0, 0, 0, 1, 1, 2], [0], [0]>} : vector<2x8x8xf32>, vector<2x8x8xf32>, vector<2x8x8xf32> -> vector<2x8x8xf32>
    "tpu.trace_stop"() : () -> ()
    %71 = vector.shape_cast %70 : vector<2x8x8xf32> to vector<16x8xf32>
    %72 = vector.extract_strided_slice %6 {offsets = [8, 0], sizes = [8, 32], strides = [1, 1]} : vector<32x32xf32> to vector<8x32xf32>
    %cst_25 = arith.constant dense<0.000000e+00> : vector<16x32xf32>
    %73 = tpu.matmul %71, %72, %cst_25 {dimension_numbers = #tpu.dot_dimension_numbers<[1], [0], [0], [1], [0, 0, 1, 1], [], []>} : vector<16x8xf32>, vector<8x32xf32>, vector<16x32xf32> -> vector<16x32xf32>
    %74 = arith.addf %56, %73 : vector<16x32xf32>
    %75 = vector.extract_strided_slice %33 {offsets = [0, 0, 16], sizes = [2, 8, 8], strides = [1, 1, 1]} : vector<2x8x32xf32> to vector<2x8x8xf32>
    %76 = vector.extract_strided_slice %35 {offsets = [0, 0, 16], sizes = [2, 8, 8], strides = [1, 1, 1]} : vector<2x8x32xf32> to vector<2x8x8xf32>
    %77 = vector.extract_strided_slice %37 {offsets = [0, 0, 16], sizes = [2, 8, 8], strides = [1, 1, 1]} : vector<2x8x32xf32> to vector<2x8x8xf32>
    "tpu.trace_start"() <{level = 10 : i32, message = "bid,bjd->bij"}> : () -> ()
    %cst_26 = arith.constant dense<0.000000e+00> : vector<2x8x8xf32>
    %78 = tpu.matmul %75, %76, %cst_26 {dimension_numbers = #tpu.dot_dimension_numbers<[2], [2], [1], [1], [0, 0, 0, 1, 1, 1], [0], [0]>} : vector<2x8x8xf32>, vector<2x8x8xf32>, vector<2x8x8xf32> -> vector<2x8x8xf32>
    "tpu.trace_stop"() : () -> ()
    %cst_27 = arith.constant dense<0xFF800000> : vector<2x8xf32>
    %79 = vector.multi_reduction <maximumf>, %78, %cst_27 [2] : vector<2x8x8xf32> to vector<2x8xf32>
    %80 = vector.shape_cast %79 : vector<2x8xf32> to vector<2x8x1xf32>
    %81 = vector.broadcast %80 : vector<2x8x1xf32> to vector<2x8x8xf32>
    %82 = arith.subf %78, %81 : vector<2x8x8xf32>
    %83 = math.exp %82 : vector<2x8x8xf32>
    %cst_28 = arith.constant dense<0.000000e+00> : vector<2x8xf32>
    %84 = vector.multi_reduction <add>, %83, %cst_28 [2] : vector<2x8x8xf32> to vector<2x8xf32>
    %85 = vector.shape_cast %84 : vector<2x8xf32> to vector<2x8x1xf32>
    %86 = vector.broadcast %85 : vector<2x8x1xf32> to vector<2x8x8xf32>
    %87 = arith.divf %83, %86 : vector<2x8x8xf32>
    "tpu.trace_start"() <{level = 10 : i32, message = "bij,bjd->bid"}> : () -> ()
    %cst_29 = arith.constant dense<0.000000e+00> : vector<2x8x8xf32>
    %88 = tpu.matmul %87, %77, %cst_29 {dimension_numbers = #tpu.dot_dimension_numbers<[2], [1], [1], [2], [0, 0, 0, 1, 1, 2], [0], [0]>} : vector<2x8x8xf32>, vector<2x8x8xf32>, vector<2x8x8xf32> -> vector<2x8x8xf32>
    "tpu.trace_stop"() : () -> ()
    %89 = vector.shape_cast %88 : vector<2x8x8xf32> to vector<16x8xf32>
    %90 = vector.extract_strided_slice %6 {offsets = [16, 0], sizes = [8, 32], strides = [1, 1]} : vector<32x32xf32> to vector<8x32xf32>
    %cst_30 = arith.constant dense<0.000000e+00> : vector<16x32xf32>
    %91 = tpu.matmul %89, %90, %cst_30 {dimension_numbers = #tpu.dot_dimension_numbers<[1], [0], [0], [1], [0, 0, 1, 1], [], []>} : vector<16x8xf32>, vector<8x32xf32>, vector<16x32xf32> -> vector<16x32xf32>
    %92 = arith.addf %74, %91 : vector<16x32xf32>
    %93 = vector.extract_strided_slice %33 {offsets = [0, 0, 24], sizes = [2, 8, 8], strides = [1, 1, 1]} : vector<2x8x32xf32> to vector<2x8x8xf32>
    %94 = vector.extract_strided_slice %35 {offsets = [0, 0, 24], sizes = [2, 8, 8], strides = [1, 1, 1]} : vector<2x8x32xf32> to vector<2x8x8xf32>
    %95 = vector.extract_strided_slice %37 {offsets = [0, 0, 24], sizes = [2, 8, 8], strides = [1, 1, 1]} : vector<2x8x32xf32> to vector<2x8x8xf32>
    "tpu.trace_start"() <{level = 10 : i32, message = "bid,bjd->bij"}> : () -> ()
    %cst_31 = arith.constant dense<0.000000e+00> : vector<2x8x8xf32>
    %96 = tpu.matmul %93, %94, %cst_31 {dimension_numbers = #tpu.dot_dimension_numbers<[2], [2], [1], [1], [0, 0, 0, 1, 1, 1], [0], [0]>} : vector<2x8x8xf32>, vector<2x8x8xf32>, vector<2x8x8xf32> -> vector<2x8x8xf32>
    "tpu.trace_stop"() : () -> ()
    %cst_32 = arith.constant dense<0xFF800000> : vector<2x8xf32>
    %97 = vector.multi_reduction <maximumf>, %96, %cst_32 [2] : vector<2x8x8xf32> to vector<2x8xf32>
    %98 = vector.shape_cast %97 : vector<2x8xf32> to vector<2x8x1xf32>
    %99 = vector.broadcast %98 : vector<2x8x1xf32> to vector<2x8x8xf32>
    %100 = arith.subf %96, %99 : vector<2x8x8xf32>
    %101 = math.exp %100 : vector<2x8x8xf32>
    %cst_33 = arith.constant dense<0.000000e+00> : vector<2x8xf32>
    %102 = vector.multi_reduction <add>, %101, %cst_33 [2] : vector<2x8x8xf32> to vector<2x8xf32>
    %103 = vector.shape_cast %102 : vector<2x8xf32> to vector<2x8x1xf32>
    %104 = vector.broadcast %103 : vector<2x8x1xf32> to vector<2x8x8xf32>
    %105 = arith.divf %101, %104 : vector<2x8x8xf32>
    "tpu.trace_start"() <{level = 10 : i32, message = "bij,bjd->bid"}> : () -> ()
    %cst_34 = arith.constant dense<0.000000e+00> : vector<2x8x8xf32>
    %106 = tpu.matmul %105, %95, %cst_34 {dimension_numbers = #tpu.dot_dimension_numbers<[2], [1], [1], [2], [0, 0, 0, 1, 1, 2], [0], [0]>} : vector<2x8x8xf32>, vector<2x8x8xf32>, vector<2x8x8xf32> -> vector<2x8x8xf32>
    "tpu.trace_stop"() : () -> ()
    %107 = vector.shape_cast %106 : vector<2x8x8xf32> to vector<16x8xf32>
    %108 = vector.extract_strided_slice %6 {offsets = [24, 0], sizes = [8, 32], strides = [1, 1]} : vector<32x32xf32> to vector<8x32xf32>
    %cst_35 = arith.constant dense<0.000000e+00> : vector<16x32xf32>
    %109 = tpu.matmul %107, %108, %cst_35 {dimension_numbers = #tpu.dot_dimension_numbers<[1], [0], [0], [1], [0, 0, 1, 1], [], []>} : vector<16x8xf32>, vector<8x32xf32>, vector<16x32xf32> -> vector<16x32xf32>
    %110 = arith.addf %92, %109 : vector<16x32xf32>
    %111 = arith.addf %0, %110 : vector<16x32xf32>
    %112 = vector.extract_strided_slice %2 {offsets = [2, 0], sizes = [1, 32], strides = [1, 1]} : vector<6x32xf32> to vector<1x32xf32>
    %113 = vector.broadcast %112 : vector<1x32xf32> to vector<16x32xf32>
    %114 = arith.addf %111, %113 : vector<16x32xf32>
    %115 = vector.extract_strided_slice %2 {offsets = [3, 0], sizes = [1, 32], strides = [1, 1]} : vector<6x32xf32> to vector<1x32xf32>
    %116 = vector.extract_strided_slice %2 {offsets = [4, 0], sizes = [1, 32], strides = [1, 1]} : vector<6x32xf32> to vector<1x32xf32>
    %cst_36 = arith.constant dense<0.000000e+00> : vector<16xf32>
    %117 = vector.multi_reduction <add>, %114, %cst_36 [1] : vector<16x32xf32> to vector<16xf32>
    %118 = vector.shape_cast %117 : vector<16xf32> to vector<16x1xf32>
    %cst_37 = arith.constant 3.200000e+01 : f32
    %119 = vector.broadcast %cst_37 : f32 to vector<16x1xf32>
    %120 = arith.divf %118, %119 : vector<16x1xf32>
    %121 = vector.broadcast %120 : vector<16x1xf32> to vector<16x32xf32>
    %122 = arith.subf %114, %121 : vector<16x32xf32>
    %123 = arith.mulf %122, %122 : vector<16x32xf32>
    %cst_38 = arith.constant dense<0.000000e+00> : vector<16xf32>
    %124 = vector.multi_reduction <add>, %123, %cst_38 [1] : vector<16x32xf32> to vector<16xf32>
    %125 = vector.shape_cast %124 : vector<16xf32> to vector<16x1xf32>
    %cst_39 = arith.constant 3.200000e+01 : f32
    %126 = vector.broadcast %cst_39 : f32 to vector<16x1xf32>
    %127 = arith.divf %125, %126 : vector<16x1xf32>
    %128 = vector.broadcast %120 : vector<16x1xf32> to vector<16x32xf32>
    %129 = arith.subf %114, %128 : vector<16x32xf32>
    %cst_40 = arith.constant 9.99999974E-6 : f32
    %130 = vector.broadcast %cst_40 : f32 to vector<16x1xf32>
    %131 = arith.addf %127, %130 : vector<16x1xf32>
    %132 = math.rsqrt %131 : vector<16x1xf32>
    %133 = vector.broadcast %132 : vector<16x1xf32> to vector<16x32xf32>
    %134 = arith.mulf %129, %133 : vector<16x32xf32>
    %135 = vector.broadcast %115 : vector<1x32xf32> to vector<16x32xf32>
    %136 = arith.mulf %134, %135 : vector<16x32xf32>
    %137 = vector.broadcast %116 : vector<1x32xf32> to vector<16x32xf32>
    %138 = arith.addf %136, %137 : vector<16x32xf32>
    %c0_41 = arith.constant 0 : index
    %c0_42 = arith.constant 0 : index
    %c0_43 = arith.constant 0 : index
    %139 = vector.load %arg4[%c0_41, %c0_42, %c0_43] : memref<2x32x64xf32, #tpu.memory_space<vmem>>, vector<1x32x64xf32>
    %140 = vector.shape_cast %139 : vector<1x32x64xf32> to vector<32x64xf32>
    %cst_44 = arith.constant dense<0.000000e+00> : vector<16x64xf32>
    %141 = tpu.matmul %138, %140, %cst_44 {dimension_numbers = #tpu.dot_dimension_numbers<[1], [0], [0], [1], [0, 0, 1, 1], [], []>} : vector<16x32xf32>, vector<32x64xf32>, vector<16x64xf32> -> vector<16x64xf32>
    %c0_45 = arith.constant 0 : index
    %c0_46 = arith.constant 0 : index
    %c0_47 = arith.constant 0 : index
    %142 = vector.load %arg5[%c0_45, %c0_46, %c0_47] : memref<2x1x64xf32, #tpu.memory_space<vmem>>, vector<1x1x64xf32>
    %143 = vector.shape_cast %142 : vector<1x1x64xf32> to vector<1x64xf32>
    %144 = vector.broadcast %143 : vector<1x64xf32> to vector<16x64xf32>
    %145 = arith.addf %141, %144 : vector<16x64xf32>
    %cst_48 = arith.constant 5.000000e-01 : f32
    %146 = vector.broadcast %cst_48 : f32 to vector<16x64xf32>
    %147 = arith.mulf %146, %145 : vector<16x64xf32>
    %cst_49 = arith.constant 0.707106769 : f32
    %148 = vector.broadcast %cst_49 : f32 to vector<16x64xf32>
    %149 = arith.mulf %145, %148 : vector<16x64xf32>
    %150 = math.erf %149 : vector<16x64xf32>
    %cst_50 = arith.constant 1.000000e+00 : f32
    %151 = vector.broadcast %cst_50 : f32 to vector<16x64xf32>
    %152 = arith.addf %151, %150 : vector<16x64xf32>
    %153 = arith.mulf %147, %152 : vector<16x64xf32>
    %c0_51 = arith.constant 0 : index
    %c0_52 = arith.constant 0 : index
    %c0_53 = arith.constant 0 : index
    %154 = vector.load %arg6[%c0_51, %c0_52, %c0_53] : memref<2x64x32xf32, #tpu.memory_space<vmem>>, vector<1x64x32xf32>
    %155 = vector.shape_cast %154 : vector<1x64x32xf32> to vector<64x32xf32>
    %cst_54 = arith.constant dense<0.000000e+00> : vector<16x32xf32>
    %156 = tpu.matmul %153, %155, %cst_54 {dimension_numbers = #tpu.dot_dimension_numbers<[1], [0], [0], [1], [0, 0, 1, 1], [], []>} : vector<16x64xf32>, vector<64x32xf32>, vector<16x32xf32> -> vector<16x32xf32>
    %157 = arith.addf %114, %156 : vector<16x32xf32>
    %158 = vector.extract_strided_slice %2 {offsets = [5, 0], sizes = [1, 32], strides = [1, 1]} : vector<6x32xf32> to vector<1x32xf32>
    %159 = vector.broadcast %158 : vector<1x32xf32> to vector<16x32xf32>
    %160 = arith.addf %157, %159 : vector<16x32xf32>
    %c1 = arith.constant 1 : index
    %c0_55 = arith.constant 0 : index
    %c0_56 = arith.constant 0 : index
    %161 = vector.load %arg1[%c1, %c0_55, %c0_56] : memref<2x6x32xf32, #tpu.memory_space<vmem>>, vector<1x6x32xf32>
    %162 = vector.shape_cast %161 : vector<1x6x32xf32> to vector<6x32xf32>
    %c1_57 = arith.constant 1 : index
    %c0_58 = arith.constant 0 : index
    %c0_59 = arith.constant 0 : index
    %163 = vector.load %arg2[%c1_57, %c0_58, %c0_59] : memref<2x32x96xf32, #tpu.memory_space<vmem>>, vector<1x32x96xf32>
    %164 = vector.shape_cast %163 : vector<1x32x96xf32> to vector<32x96xf32>
    %c1_60 = arith.constant 1 : index
    %c0_61 = arith.constant 0 : index
    %c0_62 = arith.constant 0 : index
    %165 = vector.load %arg3[%c1_60, %c0_61, %c0_62] : memref<2x32x32xf32, #tpu.memory_space<vmem>>, vector<1x32x32xf32>
    %166 = vector.shape_cast %165 : vector<1x32x32xf32> to vector<32x32xf32>
    %167 = vector.extract_strided_slice %162 {offsets = [0, 0], sizes = [1, 32], strides = [1, 1]} : vector<6x32xf32> to vector<1x32xf32>
    %168 = vector.extract_strided_slice %162 {offsets = [1, 0], sizes = [1, 32], strides = [1, 1]} : vector<6x32xf32> to vector<1x32xf32>
    %cst_63 = arith.constant dense<0.000000e+00> : vector<16xf32>
    %169 = vector.multi_reduction <add>, %160, %cst_63 [1] : vector<16x32xf32> to vector<16xf32>
    %170 = vector.shape_cast %169 : vector<16xf32> to vector<16x1xf32>
    %cst_64 = arith.constant 3.200000e+01 : f32
    %171 = vector.broadcast %cst_64 : f32 to vector<16x1xf32>
    %172 = arith.divf %170, %171 : vector<16x1xf32>
    %173 = vector.broadcast %172 : vector<16x1xf32> to vector<16x32xf32>
    %174 = arith.subf %160, %173 : vector<16x32xf32>
    %175 = arith.mulf %174, %174 : vector<16x32xf32>
    %cst_65 = arith.constant dense<0.000000e+00> : vector<16xf32>
    %176 = vector.multi_reduction <add>, %175, %cst_65 [1] : vector<16x32xf32> to vector<16xf32>
    %177 = vector.shape_cast %176 : vector<16xf32> to vector<16x1xf32>
    %cst_66 = arith.constant 3.200000e+01 : f32
    %178 = vector.broadcast %cst_66 : f32 to vector<16x1xf32>
    %179 = arith.divf %177, %178 : vector<16x1xf32>
    %180 = vector.broadcast %172 : vector<16x1xf32> to vector<16x32xf32>
    %181 = arith.subf %160, %180 : vector<16x32xf32>
    %cst_67 = arith.constant 9.99999974E-6 : f32
    %182 = vector.broadcast %cst_67 : f32 to vector<16x1xf32>
    %183 = arith.addf %179, %182 : vector<16x1xf32>
    %184 = math.rsqrt %183 : vector<16x1xf32>
    %185 = vector.broadcast %184 : vector<16x1xf32> to vector<16x32xf32>
    %186 = arith.mulf %181, %185 : vector<16x32xf32>
    %187 = vector.broadcast %167 : vector<1x32xf32> to vector<16x32xf32>
    %188 = arith.mulf %186, %187 : vector<16x32xf32>
    %189 = vector.broadcast %168 : vector<1x32xf32> to vector<16x32xf32>
    %190 = arith.addf %188, %189 : vector<16x32xf32>
    %cst_68 = arith.constant dense<0.000000e+00> : vector<16x96xf32>
    %191 = tpu.matmul %190, %164, %cst_68 {dimension_numbers = #tpu.dot_dimension_numbers<[1], [0], [0], [1], [0, 0, 1, 1], [], []>} : vector<16x32xf32>, vector<32x96xf32>, vector<16x96xf32> -> vector<16x96xf32>
    %192 = vector.extract_strided_slice %191 {offsets = [0, 0], sizes = [16, 32], strides = [1, 1]} : vector<16x96xf32> to vector<16x32xf32>
    %193 = vector.shape_cast %192 : vector<16x32xf32> to vector<2x8x32xf32>
    %194 = vector.extract_strided_slice %191 {offsets = [0, 32], sizes = [16, 32], strides = [1, 1]} : vector<16x96xf32> to vector<16x32xf32>
    %195 = vector.shape_cast %194 : vector<16x32xf32> to vector<2x8x32xf32>
    %196 = vector.extract_strided_slice %191 {offsets = [0, 64], sizes = [16, 32], strides = [1, 1]} : vector<16x96xf32> to vector<16x32xf32>
    %197 = vector.shape_cast %196 : vector<16x32xf32> to vector<2x8x32xf32>
    %cst_69 = arith.constant 0.000000e+00 : f32
    %198 = vector.broadcast %cst_69 : f32 to vector<16x32xf32>
    %199 = vector.extract_strided_slice %193 {offsets = [0, 0, 0], sizes = [2, 8, 8], strides = [1, 1, 1]} : vector<2x8x32xf32> to vector<2x8x8xf32>
    %200 = vector.extract_strided_slice %195 {offsets = [0, 0, 0], sizes = [2, 8, 8], strides = [1, 1, 1]} : vector<2x8x32xf32> to vector<2x8x8xf32>
    %201 = vector.extract_strided_slice %197 {offsets = [0, 0, 0], sizes = [2, 8, 8], strides = [1, 1, 1]} : vector<2x8x32xf32> to vector<2x8x8xf32>
    "tpu.trace_start"() <{level = 10 : i32, message = "bid,bjd->bij"}> : () -> ()
    %cst_70 = arith.constant dense<0.000000e+00> : vector<2x8x8xf32>
    %202 = tpu.matmul %199, %200, %cst_70 {dimension_numbers = #tpu.dot_dimension_numbers<[2], [2], [1], [1], [0, 0, 0, 1, 1, 1], [0], [0]>} : vector<2x8x8xf32>, vector<2x8x8xf32>, vector<2x8x8xf32> -> vector<2x8x8xf32>
    "tpu.trace_stop"() : () -> ()
    %cst_71 = arith.constant dense<0xFF800000> : vector<2x8xf32>
    %203 = vector.multi_reduction <maximumf>, %202, %cst_71 [2] : vector<2x8x8xf32> to vector<2x8xf32>
    %204 = vector.shape_cast %203 : vector<2x8xf32> to vector<2x8x1xf32>
    %205 = vector.broadcast %204 : vector<2x8x1xf32> to vector<2x8x8xf32>
    %206 = arith.subf %202, %205 : vector<2x8x8xf32>
    %207 = math.exp %206 : vector<2x8x8xf32>
    %cst_72 = arith.constant dense<0.000000e+00> : vector<2x8xf32>
    %208 = vector.multi_reduction <add>, %207, %cst_72 [2] : vector<2x8x8xf32> to vector<2x8xf32>
    %209 = vector.shape_cast %208 : vector<2x8xf32> to vector<2x8x1xf32>
    %210 = vector.broadcast %209 : vector<2x8x1xf32> to vector<2x8x8xf32>
    %211 = arith.divf %207, %210 : vector<2x8x8xf32>
    "tpu.trace_start"() <{level = 10 : i32, message = "bij,bjd->bid"}> : () -> ()
    %cst_73 = arith.constant dense<0.000000e+00> : vector<2x8x8xf32>
    %212 = tpu.matmul %211, %201, %cst_73 {dimension_numbers = #tpu.dot_dimension_numbers<[2], [1], [1], [2], [0, 0, 0, 1, 1, 2], [0], [0]>} : vector<2x8x8xf32>, vector<2x8x8xf32>, vector<2x8x8xf32> -> vector<2x8x8xf32>
    "tpu.trace_stop"() : () -> ()
    %213 = vector.shape_cast %212 : vector<2x8x8xf32> to vector<16x8xf32>
    %214 = vector.extract_strided_slice %166 {offsets = [0, 0], sizes = [8, 32], strides = [1, 1]} : vector<32x32xf32> to vector<8x32xf32>
    %cst_74 = arith.constant dense<0.000000e+00> : vector<16x32xf32>
    %215 = tpu.matmul %213, %214, %cst_74 {dimension_numbers = #tpu.dot_dimension_numbers<[1], [0], [0], [1], [0, 0, 1, 1], [], []>} : vector<16x8xf32>, vector<8x32xf32>, vector<16x32xf32> -> vector<16x32xf32>
    %216 = arith.addf %198, %215 : vector<16x32xf32>
    %217 = vector.extract_strided_slice %193 {offsets = [0, 0, 8], sizes = [2, 8, 8], strides = [1, 1, 1]} : vector<2x8x32xf32> to vector<2x8x8xf32>
    %218 = vector.extract_strided_slice %195 {offsets = [0, 0, 8], sizes = [2, 8, 8], strides = [1, 1, 1]} : vector<2x8x32xf32> to vector<2x8x8xf32>
    %219 = vector.extract_strided_slice %197 {offsets = [0, 0, 8], sizes = [2, 8, 8], strides = [1, 1, 1]} : vector<2x8x32xf32> to vector<2x8x8xf32>
    "tpu.trace_start"() <{level = 10 : i32, message = "bid,bjd->bij"}> : () -> ()
    %cst_75 = arith.constant dense<0.000000e+00> : vector<2x8x8xf32>
    %220 = tpu.matmul %217, %218, %cst_75 {dimension_numbers = #tpu.dot_dimension_numbers<[2], [2], [1], [1], [0, 0, 0, 1, 1, 1], [0], [0]>} : vector<2x8x8xf32>, vector<2x8x8xf32>, vector<2x8x8xf32> -> vector<2x8x8xf32>
    "tpu.trace_stop"() : () -> ()
    %cst_76 = arith.constant dense<0xFF800000> : vector<2x8xf32>
    %221 = vector.multi_reduction <maximumf>, %220, %cst_76 [2] : vector<2x8x8xf32> to vector<2x8xf32>
    %222 = vector.shape_cast %221 : vector<2x8xf32> to vector<2x8x1xf32>
    %223 = vector.broadcast %222 : vector<2x8x1xf32> to vector<2x8x8xf32>
    %224 = arith.subf %220, %223 : vector<2x8x8xf32>
    %225 = math.exp %224 : vector<2x8x8xf32>
    %cst_77 = arith.constant dense<0.000000e+00> : vector<2x8xf32>
    %226 = vector.multi_reduction <add>, %225, %cst_77 [2] : vector<2x8x8xf32> to vector<2x8xf32>
    %227 = vector.shape_cast %226 : vector<2x8xf32> to vector<2x8x1xf32>
    %228 = vector.broadcast %227 : vector<2x8x1xf32> to vector<2x8x8xf32>
    %229 = arith.divf %225, %228 : vector<2x8x8xf32>
    "tpu.trace_start"() <{level = 10 : i32, message = "bij,bjd->bid"}> : () -> ()
    %cst_78 = arith.constant dense<0.000000e+00> : vector<2x8x8xf32>
    %230 = tpu.matmul %229, %219, %cst_78 {dimension_numbers = #tpu.dot_dimension_numbers<[2], [1], [1], [2], [0, 0, 0, 1, 1, 2], [0], [0]>} : vector<2x8x8xf32>, vector<2x8x8xf32>, vector<2x8x8xf32> -> vector<2x8x8xf32>
    "tpu.trace_stop"() : () -> ()
    %231 = vector.shape_cast %230 : vector<2x8x8xf32> to vector<16x8xf32>
    %232 = vector.extract_strided_slice %166 {offsets = [8, 0], sizes = [8, 32], strides = [1, 1]} : vector<32x32xf32> to vector<8x32xf32>
    %cst_79 = arith.constant dense<0.000000e+00> : vector<16x32xf32>
    %233 = tpu.matmul %231, %232, %cst_79 {dimension_numbers = #tpu.dot_dimension_numbers<[1], [0], [0], [1], [0, 0, 1, 1], [], []>} : vector<16x8xf32>, vector<8x32xf32>, vector<16x32xf32> -> vector<16x32xf32>
    %234 = arith.addf %216, %233 : vector<16x32xf32>
    %235 = vector.extract_strided_slice %193 {offsets = [0, 0, 16], sizes = [2, 8, 8], strides = [1, 1, 1]} : vector<2x8x32xf32> to vector<2x8x8xf32>
    %236 = vector.extract_strided_slice %195 {offsets = [0, 0, 16], sizes = [2, 8, 8], strides = [1, 1, 1]} : vector<2x8x32xf32> to vector<2x8x8xf32>
    %237 = vector.extract_strided_slice %197 {offsets = [0, 0, 16], sizes = [2, 8, 8], strides = [1, 1, 1]} : vector<2x8x32xf32> to vector<2x8x8xf32>
    "tpu.trace_start"() <{level = 10 : i32, message = "bid,bjd->bij"}> : () -> ()
    %cst_80 = arith.constant dense<0.000000e+00> : vector<2x8x8xf32>
    %238 = tpu.matmul %235, %236, %cst_80 {dimension_numbers = #tpu.dot_dimension_numbers<[2], [2], [1], [1], [0, 0, 0, 1, 1, 1], [0], [0]>} : vector<2x8x8xf32>, vector<2x8x8xf32>, vector<2x8x8xf32> -> vector<2x8x8xf32>
    "tpu.trace_stop"() : () -> ()
    %cst_81 = arith.constant dense<0xFF800000> : vector<2x8xf32>
    %239 = vector.multi_reduction <maximumf>, %238, %cst_81 [2] : vector<2x8x8xf32> to vector<2x8xf32>
    %240 = vector.shape_cast %239 : vector<2x8xf32> to vector<2x8x1xf32>
    %241 = vector.broadcast %240 : vector<2x8x1xf32> to vector<2x8x8xf32>
    %242 = arith.subf %238, %241 : vector<2x8x8xf32>
    %243 = math.exp %242 : vector<2x8x8xf32>
    %cst_82 = arith.constant dense<0.000000e+00> : vector<2x8xf32>
    %244 = vector.multi_reduction <add>, %243, %cst_82 [2] : vector<2x8x8xf32> to vector<2x8xf32>
    %245 = vector.shape_cast %244 : vector<2x8xf32> to vector<2x8x1xf32>
    %246 = vector.broadcast %245 : vector<2x8x1xf32> to vector<2x8x8xf32>
    %247 = arith.divf %243, %246 : vector<2x8x8xf32>
    "tpu.trace_start"() <{level = 10 : i32, message = "bij,bjd->bid"}> : () -> ()
    %cst_83 = arith.constant dense<0.000000e+00> : vector<2x8x8xf32>
    %248 = tpu.matmul %247, %237, %cst_83 {dimension_numbers = #tpu.dot_dimension_numbers<[2], [1], [1], [2], [0, 0, 0, 1, 1, 2], [0], [0]>} : vector<2x8x8xf32>, vector<2x8x8xf32>, vector<2x8x8xf32> -> vector<2x8x8xf32>
    "tpu.trace_stop"() : () -> ()
    %249 = vector.shape_cast %248 : vector<2x8x8xf32> to vector<16x8xf32>
    %250 = vector.extract_strided_slice %166 {offsets = [16, 0], sizes = [8, 32], strides = [1, 1]} : vector<32x32xf32> to vector<8x32xf32>
    %cst_84 = arith.constant dense<0.000000e+00> : vector<16x32xf32>
    %251 = tpu.matmul %249, %250, %cst_84 {dimension_numbers = #tpu.dot_dimension_numbers<[1], [0], [0], [1], [0, 0, 1, 1], [], []>} : vector<16x8xf32>, vector<8x32xf32>, vector<16x32xf32> -> vector<16x32xf32>
    %252 = arith.addf %234, %251 : vector<16x32xf32>
    %253 = vector.extract_strided_slice %193 {offsets = [0, 0, 24], sizes = [2, 8, 8], strides = [1, 1, 1]} : vector<2x8x32xf32> to vector<2x8x8xf32>
    %254 = vector.extract_strided_slice %195 {offsets = [0, 0, 24], sizes = [2, 8, 8], strides = [1, 1, 1]} : vector<2x8x32xf32> to vector<2x8x8xf32>
    %255 = vector.extract_strided_slice %197 {offsets = [0, 0, 24], sizes = [2, 8, 8], strides = [1, 1, 1]} : vector<2x8x32xf32> to vector<2x8x8xf32>
    "tpu.trace_start"() <{level = 10 : i32, message = "bid,bjd->bij"}> : () -> ()
    %cst_85 = arith.constant dense<0.000000e+00> : vector<2x8x8xf32>
    %256 = tpu.matmul %253, %254, %cst_85 {dimension_numbers = #tpu.dot_dimension_numbers<[2], [2], [1], [1], [0, 0, 0, 1, 1, 1], [0], [0]>} : vector<2x8x8xf32>, vector<2x8x8xf32>, vector<2x8x8xf32> -> vector<2x8x8xf32>
    "tpu.trace_stop"() : () -> ()
    %cst_86 = arith.constant dense<0xFF800000> : vector<2x8xf32>
    %257 = vector.multi_reduction <maximumf>, %256, %cst_86 [2] : vector<2x8x8xf32> to vector<2x8xf32>
    %258 = vector.shape_cast %257 : vector<2x8xf32> to vector<2x8x1xf32>
    %259 = vector.broadcast %258 : vector<2x8x1xf32> to vector<2x8x8xf32>
    %260 = arith.subf %256, %259 : vector<2x8x8xf32>
    %261 = math.exp %260 : vector<2x8x8xf32>
    %cst_87 = arith.constant dense<0.000000e+00> : vector<2x8xf32>
    %262 = vector.multi_reduction <add>, %261, %cst_87 [2] : vector<2x8x8xf32> to vector<2x8xf32>
    %263 = vector.shape_cast %262 : vector<2x8xf32> to vector<2x8x1xf32>
    %264 = vector.broadcast %263 : vector<2x8x1xf32> to vector<2x8x8xf32>
    %265 = arith.divf %261, %264 : vector<2x8x8xf32>
    "tpu.trace_start"() <{level = 10 : i32, message = "bij,bjd->bid"}> : () -> ()
    %cst_88 = arith.constant dense<0.000000e+00> : vector<2x8x8xf32>
    %266 = tpu.matmul %265, %255, %cst_88 {dimension_numbers = #tpu.dot_dimension_numbers<[2], [1], [1], [2], [0, 0, 0, 1, 1, 2], [0], [0]>} : vector<2x8x8xf32>, vector<2x8x8xf32>, vector<2x8x8xf32> -> vector<2x8x8xf32>
    "tpu.trace_stop"() : () -> ()
    %267 = vector.shape_cast %266 : vector<2x8x8xf32> to vector<16x8xf32>
    %268 = vector.extract_strided_slice %166 {offsets = [24, 0], sizes = [8, 32], strides = [1, 1]} : vector<32x32xf32> to vector<8x32xf32>
    %cst_89 = arith.constant dense<0.000000e+00> : vector<16x32xf32>
    %269 = tpu.matmul %267, %268, %cst_89 {dimension_numbers = #tpu.dot_dimension_numbers<[1], [0], [0], [1], [0, 0, 1, 1], [], []>} : vector<16x8xf32>, vector<8x32xf32>, vector<16x32xf32> -> vector<16x32xf32>
    %270 = arith.addf %252, %269 : vector<16x32xf32>
    %271 = arith.addf %160, %270 : vector<16x32xf32>
    %272 = vector.extract_strided_slice %162 {offsets = [2, 0], sizes = [1, 32], strides = [1, 1]} : vector<6x32xf32> to vector<1x32xf32>
    %273 = vector.broadcast %272 : vector<1x32xf32> to vector<16x32xf32>
    %274 = arith.addf %271, %273 : vector<16x32xf32>
    %275 = vector.extract_strided_slice %162 {offsets = [3, 0], sizes = [1, 32], strides = [1, 1]} : vector<6x32xf32> to vector<1x32xf32>
    %276 = vector.extract_strided_slice %162 {offsets = [4, 0], sizes = [1, 32], strides = [1, 1]} : vector<6x32xf32> to vector<1x32xf32>
    %cst_90 = arith.constant dense<0.000000e+00> : vector<16xf32>
    %277 = vector.multi_reduction <add>, %274, %cst_90 [1] : vector<16x32xf32> to vector<16xf32>
    %278 = vector.shape_cast %277 : vector<16xf32> to vector<16x1xf32>
    %cst_91 = arith.constant 3.200000e+01 : f32
    %279 = vector.broadcast %cst_91 : f32 to vector<16x1xf32>
    %280 = arith.divf %278, %279 : vector<16x1xf32>
    %281 = vector.broadcast %280 : vector<16x1xf32> to vector<16x32xf32>
    %282 = arith.subf %274, %281 : vector<16x32xf32>
    %283 = arith.mulf %282, %282 : vector<16x32xf32>
    %cst_92 = arith.constant dense<0.000000e+00> : vector<16xf32>
    %284 = vector.multi_reduction <add>, %283, %cst_92 [1] : vector<16x32xf32> to vector<16xf32>
    %285 = vector.shape_cast %284 : vector<16xf32> to vector<16x1xf32>
    %cst_93 = arith.constant 3.200000e+01 : f32
    %286 = vector.broadcast %cst_93 : f32 to vector<16x1xf32>
    %287 = arith.divf %285, %286 : vector<16x1xf32>
    %288 = vector.broadcast %280 : vector<16x1xf32> to vector<16x32xf32>
    %289 = arith.subf %274, %288 : vector<16x32xf32>
    %cst_94 = arith.constant 9.99999974E-6 : f32
    %290 = vector.broadcast %cst_94 : f32 to vector<16x1xf32>
    %291 = arith.addf %287, %290 : vector<16x1xf32>
    %292 = math.rsqrt %291 : vector<16x1xf32>
    %293 = vector.broadcast %292 : vector<16x1xf32> to vector<16x32xf32>
    %294 = arith.mulf %289, %293 : vector<16x32xf32>
    %295 = vector.broadcast %275 : vector<1x32xf32> to vector<16x32xf32>
    %296 = arith.mulf %294, %295 : vector<16x32xf32>
    %297 = vector.broadcast %276 : vector<1x32xf32> to vector<16x32xf32>
    %298 = arith.addf %296, %297 : vector<16x32xf32>
    %c1_95 = arith.constant 1 : index
    %c0_96 = arith.constant 0 : index
    %c0_97 = arith.constant 0 : index
    %299 = vector.load %arg4[%c1_95, %c0_96, %c0_97] : memref<2x32x64xf32, #tpu.memory_space<vmem>>, vector<1x32x64xf32>
    %300 = vector.shape_cast %299 : vector<1x32x64xf32> to vector<32x64xf32>
    %cst_98 = arith.constant dense<0.000000e+00> : vector<16x64xf32>
    %301 = tpu.matmul %298, %300, %cst_98 {dimension_numbers = #tpu.dot_dimension_numbers<[1], [0], [0], [1], [0, 0, 1, 1], [], []>} : vector<16x32xf32>, vector<32x64xf32>, vector<16x64xf32> -> vector<16x64xf32>
    %c1_99 = arith.constant 1 : index
    %c0_100 = arith.constant 0 : index
    %c0_101 = arith.constant 0 : index
    %302 = vector.load %arg5[%c1_99, %c0_100, %c0_101] : memref<2x1x64xf32, #tpu.memory_space<vmem>>, vector<1x1x64xf32>
    %303 = vector.shape_cast %302 : vector<1x1x64xf32> to vector<1x64xf32>
    %304 = vector.broadcast %303 : vector<1x64xf32> to vector<16x64xf32>
    %305 = arith.addf %301, %304 : vector<16x64xf32>
    %cst_102 = arith.constant 5.000000e-01 : f32
    %306 = vector.broadcast %cst_102 : f32 to vector<16x64xf32>
    %307 = arith.mulf %306, %305 : vector<16x64xf32>
    %cst_103 = arith.constant 0.707106769 : f32
    %308 = vector.broadcast %cst_103 : f32 to vector<16x64xf32>
    %309 = arith.mulf %305, %308 : vector<16x64xf32>
    %310 = math.erf %309 : vector<16x64xf32>
    %cst_104 = arith.constant 1.000000e+00 : f32
    %311 = vector.broadcast %cst_104 : f32 to vector<16x64xf32>
    %312 = arith.addf %311, %310 : vector<16x64xf32>
    %313 = arith.mulf %307, %312 : vector<16x64xf32>
    %c1_105 = arith.constant 1 : index
    %c0_106 = arith.constant 0 : index
    %c0_107 = arith.constant 0 : index
    %314 = vector.load %arg6[%c1_105, %c0_106, %c0_107] : memref<2x64x32xf32, #tpu.memory_space<vmem>>, vector<1x64x32xf32>
    %315 = vector.shape_cast %314 : vector<1x64x32xf32> to vector<64x32xf32>
    %cst_108 = arith.constant dense<0.000000e+00> : vector<16x32xf32>
    %316 = tpu.matmul %313, %315, %cst_108 {dimension_numbers = #tpu.dot_dimension_numbers<[1], [0], [0], [1], [0, 0, 1, 1], [], []>} : vector<16x64xf32>, vector<64x32xf32>, vector<16x32xf32> -> vector<16x32xf32>
    %317 = arith.addf %274, %316 : vector<16x32xf32>
    %318 = vector.extract_strided_slice %162 {offsets = [5, 0], sizes = [1, 32], strides = [1, 1]} : vector<6x32xf32> to vector<1x32xf32>
    %319 = vector.broadcast %318 : vector<1x32xf32> to vector<16x32xf32>
    %320 = arith.addf %317, %319 : vector<16x32xf32>
    %c0_109 = arith.constant 0 : index
    %c0_110 = arith.constant 0 : index
    %321 = vector.load %arg7[%c0_109, %c0_110] : memref<2x32xf32, #tpu.memory_space<vmem>>, vector<2x32xf32>
    %322 = vector.extract_strided_slice %321 {offsets = [0, 0], sizes = [1, 32], strides = [1, 1]} : vector<2x32xf32> to vector<1x32xf32>
    %323 = vector.extract_strided_slice %321 {offsets = [1, 0], sizes = [1, 32], strides = [1, 1]} : vector<2x32xf32> to vector<1x32xf32>
    %cst_111 = arith.constant dense<0.000000e+00> : vector<16xf32>
    %324 = vector.multi_reduction <add>, %320, %cst_111 [1] : vector<16x32xf32> to vector<16xf32>
    %325 = vector.shape_cast %324 : vector<16xf32> to vector<16x1xf32>
    %cst_112 = arith.constant 3.200000e+01 : f32
    %326 = vector.broadcast %cst_112 : f32 to vector<16x1xf32>
    %327 = arith.divf %325, %326 : vector<16x1xf32>
    %328 = vector.broadcast %327 : vector<16x1xf32> to vector<16x32xf32>
    %329 = arith.subf %320, %328 : vector<16x32xf32>
    %330 = arith.mulf %329, %329 : vector<16x32xf32>
    %cst_113 = arith.constant dense<0.000000e+00> : vector<16xf32>
    %331 = vector.multi_reduction <add>, %330, %cst_113 [1] : vector<16x32xf32> to vector<16xf32>
    %332 = vector.shape_cast %331 : vector<16xf32> to vector<16x1xf32>
    %cst_114 = arith.constant 3.200000e+01 : f32
    %333 = vector.broadcast %cst_114 : f32 to vector<16x1xf32>
    %334 = arith.divf %332, %333 : vector<16x1xf32>
    %335 = vector.broadcast %327 : vector<16x1xf32> to vector<16x32xf32>
    %336 = arith.subf %320, %335 : vector<16x32xf32>
    %cst_115 = arith.constant 9.99999974E-6 : f32
    %337 = vector.broadcast %cst_115 : f32 to vector<16x1xf32>
    %338 = arith.addf %334, %337 : vector<16x1xf32>
    %339 = math.rsqrt %338 : vector<16x1xf32>
    %340 = vector.broadcast %339 : vector<16x1xf32> to vector<16x32xf32>
    %341 = arith.mulf %336, %340 : vector<16x32xf32>
    %342 = vector.broadcast %322 : vector<1x32xf32> to vector<16x32xf32>
    %343 = arith.mulf %341, %342 : vector<16x32xf32>
    %344 = vector.broadcast %323 : vector<1x32xf32> to vector<16x32xf32>
    %345 = arith.addf %343, %344 : vector<16x32xf32>
    %c0_116 = arith.constant 0 : index
    %c0_117 = arith.constant 0 : index
    %346 = vector.load %arg8[%c0_116, %c0_117] : memref<16x32xf32, #tpu.memory_space<vmem>>, vector<16x32xf32>
    tpu.vector_store %arg8[%c0_116, %c0_117], %345 {strides = array<i32>} : memref<16x32xf32, #tpu.memory_space<vmem>>, vector<16x32xf32>,
    return
  }
}

</mosaic_0001>

<llo_original>
// kernel: transformer_forward.1
$region0: #{transformer_forward.1}
  #allocation0 [shape = 'u32[]', space=smem, size = 0x4, offset = 0x4, fixed_abs, tag = 'smem constant byte address 0x4 - core index']
  #allocation1 [shape = 'u32[144,128]{1,0:T(1,128)}', space=vmem, size = 0x12000, scoped, tag = 'internal scratch']
  %s0 = inlined_call_operand.vmem [shape: f32[16,32], index: 0, kind: input, shape index: {}]
  %s1 = inlined_call_operand.vmem [shape: f32[2,6,32], index: 1, kind: input, shape index: {}]
  %s2 = inlined_call_operand.vmem [shape: f32[2,32,96], index: 2, kind: input, shape index: {}]
  %s3 = inlined_call_operand.vmem [shape: f32[2,32,32], index: 3, kind: input, shape index: {}]
  %s4 = inlined_call_operand.vmem [shape: f32[2,32,64], index: 4, kind: input, shape index: {}]
  %s5 = inlined_call_operand.vmem [shape: f32[2,1,64], index: 5, kind: input, shape index: {}]
  %s6 = inlined_call_operand.vmem [shape: f32[2,64,32], index: 6, kind: input, shape index: {}]
  %s7 = inlined_call_operand.vmem [shape: f32[2,32], index: 7, kind: input, shape index: {}]
  %s8 = inlined_call_operand.hbm [shape: f32[16,32], index: 8, kind: output, shape index: {}]
  %s9 = sld [smem:[#allocation0]]
  $region42: #{transformer_forward.1} parent=0
    _
  %s11 = ssub.s32 1, %s9
  %s12 = scalar_select 0, %s11, %s9
  $region1: #{transformer_forward.1} parent=0
    #allocation2 [shape = 'u8[8192]{0}', space=vmem, size = 0x2000, scoped, tag = 'output window, operand 0, single buffered']
    #allocation3 [shape = 's32[1]{0}', space=sflag, size = 0x4, scoped, tag = 'scoped memory for transformer_forward.1']
    %13 = vsyncpa [#allocation3], 0
    // Predicated region
    $region2: #{transformer_forward.1} parent=1 // pred_check
      _
    $region3: #{transformer_forward.1} parent=1 // pred_check_branch
      %15 = sbr.rel (0) target = $region5
    $region4: #{transformer_forward.1} parent=1 // pred_region
      _
    $region5: #{transformer_forward.1} parent=1 // pred_fallthru
      _
    // Predicated region
    $region6: #{transformer_forward.1} parent=1 // pred_check
      _
    $region7: #{transformer_forward.1} parent=1 // pred_check_branch
      %17 = sbr.rel (0) target = $region9
    $region8: #{transformer_forward.1} parent=1 // pred_region
      _
    $region9: #{transformer_forward.1} parent=1 // pred_fallthru
      _
    // Predicated region
    $region10: #{transformer_forward.1} parent=1 // pred_check
      _
    $region11: #{transformer_forward.1} parent=1 // pred_check_branch
      %19 = sbr.rel (0) target = $region13
    $region12: #{transformer_forward.1} parent=1 // pred_region
      _
    $region13: #{transformer_forward.1} parent=1 // pred_fallthru
      _
    // Predicated region
    $region14: #{transformer_forward.1} parent=1 // pred_check
      _
    $region15: #{transformer_forward.1} parent=1 // pred_check_branch
      %21 = sbr.rel (0) target = $region17
    $region16: #{transformer_forward.1} parent=1 // pred_region
      _
    $region17: #{transformer_forward.1} parent=1 // pred_fallthru
      _
    // Predicated region
    $region18: #{transformer_forward.1} parent=1 // pred_check
      _
    $region19: #{transformer_forward.1} parent=1 // pred_check_branch
      %23 = sbr.rel (0) target = $region21
    $region20: #{transformer_forward.1} parent=1 // pred_region
      _
    $region21: #{transformer_forward.1} parent=1 // pred_fallthru
      _
    // Predicated region
    $region22: #{transformer_forward.1} parent=1 // pred_check
      _
    $region23: #{transformer_forward.1} parent=1 // pred_check_branch
      %25 = sbr.rel (0) target = $region25
    $region24: #{transformer_forward.1} parent=1 // pred_region
      _
    $region25: #{transformer_forward.1} parent=1 // pred_fallthru
      _
    // Predicated region
    $region26: #{transformer_forward.1} parent=1 // pred_check
      _
    $region27: #{transformer_forward.1} parent=1 // pred_check_branch
      %27 = sbr.rel (0) target = $region29
    $region28: #{transformer_forward.1} parent=1 // pred_region
      _
    $region29: #{transformer_forward.1} parent=1 // pred_fallthru
      _
    // Predicated region
    $region30: #{transformer_forward.1} parent=1 // pred_check
      _
    $region31: #{transformer_forward.1} parent=1 // pred_check_branch
      %29 = sbr.rel (0) target = $region33
    $region32: #{transformer_forward.1} parent=1 // pred_region
      _
    $region33: #{transformer_forward.1} parent=1 // pred_fallthru
      _
    %v30 = vld [vmem:[%s0] sm:$0xff]
    %v31 = vld [vmem:[%s0 + $0x8] sm:$0xff]
    %v32 = vld [vmem:[%s1] sm:$0x3f]
    %v33 = vld [vmem:[%s2] sm:$0xff]
    %v34 = vld [vmem:[%s2 + $0x8] sm:$0xff]
    %v35 = vld [vmem:[%s2 + $0x10] sm:$0xff]
    %v36 = vld [vmem:[%s2 + $0x18] sm:$0xff]
    %v37 = vld [vmem:[%s3] sm:$0xff]
    %v38 = vld [vmem:[%s3 + $0x8] sm:$0xff]
    %v39 = vld [vmem:[%s3 + $0x10] sm:$0xff]
    %v40 = vld [vmem:[%s3 + $0x18] sm:$0xff]
    %vm41 = vcmask 261120
    %v42 = vsel %vm41, %v30, 0.0
    %43 = vadd.xlane.f32.xlu0 %v42
    %v44 = vpop.xlane.xlu0 %43
    %v45 = vsel %vm41, %v31, 0.0
    %46 = vadd.xlane.f32.xlu0 %v45
    %v47 = vpop.xlane.xlu0 %46
    %v48 = vrcp.pop 32.0
    %v49 = vmul.f32 %v44, %v48
    %v50 = vmul.f32 %v47, %v48
    %v51 = vsub.f32 %v30, %v49
    %v52 = vsub.f32 %v31, %v50
    %v53 = vmul.f32 %v51, %v51
    %v54 = vmul.f32 %v52, %v52
    %v55 = vsel %vm41, %v53, 0.0
    %56 = vadd.xlane.f32.xlu0 %v55
    %v57 = vpop.xlane.xlu0 %56
    %v58 = vsel %vm41, %v54, 0.0
    %59 = vadd.xlane.f32.xlu0 %v58
    %v60 = vpop.xlane.xlu0 %59
    %v61 = vmul.f32 %v57, %v48
    %v62 = vmul.f32 %v60, %v48
    %v63 = vadd.f32 %v61, 1e-05
    %v64 = vadd.f32 %v62, 1e-05
    %v65 = vrsqrt.pop %v63
    %v66 = vrsqrt.pop %v64
    %v67 = vmul.f32 %v51, %v65
    %v68 = vmul.f32 %v52, %v66
    %v69 = vlaneseq
    %v70 = vshrl.u32 %v69, 7
    %v71 = vsub.s32 0, %v70
    %v72 = vrot.slane %v32, %v71
    %v73 = vmul.f32 %v67, %v72
    %v74 = vmul.f32 %v68, %v72
    %v75 = vlaneseq
    %v76 = vshrl.u32 %v75, 7
    %v77 = vsub.s32 1, %v76
    %v78 = vrot.slane %v32, %v77
    %v79 = vadd.f32 %v73, %v78
    %v80 = vadd.f32 %v74, %v78
    %v82 = vsel %vm41, %v79, 0
    %v85 = vsel %vm41, %v80, 0
    %87 = vmatprep.subr.mxu0 0.0
    %88 = vmatpush1.msra.mxu0 %v33
    %89 = vmatprep.subr.mxu0 0.0
    %90 = vmatpush1.msra.mxu0 %v34
    %91 = vmatprep.subr.mxu0 0.0
    %92 = vmatpush1.msra.mxu0 %v35
    %93 = vmatprep.subr.mxu0 0.0
    %94 = vmatpush1.msra.mxu0 %v36
    %95 = vmatprep.subr.mxu0 0.0
    %96 = vmatpush1.msra.mxu0 0.0
    %97 = vmatprep.subr.mxu0 0.0
    %98 = vmatpush1.msra.mxu0 0.0
    %99 = vmatprep.subr.mxu0 0.0
    %100 = vmatpush1.msra.mxu0 0.0
    %101 = vmatprep.subr.mxu0 0.0
    %102 = vmatpush1.msra.mxu0 0.0
    %103 = vmatprep.subr.mxu0 0.0
    %104 = vmatpush1.msra.mxu0 0.0
    %105 = vmatprep.subr.mxu0 0.0
    %106 = vmatpush1.msra.mxu0 0.0
    %107 = vmatprep.subr.mxu0 0.0
    %108 = vmatpush1.msra.mxu0 0.0
    %109 = vmatprep.subr.mxu0 0.0
    %110 = vmatpush1.msra.mxu0 0.0
    %111 = vmatprep.subr.mxu0 0.0
    %112 = vmatpush1.msra.mxu0 0.0
    %113 = vmatprep.subr.mxu0 0.0
    %114 = vmatpush1.msra.mxu0 0.0
    %115 = vmatprep.subr.mxu0 0.0
    %116 = vmatpush1.msra.mxu0 0.0
    %117 = vmatprep.subr.mxu0 0.0
    %118 = vmatpush1.msra.mxu0 0.0
    %119 = vmatprep.subr.mxu0 0.0
    %120 = vmatpush1.msra.mxu0 0.0
    %121 = vmatprep.subr.mxu0 0.0
    %122 = vmatpush1.msra.mxu0 0.0
    %123 = vmatprep.subr.mxu0 0.0
    %124 = vmatpush1.msra.mxu0 0.0
    %125 = vmatprep.subr.mxu0 0.0
    %126 = vmatpush1.msra.mxu0 0.0
    %127 = vmatprep.subr.mxu0 0.0
    %128 = vmatpush1.msra.mxu0 0.0
    %129 = vmatprep.subr.mxu0 0.0
    %130 = vmatpush1.msra.mxu0 0.0
    %131 = vmatprep.subr.mxu0 0.0
    %132 = vmatpush1.msra.mxu0 0.0
    %133 = vmatprep.subr.mxu0 0.0
    %134 = vmatpush1.msra.mxu0 0.0
    %135 = vmatprep.subr.mxu0 0.0
    %136 = vmatpush1.msra.mxu0 0.0
    %137 = vmatprep.subr.mxu0 0.0
    %138 = vmatpush1.msra.mxu0 0.0
    %139 = vmatprep.subr.mxu0 0.0
    %140 = vmatpush1.msra.mxu0 0.0
    %141 = vmatprep.subr.mxu0 0.0
    %142 = vmatpush1.msra.mxu0 0.0
    %143 = vmatprep.subr.mxu0 0.0
    %144 = vmatpush1.msra.mxu0 0.0
    %145 = vmatprep.subr.mxu0 0.0
    %146 = vmatpush1.msra.mxu0 0.0
    %147 = vmatprep.subr.mxu0 0.0
    %148 = vmatpush1.msra.mxu0 0.0
    %149 = vmatprep.subr.mxu0 0.0
    %150 = vmatpush1.msra.mxu0 0.0
    %151 = vmatprep.mubr.f32.mxu0 0.0
    %152 = vmatmul.mubr.f32.gmra.mrb[0].mxu0 %v82
    %v153 = vpop.f32.mrb[0].mxu0
    %v154 = vadd.f32 0.0, %v153
    %v155 = vpop.f32.mrb[0].mxu0
    %156 = vmatprep.mubr.f32.mxu0 0.0
    %157 = vmatmul.mubr.f32.gmra.mrb[0].mxu0 %v85
    %v158 = vpop.f32.mrb[0].mxu0
    %v159 = vadd.f32 0.0, %v158
    %v160 = vpop.f32.mrb[0].mxu0
    %161 = vdwg.mxu0
    %163 = vrot.lane.b32.xlu0 %v154, 96
    %v164 = vpop.permute.xlu0 %163
    %vm165 = vcmask 64512
    %v166 = vsel %vm165, %v154, 0
    %v168 = vsel %vm165, %v164, 0
    %170 = vmatprep.subr.mxu0 0.0
    %171 = vmatpush1.xpose.msra.mxu0 %v168
    %172 = vmatprep.subr.mxu0 0.0
    %173 = vmatpush1.xpose.msra.mxu0 0.0
    %174 = vmatprep.subr.mxu0 0.0
    %175 = vmatpush1.xpose.msra.mxu0 0.0
    %176 = vmatprep.subr.mxu0 0.0
    %177 = vmatpush1.xpose.msra.mxu0 0.0
    %178 = vmatprep.subr.mxu0 0.0
    %179 = vmatpush1.xpose.msra.mxu0 0.0
    %180 = vmatprep.subr.mxu0 0.0
    %181 = vmatpush1.xpose.msra.mxu0 0.0
    %182 = vmatprep.subr.mxu0 0.0
    %183 = vmatpush1.xpose.msra.mxu0 0.0
    %184 = vmatprep.subr.mxu0 0.0
    %185 = vmatpush1.xpose.msra.mxu0 0.0
    %186 = vmatprep.subr.mxu0 0.0
    %187 = vmatpush1.xpose.msra.mxu0 0.0
    %188 = vmatprep.subr.mxu0 0.0
    %189 = vmatpush1.xpose.msra.mxu0 0.0
    %190 = vmatprep.subr.mxu0 0.0
    %191 = vmatpush1.xpose.msra.mxu0 0.0
    %192 = vmatprep.subr.mxu0 0.0
    %193 = vmatpush1.xpose.msra.mxu0 0.0
    %194 = vmatprep.subr.mxu0 0.0
    %195 = vmatpush1.xpose.msra.mxu0 0.0
    %196 = vmatprep.subr.mxu0 0.0
    %197 = vmatpush1.xpose.msra.mxu0 0.0
    %198 = vmatprep.subr.mxu0 0.0
    %199 = vmatpush1.xpose.msra.mxu0 0.0
    %200 = vmatprep.subr.mxu0 0.0
    %201 = vmatpush1.xpose.msra.mxu0 0.0
    %202 = vmatprep.subr.mxu0 0.0
    %203 = vmatpush1.xpose.msra.mxu0 0.0
    %204 = vmatprep.subr.mxu0 0.0
    %205 = vmatpush1.xpose.msra.mxu0 0.0
    %206 = vmatprep.subr.mxu0 0.0
    %207 = vmatpush1.xpose.msra.mxu0 0.0
    %208 = vmatprep.subr.mxu0 0.0
    %209 = vmatpush1.xpose.msra.mxu0 0.0
    %210 = vmatprep.subr.mxu0 0.0
    %211 = vmatpush1.xpose.msra.mxu0 0.0
    %212 = vmatprep.subr.mxu0 0.0
    %213 = vmatpush1.xpose.msra.mxu0 0.0
    %214 = vmatprep.subr.mxu0 0.0
    %215 = vmatpush1.xpose.msra.mxu0 0.0
    %216 = vmatprep.subr.mxu0 0.0
    %217 = vmatpush1.xpose.msra.mxu0 0.0
    %218 = vmatprep.subr.mxu0 0.0
    %219 = vmatpush1.xpose.msra.mxu0 0.0
    %220 = vmatprep.subr.mxu0 0.0
    %221 = vmatpush1.xpose.msra.mxu0 0.0
    %222 = vmatprep.subr.mxu0 0.0
    %223 = vmatpush1.xpose.msra.mxu0 0.0
    %224 = vmatprep.subr.mxu0 0.0
    %225 = vmatpush1.xpose.msra.mxu0 0.0
    %226 = vmatprep.subr.mxu0 0.0
    %227 = vmatpush1.xpose.msra.mxu0 0.0
    %228 = vmatprep.subr.mxu0 0.0
    %229 = vmatpush1.xpose.msra.mxu0 0.0
    %230 = vmatprep.subr.mxu0 0.0
    %231 = vmatpush1.xpose.msra.mxu0 0.0
    %232 = vmatprep.subr.mxu0 0.0
    %233 = vmatpush1.xpose.msra.mxu0 0.0
    %234 = vmatprep.mubr.f32.mxu0 0.0
    %235 = vmatmul.mubr.f32.gmra.mrb[0].mxu0 %v166
    %v236 = vpop.f32.mrb[0].mxu0
    %v237 = vadd.f32 0.0, %v236
    %v238 = vpop.f32.mrb[0].mxu0
    %239 = vdwg.mxu0
    %241 = vrot.lane.b32.xlu0 %v159, 96
    %v242 = vpop.permute.xlu0 %241
    %v243 = vsel %vm165, %v159, 0
    %v245 = vsel %vm165, %v242, 0
    %247 = vmatprep.subr.mxu0 0.0
    %248 = vmatpush1.xpose.msra.mxu0 %v245
    %249 = vmatprep.subr.mxu0 0.0
    %250 = vmatpush1.xpose.msra.mxu0 0.0
    %251 = vmatprep.subr.mxu0 0.0
    %252 = vmatpush1.xpose.msra.mxu0 0.0
    %253 = vmatprep.subr.mxu0 0.0
    %254 = vmatpush1.xpose.msra.mxu0 0.0
    %255 = vmatprep.subr.mxu0 0.0
    %256 = vmatpush1.xpose.msra.mxu0 0.0
    %257 = vmatprep.subr.mxu0 0.0
    %258 = vmatpush1.xpose.msra.mxu0 0.0
    %259 = vmatprep.subr.mxu0 0.0
    %260 = vmatpush1.xpose.msra.mxu0 0.0
    %261 = vmatprep.subr.mxu0 0.0
    %262 = vmatpush1.xpose.msra.mxu0 0.0
    %263 = vmatprep.subr.mxu0 0.0
    %264 = vmatpush1.xpose.msra.mxu0 0.0
    %265 = vmatprep.subr.mxu0 0.0
    %266 = vmatpush1.xpose.msra.mxu0 0.0
    %267 = vmatprep.subr.mxu0 0.0
    %268 = vmatpush1.xpose.msra.mxu0 0.0
    %269 = vmatprep.subr.mxu0 0.0
    %270 = vmatpush1.xpose.msra.mxu0 0.0
    %271 = vmatprep.subr.mxu0 0.0
    %272 = vmatpush1.xpose.msra.mxu0 0.0
    %273 = vmatprep.subr.mxu0 0.0
    %274 = vmatpush1.xpose.msra.mxu0 0.0
    %275 = vmatprep.subr.mxu0 0.0
    %276 = vmatpush1.xpose.msra.mxu0 0.0
    %277 = vmatprep.subr.mxu0 0.0
    %278 = vmatpush1.xpose.msra.mxu0 0.0
    %279 = vmatprep.subr.mxu0 0.0
    %280 = vmatpush1.xpose.msra.mxu0 0.0
    %281 = vmatprep.subr.mxu0 0.0
    %282 = vmatpush1.xpose.msra.mxu0 0.0
    %283 = vmatprep.subr.mxu0 0.0
    %284 = vmatpush1.xpose.msra.mxu0 0.0
    %285 = vmatprep.subr.mxu0 0.0
    %286 = vmatpush1.xpose.msra.mxu0 0.0
    %287 = vmatprep.subr.mxu0 0.0
    %288 = vmatpush1.xpose.msra.mxu0 0.0
    %289 = vmatprep.subr.mxu0 0.0
    %290 = vmatpush1.xpose.msra.mxu0 0.0
    %291 = vmatprep.subr.mxu0 0.0
    %292 = vmatpush1.xpose.msra.mxu0 0.0
    %293 = vmatprep.subr.mxu0 0.0
    %294 = vmatpush1.xpose.msra.mxu0 0.0
    %295 = vmatprep.subr.mxu0 0.0
    %296 = vmatpush1.xpose.msra.mxu0 0.0
    %297 = vmatprep.subr.mxu0 0.0
    %298 = vmatpush1.xpose.msra.mxu0 0.0
    %299 = vmatprep.subr.mxu0 0.0
    %300 = vmatpush1.xpose.msra.mxu0 0.0
    %301 = vmatprep.subr.mxu0 0.0
    %302 = vmatpush1.xpose.msra.mxu0 0.0
    %303 = vmatprep.subr.mxu0 0.0
    %304 = vmatpush1.xpose.msra.mxu0 0.0
    %305 = vmatprep.subr.mxu0 0.0
    %306 = vmatpush1.xpose.msra.mxu0 0.0
    %307 = vmatprep.subr.mxu0 0.0
    %308 = vmatpush1.xpose.msra.mxu0 0.0
    %309 = vmatprep.subr.mxu0 0.0
    %310 = vmatpush1.xpose.msra.mxu0 0.0
    %311 = vmatprep.mubr.f32.mxu0 0.0
    %312 = vmatmul.mubr.f32.gmra.mrb[0].mxu0 %v243
    %v313 = vpop.f32.mrb[0].mxu0
    %v314 = vadd.f32 0.0, %v313
    %v315 = vpop.f32.mrb[0].mxu0
    %316 = vdwg.mxu0
    %v317 = vsel %vm165, %v237, -inf
    %318 = vmax.xlane.f32.xlu0 %v317
    %v319 = vpop.xlane.xlu0 %318
    %v320 = vsel %vm165, %v314, -inf
    %321 = vmax.xlane.f32.xlu0 %v320
    %v322 = vpop.xlane.xlu0 %321
    %v323 = vsub.f32 %v237, %v319
    %v324 = vsub.f32 %v314, %v322
    %v325 = vmul.f32 %v323, 1.442695
    %v326 = vpow.pop %v325
    %v327 = vmul.f32 %v324, 1.442695
    %v328 = vpow.pop %v327
    %v329 = vsel %vm165, %v326, 0.0
    %330 = vadd.xlane.f32.xlu0 %v329
    %v331 = vpop.xlane.xlu0 %330
    %v332 = vsel %vm165, %v328, 0.0
    %333 = vadd.xlane.f32.xlu0 %v332
    %v334 = vpop.xlane.xlu0 %333
    %v335 = vrcp.pop %v331
    %v336 = vmul.f32 %v326, %v335
    %v337 = vrcp.pop %v334
    %v338 = vmul.f32 %v328, %v337
    %339 = vrot.lane.b32.xlu0 %v154, 64
    %v340 = vpop.permute.xlu0 %339
    %v343 = vsel %vm165, %v336, 0
    %345 = vmatprep.subr.mxu0 0.0
    %346 = vmatpush1.msra.mxu0 %v340
    %347 = vmatprep.subr.mxu0 0.0
    %348 = vmatpush1.msra.mxu0 0.0
    %349 = vmatprep.subr.mxu0 0.0
    %350 = vmatpush1.msra.mxu0 0.0
    %351 = vmatprep.subr.mxu0 0.0
    %352 = vmatpush1.msra.mxu0 0.0
    %353 = vmatprep.subr.mxu0 0.0
    %354 = vmatpush1.msra.mxu0 0.0
    %355 = vmatprep.subr.mxu0 0.0
    %356 = vmatpush1.msra.mxu0 0.0
    %357 = vmatprep.subr.mxu0 0.0
    %358 = vmatpush1.msra.mxu0 0.0
    %359 = vmatprep.subr.mxu0 0.0
    %360 = vmatpush1.msra.mxu0 0.0
    %361 = vmatprep.subr.mxu0 0.0
    %362 = vmatpush1.msra.mxu0 0.0
    %363 = vmatprep.subr.mxu0 0.0
    %364 = vmatpush1.msra.mxu0 0.0
    %365 = vmatprep.subr.mxu0 0.0
    %366 = vmatpush1.msra.mxu0 0.0
    %367 = vmatprep.subr.mxu0 0.0
    %368 = vmatpush1.msra.mxu0 0.0
    %369 = vmatprep.subr.mxu0 0.0
    %370 = vmatpush1.msra.mxu0 0.0
    %371 = vmatprep.subr.mxu0 0.0
    %372 = vmatpush1.msra.mxu0 0.0
    %373 = vmatprep.subr.mxu0 0.0
    %374 = vmatpush1.msra.mxu0 0.0
    %375 = vmatprep.subr.mxu0 0.0
    %376 = vmatpush1.msra.mxu0 0.0
    %377 = vmatprep.subr.mxu0 0.0
    %378 = vmatpush1.msra.mxu0 0.0
    %379 = vmatprep.subr.mxu0 0.0
    %380 = vmatpush1.msra.mxu0 0.0
    %381 = vmatprep.subr.mxu0 0.0
    %382 = vmatpush1.msra.mxu0 0.0
    %383 = vmatprep.subr.mxu0 0.0
    %384 = vmatpush1.msra.mxu0 0.0
    %385 = vmatprep.subr.mxu0 0.0
    %386 = vmatpush1.msra.mxu0 0.0
    %387 = vmatprep.subr.mxu0 0.0
    %388 = vmatpush1.msra.mxu0 0.0
    %389 = vmatprep.subr.mxu0 0.0
    %390 = vmatpush1.msra.mxu0 0.0
    %391 = vmatprep.subr.mxu0 0.0
    %392 = vmatpush1.msra.mxu0 0.0
    %393 = vmatprep.subr.mxu0 0.0
    %394 = vmatpush1.msra.mxu0 0.0
    %395 = vmatprep.subr.mxu0 0.0
    %396 = vmatpush1.msra.mxu0 0.0
    %397 = vmatprep.subr.mxu0 0.0
    %398 = vmatpush1.msra.mxu0 0.0
    %399 = vmatprep.subr.mxu0 0.0
    %400 = vmatpush1.msra.mxu0 0.0
    %401 = vmatprep.subr.mxu0 0.0
    %402 = vmatpush1.msra.mxu0 0.0
    %403 = vmatprep.subr.mxu0 0.0
    %404 = vmatpush1.msra.mxu0 0.0
    %405 = vmatprep.subr.mxu0 0.0
    %406 = vmatpush1.msra.mxu0 0.0
    %407 = vmatprep.subr.mxu0 0.0
    %408 = vmatpush1.msra.mxu0 0.0
    %409 = vmatprep.mubr.f32.mxu0 0.0
    %410 = vmatmul.mubr.f32.gmra.mrb[0].mxu0 %v343
    %v411 = vpop.f32.mrb[0].mxu0
    %v412 = vadd.f32 0.0, %v411
    %v413 = vpop.f32.mrb[0].mxu0
    %414 = vdwg.mxu0
    %415 = vrot.lane.b32.xlu0 %v159, 64
    %v416 = vpop.permute.xlu0 %415
    %v419 = vsel %vm165, %v338, 0
    %421 = vmatprep.subr.mxu0 0.0
    %422 = vmatpush1.msra.mxu0 %v416
    %423 = vmatprep.subr.mxu0 0.0
    %424 = vmatpush1.msra.mxu0 0.0
    %425 = vmatprep.subr.mxu0 0.0
    %426 = vmatpush1.msra.mxu0 0.0
    %427 = vmatprep.subr.mxu0 0.0
    %428 = vmatpush1.msra.mxu0 0.0
    %429 = vmatprep.subr.mxu0 0.0
    %430 = vmatpush1.msra.mxu0 0.0
    %431 = vmatprep.subr.mxu0 0.0
    %432 = vmatpush1.msra.mxu0 0.0
    %433 = vmatprep.subr.mxu0 0.0
    %434 = vmatpush1.msra.mxu0 0.0
    %435 = vmatprep.subr.mxu0 0.0
    %436 = vmatpush1.msra.mxu0 0.0
    %437 = vmatprep.subr.mxu0 0.0
    %438 = vmatpush1.msra.mxu0 0.0
    %439 = vmatprep.subr.mxu0 0.0
    %440 = vmatpush1.msra.mxu0 0.0
    %441 = vmatprep.subr.mxu0 0.0
    %442 = vmatpush1.msra.mxu0 0.0
    %443 = vmatprep.subr.mxu0 0.0
    %444 = vmatpush1.msra.mxu0 0.0
    %445 = vmatprep.subr.mxu0 0.0
    %446 = vmatpush1.msra.mxu0 0.0
    %447 = vmatprep.subr.mxu0 0.0
    %448 = vmatpush1.msra.mxu0 0.0
    %449 = vmatprep.subr.mxu0 0.0
    %450 = vmatpush1.msra.mxu0 0.0
    %451 = vmatprep.subr.mxu0 0.0
    %452 = vmatpush1.msra.mxu0 0.0
    %453 = vmatprep.subr.mxu0 0.0
    %454 = vmatpush1.msra.mxu0 0.0
    %455 = vmatprep.subr.mxu0 0.0
    %456 = vmatpush1.msra.mxu0 0.0
    %457 = vmatprep.subr.mxu0 0.0
    %458 = vmatpush1.msra.mxu0 0.0
    %459 = vmatprep.subr.mxu0 0.0
    %460 = vmatpush1.msra.mxu0 0.0
    %461 = vmatprep.subr.mxu0 0.0
    %462 = vmatpush1.msra.mxu0 0.0
    %463 = vmatprep.subr.mxu0 0.0
    %464 = vmatpush1.msra.mxu0 0.0
    %465 = vmatprep.subr.mxu0 0.0
    %466 = vmatpush1.msra.mxu0 0.0
    %467 = vmatprep.subr.mxu0 0.0
    %468 = vmatpush1.msra.mxu0 0.0
    %469 = vmatprep.subr.mxu0 0.0
    %470 = vmatpush1.msra.mxu0 0.0
    %471 = vmatprep.subr.mxu0 0.0
    %472 = vmatpush1.msra.mxu0 0.0
    %473 = vmatprep.subr.mxu0 0.0
    %474 = vmatpush1.msra.mxu0 0.0
    %475 = vmatprep.subr.mxu0 0.0
    %476 = vmatpush1.msra.mxu0 0.0
    %477 = vmatprep.subr.mxu0 0.0
    %478 = vmatpush1.msra.mxu0 0.0
    %479 = vmatprep.subr.mxu0 0.0
    %480 = vmatpush1.msra.mxu0 0.0
    %481 = vmatprep.subr.mxu0 0.0
    %482 = vmatpush1.msra.mxu0 0.0
    %483 = vmatprep.subr.mxu0 0.0
    %484 = vmatpush1.msra.mxu0 0.0
    %485 = vmatprep.mubr.f32.mxu0 0.0
    %486 = vmatmul.mubr.f32.gmra.mrb[0].mxu0 %v419
    %v487 = vpop.f32.mrb[0].mxu0
    %v488 = vadd.f32 0.0, %v487
    %v489 = vpop.f32.mrb[0].mxu0
    %490 = vdwg.mxu0
    %491 = vrot.lane.b32.xlu0 %v154, 120
    %v492 = vpop.permute.xlu0 %491
    %493 = vrot.lane.b32.xlu0 %v154, 88
    %v494 = vpop.permute.xlu0 %493
    %v495 = vsel %vm165, %v492, 0
    %v497 = vsel %vm165, %v494, 0
    %499 = vmatprep.subr.mxu0 0.0
    %500 = vmatpush1.xpose.msra.mxu0 %v497
    %501 = vmatprep.subr.mxu0 0.0
    %502 = vmatpush1.xpose.msra.mxu0 0.0
    %503 = vmatprep.subr.mxu0 0.0
    %504 = vmatpush1.xpose.msra.mxu0 0.0
    %505 = vmatprep.subr.mxu0 0.0
    %506 = vmatpush1.xpose.msra.mxu0 0.0
    %507 = vmatprep.subr.mxu0 0.0
    %508 = vmatpush1.xpose.msra.mxu0 0.0
    %509 = vmatprep.subr.mxu0 0.0
    %510 = vmatpush1.xpose.msra.mxu0 0.0
    %511 = vmatprep.subr.mxu0 0.0
    %512 = vmatpush1.xpose.msra.mxu0 0.0
    %513 = vmatprep.subr.mxu0 0.0
    %514 = vmatpush1.xpose.msra.mxu0 0.0
    %515 = vmatprep.subr.mxu0 0.0
    %516 = vmatpush1.xpose.msra.mxu0 0.0
    %517 = vmatprep.subr.mxu0 0.0
    %518 = vmatpush1.xpose.msra.mxu0 0.0
    %519 = vmatprep.subr.mxu0 0.0
    %520 = vmatpush1.xpose.msra.mxu0 0.0
    %521 = vmatprep.subr.mxu0 0.0
    %522 = vmatpush1.xpose.msra.mxu0 0.0
    %523 = vmatprep.subr.mxu0 0.0
    %524 = vmatpush1.xpose.msra.mxu0 0.0
    %525 = vmatprep.subr.mxu0 0.0
    %526 = vmatpush1.xpose.msra.mxu0 0.0
    %527 = vmatprep.subr.mxu0 0.0
    %528 = vmatpush1.xpose.msra.mxu0 0.0
    %529 = vmatprep.subr.mxu0 0.0
    %530 = vmatpush1.xpose.msra.mxu0 0.0
    %531 = vmatprep.subr.mxu0 0.0
    %532 = vmatpush1.xpose.msra.mxu0 0.0
    %533 = vmatprep.subr.mxu0 0.0
    %534 = vmatpush1.xpose.msra.mxu0 0.0
    %535 = vmatprep.subr.mxu0 0.0
    %536 = vmatpush1.xpose.msra.mxu0 0.0
    %537 = vmatprep.subr.mxu0 0.0
    %538 = vmatpush1.xpose.msra.mxu0 0.0
    %539 = vmatprep.subr.mxu0 0.0
    %540 = vmatpush1.xpose.msra.mxu0 0.0
    %541 = vmatprep.subr.mxu0 0.0
    %542 = vmatpush1.xpose.msra.mxu0 0.0
    %543 = vmatprep.subr.mxu0 0.0
    %544 = vmatpush1.xpose.msra.mxu0 0.0
    %545 = vmatprep.subr.mxu0 0.0
    %546 = vmatpush1.xpose.msra.mxu0 0.0
    %547 = vmatprep.subr.mxu0 0.0
    %548 = vmatpush1.xpose.msra.mxu0 0.0
    %549 = vmatprep.subr.mxu0 0.0
    %550 = vmatpush1.xpose.msra.mxu0 0.0
    %551 = vmatprep.subr.mxu0 0.0
    %552 = vmatpush1.xpose.msra.mxu0 0.0
    %553 = vmatprep.subr.mxu0 0.0
    %554 = vmatpush1.xpose.msra.mxu0 0.0
    %555 = vmatprep.subr.mxu0 0.0
    %556 = vmatpush1.xpose.msra.mxu0 0.0
    %557 = vmatprep.subr.mxu0 0.0
    %558 = vmatpush1.xpose.msra.mxu0 0.0
    %559 = vmatprep.subr.mxu0 0.0
    %560 = vmatpush1.xpose.msra.mxu0 0.0
    %561 = vmatprep.subr.mxu0 0.0
    %562 = vmatpush1.xpose.msra.mxu0 0.0
    %563 = vmatprep.mubr.f32.mxu0 0.0
    %564 = vmatmul.mubr.f32.gmra.mrb[0].mxu0 %v495
    %v565 = vpop.f32.mrb[0].mxu0
    %v566 = vadd.f32 0.0, %v565
    %v567 = vpop.f32.mrb[0].mxu0
    %568 = vdwg.mxu0
    %569 = vrot.lane.b32.xlu0 %v159, 120
    %v570 = vpop.permute.xlu0 %569
    %571 = vrot.lane.b32.xlu0 %v159, 88
    %v572 = vpop.permute.xlu0 %571
    %v573 = vsel %vm165, %v570, 0
    %v575 = vsel %vm165, %v572, 0
    %577 = vmatprep.subr.mxu0 0.0
    %578 = vmatpush1.xpose.msra.mxu0 %v575
    %579 = vmatprep.subr.mxu0 0.0
    %580 = vmatpush1.xpose.msra.mxu0 0.0
    %581 = vmatprep.subr.mxu0 0.0
    %582 = vmatpush1.xpose.msra.mxu0 0.0
    %583 = vmatprep.subr.mxu0 0.0
    %584 = vmatpush1.xpose.msra.mxu0 0.0
    %585 = vmatprep.subr.mxu0 0.0
    %586 = vmatpush1.xpose.msra.mxu0 0.0
    %587 = vmatprep.subr.mxu0 0.0
    %588 = vmatpush1.xpose.msra.mxu0 0.0
    %589 = vmatprep.subr.mxu0 0.0
    %590 = vmatpush1.xpose.msra.mxu0 0.0
    %591 = vmatprep.subr.mxu0 0.0
    %592 = vmatpush1.xpose.msra.mxu0 0.0
    %593 = vmatprep.subr.mxu0 0.0
    %594 = vmatpush1.xpose.msra.mxu0 0.0
    %595 = vmatprep.subr.mxu0 0.0
    %596 = vmatpush1.xpose.msra.mxu0 0.0
    %597 = vmatprep.subr.mxu0 0.0
    %598 = vmatpush1.xpose.msra.mxu0 0.0
    %599 = vmatprep.subr.mxu0 0.0
    %600 = vmatpush1.xpose.msra.mxu0 0.0
    %601 = vmatprep.subr.mxu0 0.0
    %602 = vmatpush1.xpose.msra.mxu0 0.0
    %603 = vmatprep.subr.mxu0 0.0
    %604 = vmatpush1.xpose.msra.mxu0 0.0
    %605 = vmatprep.subr.mxu0 0.0
    %606 = vmatpush1.xpose.msra.mxu0 0.0
    %607 = vmatprep.subr.mxu0 0.0
    %608 = vmatpush1.xpose.msra.mxu0 0.0
    %609 = vmatprep.subr.mxu0 0.0
    %610 = vmatpush1.xpose.msra.mxu0 0.0
    %611 = vmatprep.subr.mxu0 0.0
    %612 = vmatpush1.xpose.msra.mxu0 0.0
    %613 = vmatprep.subr.mxu0 0.0
    %614 = vmatpush1.xpose.msra.mxu0 0.0
    %615 = vmatprep.subr.mxu0 0.0
    %616 = vmatpush1.xpose.msra.mxu0 0.0
    %617 = vmatprep.subr.mxu0 0.0
    %618 = vmatpush1.xpose.msra.mxu0 0.0
    %619 = vmatprep.subr.mxu0 0.0
    %620 = vmatpush1.xpose.msra.mxu0 0.0
    %621 = vmatprep.subr.mxu0 0.0
    %622 = vmatpush1.xpose.msra.mxu0 0.0
    %623 = vmatprep.subr.mxu0 0.0
    %624 = vmatpush1.xpose.msra.mxu0 0.0
    %625 = vmatprep.subr.mxu0 0.0
    %626 = vmatpush1.xpose.msra.mxu0 0.0
    %627 = vmatprep.subr.mxu0 0.0
    %628 = vmatpush1.xpose.msra.mxu0 0.0
    %629 = vmatprep.subr.mxu0 0.0
    %630 = vmatpush1.xpose.msra.mxu0 0.0
    %631 = vmatprep.subr.mxu0 0.0
    %632 = vmatpush1.xpose.msra.mxu0 0.0
    %633 = vmatprep.subr.mxu0 0.0
    %634 = vmatpush1.xpose.msra.mxu0 0.0
    %635 = vmatprep.subr.mxu0 0.0
    %636 = vmatpush1.xpose.msra.mxu0 0.0
    %637 = vmatprep.subr.mxu0 0.0
    %638 = vmatpush1.xpose.msra.mxu0 0.0
    %639 = vmatprep.subr.mxu0 0.0
    %640 = vmatpush1.xpose.msra.mxu0 0.0
    %641 = vmatprep.mubr.f32.mxu0 0.0
    %642 = vmatmul.mubr.f32.gmra.mrb[0].mxu0 %v573
    %v643 = vpop.f32.mrb[0].mxu0
    %v644 = vadd.f32 0.0, %v643
    %v645 = vpop.f32.mrb[0].mxu0
    %646 = vdwg.mxu0
    %v647 = vsel %vm165, %v566, -inf
    %648 = vmax.xlane.f32.xlu0 %v647
    %v649 = vpop.xlane.xlu0 %648
    %v650 = vsel %vm165, %v644, -inf
    %651 = vmax.xlane.f32.xlu0 %v650
    %v652 = vpop.xlane.xlu0 %651
    %v653 = vsub.f32 %v566, %v649
    %v654 = vsub.f32 %v644, %v652
    %v655 = vmul.f32 %v653, 1.442695
    %v656 = vpow.pop %v655
    %v657 = vmul.f32 %v654, 1.442695
    %v658 = vpow.pop %v657
    %v659 = vsel %vm165, %v656, 0.0
    %660 = vadd.xlane.f32.xlu0 %v659
    %v661 = vpop.xlane.xlu0 %660
    %v662 = vsel %vm165, %v658, 0.0
    %663 = vadd.xlane.f32.xlu0 %v662
    %v664 = vpop.xlane.xlu0 %663
    %v665 = vrcp.pop %v661
    %v666 = vmul.f32 %v656, %v665
    %v667 = vrcp.pop %v664
    %v668 = vmul.f32 %v658, %v667
    %669 = vrot.lane.b32.xlu0 %v154, 56
    %v670 = vpop.permute.xlu0 %669
    %v673 = vsel %vm165, %v666, 0
    %675 = vmatprep.subr.mxu0 0.0
    %676 = vmatpush1.msra.mxu0 %v670
    %677 = vmatprep.subr.mxu0 0.0
    %678 = vmatpush1.msra.mxu0 0.0
    %679 = vmatprep.subr.mxu0 0.0
    %680 = vmatpush1.msra.mxu0 0.0
    %681 = vmatprep.subr.mxu0 0.0
    %682 = vmatpush1.msra.mxu0 0.0
    %683 = vmatprep.subr.mxu0 0.0
    %684 = vmatpush1.msra.mxu0 0.0
    %685 = vmatprep.subr.mxu0 0.0
    %686 = vmatpush1.msra.mxu0 0.0
    %687 = vmatprep.subr.mxu0 0.0
    %688 = vmatpush1.msra.mxu0 0.0
    %689 = vmatprep.subr.mxu0 0.0
    %690 = vmatpush1.msra.mxu0 0.0
    %691 = vmatprep.subr.mxu0 0.0
    %692 = vmatpush1.msra.mxu0 0.0
    %693 = vmatprep.subr.mxu0 0.0
    %694 = vmatpush1.msra.mxu0 0.0
    %695 = vmatprep.subr.mxu0 0.0
    %696 = vmatpush1.msra.mxu0 0.0
    %697 = vmatprep.subr.mxu0 0.0
    %698 = vmatpush1.msra.mxu0 0.0
    %699 = vmatprep.subr.mxu0 0.0
    %700 = vmatpush1.msra.mxu0 0.0
    %701 = vmatprep.subr.mxu0 0.0
    %702 = vmatpush1.msra.mxu0 0.0
    %703 = vmatprep.subr.mxu0 0.0
    %704 = vmatpush1.msra.mxu0 0.0
    %705 = vmatprep.subr.mxu0 0.0
    %706 = vmatpush1.msra.mxu0 0.0
    %707 = vmatprep.subr.mxu0 0.0
    %708 = vmatpush1.msra.mxu0 0.0
    %709 = vmatprep.subr.mxu0 0.0
    %710 = vmatpush1.msra.mxu0 0.0
    %711 = vmatprep.subr.mxu0 0.0
    %712 = vmatpush1.msra.mxu0 0.0
    %713 = vmatprep.subr.mxu0 0.0
    %714 = vmatpush1.msra.mxu0 0.0
    %715 = vmatprep.subr.mxu0 0.0
    %716 = vmatpush1.msra.mxu0 0.0
    %717 = vmatprep.subr.mxu0 0.0
    %718 = vmatpush1.msra.mxu0 0.0
    %719 = vmatprep.subr.mxu0 0.0
    %720 = vmatpush1.msra.mxu0 0.0
    %721 = vmatprep.subr.mxu0 0.0
    %722 = vmatpush1.msra.mxu0 0.0
    %723 = vmatprep.subr.mxu0 0.0
    %724 = vmatpush1.msra.mxu0 0.0
    %725 = vmatprep.subr.mxu0 0.0
    %726 = vmatpush1.msra.mxu0 0.0
    %727 = vmatprep.subr.mxu0 0.0
    %728 = vmatpush1.msra.mxu0 0.0
    %729 = vmatprep.subr.mxu0 0.0
    %730 = vmatpush1.msra.mxu0 0.0
    %731 = vmatprep.subr.mxu0 0.0
    %732 = vmatpush1.msra.mxu0 0.0
    %733 = vmatprep.subr.mxu0 0.0
    %734 = vmatpush1.msra.mxu0 0.0
    %735 = vmatprep.subr.mxu0 0.0
    %736 = vmatpush1.msra.mxu0 0.0
    %737 = vmatprep.subr.mxu0 0.0
    %738 = vmatpush1.msra.mxu0 0.0
    %739 = vmatprep.mubr.f32.mxu0 0.0
    %740 = vmatmul.mubr.f32.gmra.mrb[0].mxu0 %v673
    %v741 = vpop.f32.mrb[0].mxu0
    %v742 = vadd.f32 0.0, %v741
    %v743 = vpop.f32.mrb[0].mxu0
    %744 = vdwg.mxu0
    %745 = vrot.lane.b32.xlu0 %v159, 56
    %v746 = vpop.permute.xlu0 %745
    %v749 = vsel %vm165, %v668, 0
    %751 = vmatprep.subr.mxu0 0.0
    %752 = vmatpush1.msra.mxu0 %v746
    %753 = vmatprep.subr.mxu0 0.0
    %754 = vmatpush1.msra.mxu0 0.0
    %755 = vmatprep.subr.mxu0 0.0
    %756 = vmatpush1.msra.mxu0 0.0
    %757 = vmatprep.subr.mxu0 0.0
    %758 = vmatpush1.msra.mxu0 0.0
    %759 = vmatprep.subr.mxu0 0.0
    %760 = vmatpush1.msra.mxu0 0.0
    %761 = vmatprep.subr.mxu0 0.0
    %762 = vmatpush1.msra.mxu0 0.0
    %763 = vmatprep.subr.mxu0 0.0
    %764 = vmatpush1.msra.mxu0 0.0
    %765 = vmatprep.subr.mxu0 0.0
    %766 = vmatpush1.msra.mxu0 0.0
    %767 = vmatprep.subr.mxu0 0.0
    %768 = vmatpush1.msra.mxu0 0.0
    %769 = vmatprep.subr.mxu0 0.0
    %770 = vmatpush1.msra.mxu0 0.0
    %771 = vmatprep.subr.mxu0 0.0
    %772 = vmatpush1.msra.mxu0 0.0
    %773 = vmatprep.subr.mxu0 0.0
    %774 = vmatpush1.msra.mxu0 0.0
    %775 = vmatprep.subr.mxu0 0.0
    %776 = vmatpush1.msra.mxu0 0.0
    %777 = vmatprep.subr.mxu0 0.0
    %778 = vmatpush1.msra.mxu0 0.0
    %779 = vmatprep.subr.mxu0 0.0
    %780 = vmatpush1.msra.mxu0 0.0
    %781 = vmatprep.subr.mxu0 0.0
    %782 = vmatpush1.msra.mxu0 0.0
    %783 = vmatprep.subr.mxu0 0.0
    %784 = vmatpush1.msra.mxu0 0.0
    %785 = vmatprep.subr.mxu0 0.0
    %786 = vmatpush1.msra.mxu0 0.0
    %787 = vmatprep.subr.mxu0 0.0
    %788 = vmatpush1.msra.mxu0 0.0
    %789 = vmatprep.subr.mxu0 0.0
    %790 = vmatpush1.msra.mxu0 0.0
    %791 = vmatprep.subr.mxu0 0.0
    %792 = vmatpush1.msra.mxu0 0.0
    %793 = vmatprep.subr.mxu0 0.0
    %794 = vmatpush1.msra.mxu0 0.0
    %795 = vmatprep.subr.mxu0 0.0
    %796 = vmatpush1.msra.mxu0 0.0
    %797 = vmatprep.subr.mxu0 0.0
    %798 = vmatpush1.msra.mxu0 0.0
    %799 = vmatprep.subr.mxu0 0.0
    %800 = vmatpush1.msra.mxu0 0.0
    %801 = vmatprep.subr.mxu0 0.0
    %802 = vmatpush1.msra.mxu0 0.0
    %803 = vmatprep.subr.mxu0 0.0
    %804 = vmatpush1.msra.mxu0 0.0
    %805 = vmatprep.subr.mxu0 0.0
    %806 = vmatpush1.msra.mxu0 0.0
    %807 = vmatprep.subr.mxu0 0.0
    %808 = vmatpush1.msra.mxu0 0.0
    %809 = vmatprep.subr.mxu0 0.0
    %810 = vmatpush1.msra.mxu0 0.0
    %811 = vmatprep.subr.mxu0 0.0
    %812 = vmatpush1.msra.mxu0 0.0
    %813 = vmatprep.subr.mxu0 0.0
    %814 = vmatpush1.msra.mxu0 0.0
    %815 = vmatprep.mubr.f32.mxu0 0.0
    %816 = vmatmul.mubr.f32.gmra.mrb[0].mxu0 %v749
    %v817 = vpop.f32.mrb[0].mxu0
    %v818 = vadd.f32 0.0, %v817
    %v819 = vpop.f32.mrb[0].mxu0
    %820 = vdwg.mxu0
    %v822 = vsel %vm165, %v742, 0
    %v825 = vsel %vm165, %v818, 0
    %827 = vmatprep.subr.mxu0 0.0
    %828 = vmatpush1.msra.mxu0 %v38
    %829 = vmatprep.subr.mxu0 0.0
    %830 = vmatpush1.msra.mxu0 0.0
    %831 = vmatprep.subr.mxu0 0.0
    %832 = vmatpush1.msra.mxu0 0.0
    %833 = vmatprep.subr.mxu0 0.0
    %834 = vmatpush1.msra.mxu0 0.0
    %835 = vmatprep.subr.mxu0 0.0
    %836 = vmatpush1.msra.mxu0 0.0
    %837 = vmatprep.subr.mxu0 0.0
    %838 = vmatpush1.msra.mxu0 0.0
    %839 = vmatprep.subr.mxu0 0.0
    %840 = vmatpush1.msra.mxu0 0.0
    %841 = vmatprep.subr.mxu0 0.0
    %842 = vmatpush1.msra.mxu0 0.0
    %843 = vmatprep.subr.mxu0 0.0
    %844 = vmatpush1.msra.mxu0 0.0
    %845 = vmatprep.subr.mxu0 0.0
    %846 = vmatpush1.msra.mxu0 0.0
    %847 = vmatprep.subr.mxu0 0.0
    %848 = vmatpush1.msra.mxu0 0.0
    %849 = vmatprep.subr.mxu0 0.0
    %850 = vmatpush1.msra.mxu0 0.0
    %851 = vmatprep.subr.mxu0 0.0
    %852 = vmatpush1.msra.mxu0 0.0
    %853 = vmatprep.subr.mxu0 0.0
    %854 = vmatpush1.msra.mxu0 0.0
    %855 = vmatprep.subr.mxu0 0.0
    %856 = vmatpush1.msra.mxu0 0.0
    %857 = vmatprep.subr.mxu0 0.0
    %858 = vmatpush1.msra.mxu0 0.0
    %859 = vmatprep.subr.mxu0 0.0
    %860 = vmatpush1.msra.mxu0 0.0
    %861 = vmatprep.subr.mxu0 0.0
    %862 = vmatpush1.msra.mxu0 0.0
    %863 = vmatprep.subr.mxu0 0.0
    %864 = vmatpush1.msra.mxu0 0.0
    %865 = vmatprep.subr.mxu0 0.0
    %866 = vmatpush1.msra.mxu0 0.0
    %867 = vmatprep.subr.mxu0 0.0
    %868 = vmatpush1.msra.mxu0 0.0
    %869 = vmatprep.subr.mxu0 0.0
    %870 = vmatpush1.msra.mxu0 0.0
    %871 = vmatprep.subr.mxu0 0.0
    %872 = vmatpush1.msra.mxu0 0.0
    %873 = vmatprep.subr.mxu0 0.0
    %874 = vmatpush1.msra.mxu0 0.0
    %875 = vmatprep.subr.mxu0 0.0
    %876 = vmatpush1.msra.mxu0 0.0
    %877 = vmatprep.subr.mxu0 0.0
    %878 = vmatpush1.msra.mxu0 0.0
    %879 = vmatprep.subr.mxu0 0.0
    %880 = vmatpush1.msra.mxu0 0.0
    %881 = vmatprep.subr.mxu0 0.0
    %882 = vmatpush1.msra.mxu0 0.0
    %883 = vmatprep.subr.mxu0 0.0
    %884 = vmatpush1.msra.mxu0 0.0
    %885 = vmatprep.subr.mxu0 0.0
    %886 = vmatpush1.msra.mxu0 0.0
    %887 = vmatprep.subr.mxu0 0.0
    %888 = vmatpush1.msra.mxu0 0.0
    %889 = vmatprep.subr.mxu0 0.0
    %890 = vmatpush1.msra.mxu0 0.0
    %891 = vmatprep.mubr.f32.mxu0 0.0
    %892 = vmatmul.mubr.f32.gmra.mrb[0].mxu0 %v822
    %v893 = vpop.f32.mrb[0].mxu0
    %v894 = vadd.f32 0.0, %v893
    %v895 = vpop.f32.mrb[0].mxu0
    %896 = vmatprep.mubr.f32.mxu0 0.0
    %897 = vmatmul.mubr.f32.gmra.mrb[0].mxu0 %v825
    %v898 = vpop.f32.mrb[0].mxu0
    %v899 = vadd.f32 0.0, %v898
    %v900 = vpop.f32.mrb[0].mxu0
    %901 = vdwg.mxu0
    %v903 = vsel %vm165, %v412, 0
    %v906 = vsel %vm165, %v488, 0
    %908 = vmatprep.subr.mxu0 0.0
    %909 = vmatpush1.msra.mxu0 %v37
    %910 = vmatprep.subr.mxu0 0.0
    %911 = vmatpush1.msra.mxu0 0.0
    %912 = vmatprep.subr.mxu0 0.0
    %913 = vmatpush1.msra.mxu0 0.0
    %914 = vmatprep.subr.mxu0 0.0
    %915 = vmatpush1.msra.mxu0 0.0
    %916 = vmatprep.subr.mxu0 0.0
    %917 = vmatpush1.msra.mxu0 0.0
    %918 = vmatprep.subr.mxu0 0.0
    %919 = vmatpush1.msra.mxu0 0.0
    %920 = vmatprep.subr.mxu0 0.0
    %921 = vmatpush1.msra.mxu0 0.0
    %922 = vmatprep.subr.mxu0 0.0
    %923 = vmatpush1.msra.mxu0 0.0
    %924 = vmatprep.subr.mxu0 0.0
    %925 = vmatpush1.msra.mxu0 0.0
    %926 = vmatprep.subr.mxu0 0.0
    %927 = vmatpush1.msra.mxu0 0.0
    %928 = vmatprep.subr.mxu0 0.0
    %929 = vmatpush1.msra.mxu0 0.0
    %930 = vmatprep.subr.mxu0 0.0
    %931 = vmatpush1.msra.mxu0 0.0
    %932 = vmatprep.subr.mxu0 0.0
    %933 = vmatpush1.msra.mxu0 0.0
    %934 = vmatprep.subr.mxu0 0.0
    %935 = vmatpush1.msra.mxu0 0.0
    %936 = vmatprep.subr.mxu0 0.0
    %937 = vmatpush1.msra.mxu0 0.0
    %938 = vmatprep.subr.mxu0 0.0
    %939 = vmatpush1.msra.mxu0 0.0
    %940 = vmatprep.subr.mxu0 0.0
    %941 = vmatpush1.msra.mxu0 0.0
    %942 = vmatprep.subr.mxu0 0.0
    %943 = vmatpush1.msra.mxu0 0.0
    %944 = vmatprep.subr.mxu0 0.0
    %945 = vmatpush1.msra.mxu0 0.0
    %946 = vmatprep.subr.mxu0 0.0
    %947 = vmatpush1.msra.mxu0 0.0
    %948 = vmatprep.subr.mxu0 0.0
    %949 = vmatpush1.msra.mxu0 0.0
    %950 = vmatprep.subr.mxu0 0.0
    %951 = vmatpush1.msra.mxu0 0.0
    %952 = vmatprep.subr.mxu0 0.0
    %953 = vmatpush1.msra.mxu0 0.0
    %954 = vmatprep.subr.mxu0 0.0
    %955 = vmatpush1.msra.mxu0 0.0
    %956 = vmatprep.subr.mxu0 0.0
    %957 = vmatpush1.msra.mxu0 0.0
    %958 = vmatprep.subr.mxu0 0.0
    %959 = vmatpush1.msra.mxu0 0.0
    %960 = vmatprep.subr.mxu0 0.0
    %961 = vmatpush1.msra.mxu0 0.0
    %962 = vmatprep.subr.mxu0 0.0
    %963 = vmatpush1.msra.mxu0 0.0
    %964 = vmatprep.subr.mxu0 0.0
    %965 = vmatpush1.msra.mxu0 0.0
    %966 = vmatprep.subr.mxu0 0.0
    %967 = vmatpush1.msra.mxu0 0.0
    %968 = vmatprep.subr.mxu0 0.0
    %969 = vmatpush1.msra.mxu0 0.0
    %970 = vmatprep.subr.mxu0 0.0
    %971 = vmatpush1.msra.mxu0 0.0
    %972 = vmatprep.mubr.f32.mxu0 0.0
    %973 = vmatmul.mubr.f32.gmra.mrb[0].mxu0 %v903
    %v974 = vpop.f32.mrb[0].mxu0
    %v975 = vadd.f32 %v894, %v974
    %v976 = vpop.f32.mrb[0].mxu0
    %977 = vmatprep.mubr.f32.mxu0 0.0
    %978 = vmatmul.mubr.f32.gmra.mrb[0].mxu0 %v906
    %v979 = vpop.f32.mrb[0].mxu0
    %v980 = vadd.f32 %v899, %v979
    %v981 = vpop.f32.mrb[0].mxu0
    %982 = vdwg.mxu0
    %983 = vrot.lane.b32.xlu0 %v154, 112
    %v984 = vpop.permute.xlu0 %983
    %985 = vrot.lane.b32.xlu0 %v154, 80
    %v986 = vpop.permute.xlu0 %985
    %v987 = vsel %vm165, %v984, 0
    %v989 = vsel %vm165, %v986, 0
    %991 = vmatprep.subr.mxu0 0.0
    %992 = vmatpush1.xpose.msra.mxu0 %v989
    %993 = vmatprep.subr.mxu0 0.0
    %994 = vmatpush1.xpose.msra.mxu0 0.0
    %995 = vmatprep.subr.mxu0 0.0
    %996 = vmatpush1.xpose.msra.mxu0 0.0
    %997 = vmatprep.subr.mxu0 0.0
    %998 = vmatpush1.xpose.msra.mxu0 0.0
    %999 = vmatprep.subr.mxu0 0.0
    %1000 = vmatpush1.xpose.msra.mxu0 0.0
    %1001 = vmatprep.subr.mxu0 0.0
    %1002 = vmatpush1.xpose.msra.mxu0 0.0
    %1003 = vmatprep.subr.mxu0 0.0
    %1004 = vmatpush1.xpose.msra.mxu0 0.0
    %1005 = vmatprep.subr.mxu0 0.0
    %1006 = vmatpush1.xpose.msra.mxu0 0.0
    %1007 = vmatprep.subr.mxu0 0.0
    %1008 = vmatpush1.xpose.msra.mxu0 0.0
    %1009 = vmatprep.subr.mxu0 0.0
    %1010 = vmatpush1.xpose.msra.mxu0 0.0
    %1011 = vmatprep.subr.mxu0 0.0
    %1012 = vmatpush1.xpose.msra.mxu0 0.0
    %1013 = vmatprep.subr.mxu0 0.0
    %1014 = vmatpush1.xpose.msra.mxu0 0.0
    %1015 = vmatprep.subr.mxu0 0.0
    %1016 = vmatpush1.xpose.msra.mxu0 0.0
    %1017 = vmatprep.subr.mxu0 0.0
    %1018 = vmatpush1.xpose.msra.mxu0 0.0
    %1019 = vmatprep.subr.mxu0 0.0
    %1020 = vmatpush1.xpose.msra.mxu0 0.0
    %1021 = vmatprep.subr.mxu0 0.0
    %1022 = vmatpush1.xpose.msra.mxu0 0.0
    %1023 = vmatprep.subr.mxu0 0.0
    %1024 = vmatpush1.xpose.msra.mxu0 0.0
    %1025 = vmatprep.subr.mxu0 0.0
    %1026 = vmatpush1.xpose.msra.mxu0 0.0
    %1027 = vmatprep.subr.mxu0 0.0
    %1028 = vmatpush1.xpose.msra.mxu0 0.0
    %1029 = vmatprep.subr.mxu0 0.0
    %1030 = vmatpush1.xpose.msra.mxu0 0.0
    %1031 = vmatprep.subr.mxu0 0.0
    %1032 = vmatpush1.xpose.msra.mxu0 0.0
    %1033 = vmatprep.subr.mxu0 0.0
    %1034 = vmatpush1.xpose.msra.mxu0 0.0
    %1035 = vmatprep.subr.mxu0 0.0
    %1036 = vmatpush1.xpose.msra.mxu0 0.0
    %1037 = vmatprep.subr.mxu0 0.0
    %1038 = vmatpush1.xpose.msra.mxu0 0.0
    %1039 = vmatprep.subr.mxu0 0.0
    %1040 = vmatpush1.xpose.msra.mxu0 0.0
    %1041 = vmatprep.subr.mxu0 0.0
    %1042 = vmatpush1.xpose.msra.mxu0 0.0
    %1043 = vmatprep.subr.mxu0 0.0
    %1044 = vmatpush1.xpose.msra.mxu0 0.0
    %1045 = vmatprep.subr.mxu0 0.0
    %1046 = vmatpush1.xpose.msra.mxu0 0.0
    %1047 = vmatprep.subr.mxu0 0.0
    %1048 = vmatpush1.xpose.msra.mxu0 0.0
    %1049 = vmatprep.subr.mxu0 0.0
    %1050 = vmatpush1.xpose.msra.mxu0 0.0
    %1051 = vmatprep.subr.mxu0 0.0
    %1052 = vmatpush1.xpose.msra.mxu0 0.0
    %1053 = vmatprep.subr.mxu0 0.0
    %1054 = vmatpush1.xpose.msra.mxu0 0.0
    %1055 = vmatprep.mubr.f32.mxu0 0.0
    %1056 = vmatmul.mubr.f32.gmra.mrb[0].mxu0 %v987
    %v1057 = vpop.f32.mrb[0].mxu0
    %v1058 = vadd.f32 0.0, %v1057
    %v1059 = vpop.f32.mrb[0].mxu0
    %1060 = vdwg.mxu0
    %1061 = vrot.lane.b32.xlu0 %v159, 112
    %v1062 = vpop.permute.xlu0 %1061
    %1063 = vrot.lane.b32.xlu0 %v159, 80
    %v1064 = vpop.permute.xlu0 %1063
    %v1065 = vsel %vm165, %v1062, 0
    %v1067 = vsel %vm165, %v1064, 0
    %1069 = vmatprep.subr.mxu0 0.0
    %1070 = vmatpush1.xpose.msra.mxu0 %v1067
    %1071 = vmatprep.subr.mxu0 0.0
    %1072 = vmatpush1.xpose.msra.mxu0 0.0
    %1073 = vmatprep.subr.mxu0 0.0
    %1074 = vmatpush1.xpose.msra.mxu0 0.0
    %1075 = vmatprep.subr.mxu0 0.0
    %1076 = vmatpush1.xpose.msra.mxu0 0.0
    %1077 = vmatprep.subr.mxu0 0.0
    %1078 = vmatpush1.xpose.msra.mxu0 0.0
    %1079 = vmatprep.subr.mxu0 0.0
    %1080 = vmatpush1.xpose.msra.mxu0 0.0
    %1081 = vmatprep.subr.mxu0 0.0
    %1082 = vmatpush1.xpose.msra.mxu0 0.0
    %1083 = vmatprep.subr.mxu0 0.0
    %1084 = vmatpush1.xpose.msra.mxu0 0.0
    %1085 = vmatprep.subr.mxu0 0.0
    %1086 = vmatpush1.xpose.msra.mxu0 0.0
    %1087 = vmatprep.subr.mxu0 0.0
    %1088 = vmatpush1.xpose.msra.mxu0 0.0
    %1089 = vmatprep.subr.mxu0 0.0
    %1090 = vmatpush1.xpose.msra.mxu0 0.0
    %1091 = vmatprep.subr.mxu0 0.0
    %1092 = vmatpush1.xpose.msra.mxu0 0.0
    %1093 = vmatprep.subr.mxu0 0.0
    %1094 = vmatpush1.xpose.msra.mxu0 0.0
    %1095 = vmatprep.subr.mxu0 0.0
    %1096 = vmatpush1.xpose.msra.mxu0 0.0
    %1097 = vmatprep.subr.mxu0 0.0
    %1098 = vmatpush1.xpose.msra.mxu0 0.0
    %1099 = vmatprep.subr.mxu0 0.0
    %1100 = vmatpush1.xpose.msra.mxu0 0.0
    %1101 = vmatprep.subr.mxu0 0.0
    %1102 = vmatpush1.xpose.msra.mxu0 0.0
    %1103 = vmatprep.subr.mxu0 0.0
    %1104 = vmatpush1.xpose.msra.mxu0 0.0
    %1105 = vmatprep.subr.mxu0 0.0
    %1106 = vmatpush1.xpose.msra.mxu0 0.0
    %1107 = vmatprep.subr.mxu0 0.0
    %1108 = vmatpush1.xpose.msra.mxu0 0.0
    %1109 = vmatprep.subr.mxu0 0.0
    %1110 = vmatpush1.xpose.msra.mxu0 0.0
    %1111 = vmatprep.subr.mxu0 0.0
    %1112 = vmatpush1.xpose.msra.mxu0 0.0
    %1113 = vmatprep.subr.mxu0 0.0
    %1114 = vmatpush1.xpose.msra.mxu0 0.0
    %1115 = vmatprep.subr.mxu0 0.0
    %1116 = vmatpush1.xpose.msra.mxu0 0.0
    %1117 = vmatprep.subr.mxu0 0.0
    %1118 = vmatpush1.xpose.msra.mxu0 0.0
    %1119 = vmatprep.subr.mxu0 0.0
    %1120 = vmatpush1.xpose.msra.mxu0 0.0
    %1121 = vmatprep.subr.mxu0 0.0
    %1122 = vmatpush1.xpose.msra.mxu0 0.0
    %1123 = vmatprep.subr.mxu0 0.0
    %1124 = vmatpush1.xpose.msra.mxu0 0.0
    %1125 = vmatprep.subr.mxu0 0.0
    %1126 = vmatpush1.xpose.msra.mxu0 0.0
    %1127 = vmatprep.subr.mxu0 0.0
    %1128 = vmatpush1.xpose.msra.mxu0 0.0
    %1129 = vmatprep.subr.mxu0 0.0
    %1130 = vmatpush1.xpose.msra.mxu0 0.0
    %1131 = vmatprep.subr.mxu0 0.0
    %1132 = vmatpush1.xpose.msra.mxu0 0.0
    %1133 = vmatprep.mubr.f32.mxu0 0.0
    %1134 = vmatmul.mubr.f32.gmra.mrb[0].mxu0 %v1065
    %v1135 = vpop.f32.mrb[0].mxu0
    %v1136 = vadd.f32 0.0, %v1135
    %v1137 = vpop.f32.mrb[0].mxu0
    %1138 = vdwg.mxu0
    %v1139 = vsel %vm165, %v1058, -inf
    %1140 = vmax.xlane.f32.xlu0 %v1139
    %v1141 = vpop.xlane.xlu0 %1140
    %v1142 = vsel %vm165, %v1136, -inf
    %1143 = vmax.xlane.f32.xlu0 %v1142
    %v1144 = vpop.xlane.xlu0 %1143
    %v1145 = vsub.f32 %v1058, %v1141
    %v1146 = vsub.f32 %v1136, %v1144
    %v1147 = vmul.f32 %v1145, 1.442695
    %v1148 = vpow.pop %v1147
    %v1149 = vmul.f32 %v1146, 1.442695
    %v1150 = vpow.pop %v1149
    %v1151 = vsel %vm165, %v1148, 0.0
    %1152 = vadd.xlane.f32.xlu0 %v1151
    %v1153 = vpop.xlane.xlu0 %1152
    %v1154 = vsel %vm165, %v1150, 0.0
    %1155 = vadd.xlane.f32.xlu0 %v1154
    %v1156 = vpop.xlane.xlu0 %1155
    %v1157 = vrcp.pop %v1153
    %v1158 = vmul.f32 %v1148, %v1157
    %v1159 = vrcp.pop %v1156
    %v1160 = vmul.f32 %v1150, %v1159
    %1161 = vrot.lane.b32.xlu0 %v154, 48
    %v1162 = vpop.permute.xlu0 %1161
    %v1165 = vsel %vm165, %v1158, 0
    %1167 = vmatprep.subr.mxu0 0.0
    %1168 = vmatpush1.msra.mxu0 %v1162
    %1169 = vmatprep.subr.mxu0 0.0
    %1170 = vmatpush1.msra.mxu0 0.0
    %1171 = vmatprep.subr.mxu0 0.0
    %1172 = vmatpush1.msra.mxu0 0.0
    %1173 = vmatprep.subr.mxu0 0.0
    %1174 = vmatpush1.msra.mxu0 0.0
    %1175 = vmatprep.subr.mxu0 0.0
    %1176 = vmatpush1.msra.mxu0 0.0
    %1177 = vmatprep.subr.mxu0 0.0
    %1178 = vmatpush1.msra.mxu0 0.0
    %1179 = vmatprep.subr.mxu0 0.0
    %1180 = vmatpush1.msra.mxu0 0.0
    %1181 = vmatprep.subr.mxu0 0.0
    %1182 = vmatpush1.msra.mxu0 0.0
    %1183 = vmatprep.subr.mxu0 0.0
    %1184 = vmatpush1.msra.mxu0 0.0
    %1185 = vmatprep.subr.mxu0 0.0
    %1186 = vmatpush1.msra.mxu0 0.0
    %1187 = vmatprep.subr.mxu0 0.0
    %1188 = vmatpush1.msra.mxu0 0.0
    %1189 = vmatprep.subr.mxu0 0.0
    %1190 = vmatpush1.msra.mxu0 0.0
    %1191 = vmatprep.subr.mxu0 0.0
    %1192 = vmatpush1.msra.mxu0 0.0
    %1193 = vmatprep.subr.mxu0 0.0
    %1194 = vmatpush1.msra.mxu0 0.0
    %1195 = vmatprep.subr.mxu0 0.0
    %1196 = vmatpush1.msra.mxu0 0.0
    %1197 = vmatprep.subr.mxu0 0.0
    %1198 = vmatpush1.msra.mxu0 0.0
    %1199 = vmatprep.subr.mxu0 0.0
    %1200 = vmatpush1.msra.mxu0 0.0
    %1201 = vmatprep.subr.mxu0 0.0
    %1202 = vmatpush1.msra.mxu0 0.0
    %1203 = vmatprep.subr.mxu0 0.0
    %1204 = vmatpush1.msra.mxu0 0.0
    %1205 = vmatprep.subr.mxu0 0.0
    %1206 = vmatpush1.msra.mxu0 0.0
    %1207 = vmatprep.subr.mxu0 0.0
    %1208 = vmatpush1.msra.mxu0 0.0
    %1209 = vmatprep.subr.mxu0 0.0
    %1210 = vmatpush1.msra.mxu0 0.0
    %1211 = vmatprep.subr.mxu0 0.0
    %1212 = vmatpush1.msra.mxu0 0.0
    %1213 = vmatprep.subr.mxu0 0.0
    %1214 = vmatpush1.msra.mxu0 0.0
    %1215 = vmatprep.subr.mxu0 0.0
    %1216 = vmatpush1.msra.mxu0 0.0
    %1217 = vmatprep.subr.mxu0 0.0
    %1218 = vmatpush1.msra.mxu0 0.0
    %1219 = vmatprep.subr.mxu0 0.0
    %1220 = vmatpush1.msra.mxu0 0.0
    %1221 = vmatprep.subr.mxu0 0.0
    %1222 = vmatpush1.msra.mxu0 0.0
    %1223 = vmatprep.subr.mxu0 0.0
    %1224 = vmatpush1.msra.mxu0 0.0
    %1225 = vmatprep.subr.mxu0 0.0
    %1226 = vmatpush1.msra.mxu0 0.0
    %1227 = vmatprep.subr.mxu0 0.0
    %1228 = vmatpush1.msra.mxu0 0.0
    %1229 = vmatprep.subr.mxu0 0.0
    %1230 = vmatpush1.msra.mxu0 0.0
    %1231 = vmatprep.mubr.f32.mxu0 0.0
    %1232 = vmatmul.mubr.f32.gmra.mrb[0].mxu0 %v1165
    %v1233 = vpop.f32.mrb[0].mxu0
    %v1234 = vadd.f32 0.0, %v1233
    %v1235 = vpop.f32.mrb[0].mxu0
    %1236 = vdwg.mxu0
    %1237 = vrot.lane.b32.xlu0 %v159, 48
    %v1238 = vpop.permute.xlu0 %1237
    %v1241 = vsel %vm165, %v1160, 0
    %1243 = vmatprep.subr.mxu0 0.0
    %1244 = vmatpush1.msra.mxu0 %v1238
    %1245 = vmatprep.subr.mxu0 0.0
    %1246 = vmatpush1.msra.mxu0 0.0
    %1247 = vmatprep.subr.mxu0 0.0
    %1248 = vmatpush1.msra.mxu0 0.0
    %1249 = vmatprep.subr.mxu0 0.0
    %1250 = vmatpush1.msra.mxu0 0.0
    %1251 = vmatprep.subr.mxu0 0.0
    %1252 = vmatpush1.msra.mxu0 0.0
    %1253 = vmatprep.subr.mxu0 0.0
    %1254 = vmatpush1.msra.mxu0 0.0
    %1255 = vmatprep.subr.mxu0 0.0
    %1256 = vmatpush1.msra.mxu0 0.0
    %1257 = vmatprep.subr.mxu0 0.0
    %1258 = vmatpush1.msra.mxu0 0.0
    %1259 = vmatprep.subr.mxu0 0.0
    %1260 = vmatpush1.msra.mxu0 0.0
    %1261 = vmatprep.subr.mxu0 0.0
    %1262 = vmatpush1.msra.mxu0 0.0
    %1263 = vmatprep.subr.mxu0 0.0
    %1264 = vmatpush1.msra.mxu0 0.0
    %1265 = vmatprep.subr.mxu0 0.0
    %1266 = vmatpush1.msra.mxu0 0.0
    %1267 = vmatprep.subr.mxu0 0.0
    %1268 = vmatpush1.msra.mxu0 0.0
    %1269 = vmatprep.subr.mxu0 0.0
    %1270 = vmatpush1.msra.mxu0 0.0
    %1271 = vmatprep.subr.mxu0 0.0
    %1272 = vmatpush1.msra.mxu0 0.0
    %1273 = vmatprep.subr.mxu0 0.0
    %1274 = vmatpush1.msra.mxu0 0.0
    %1275 = vmatprep.subr.mxu0 0.0
    %1276 = vmatpush1.msra.mxu0 0.0
    %1277 = vmatprep.subr.mxu0 0.0
    %1278 = vmatpush1.msra.mxu0 0.0
    %1279 = vmatprep.subr.mxu0 0.0
    %1280 = vmatpush1.msra.mxu0 0.0
    %1281 = vmatprep.subr.mxu0 0.0
    %1282 = vmatpush1.msra.mxu0 0.0
    %1283 = vmatprep.subr.mxu0 0.0
    %1284 = vmatpush1.msra.mxu0 0.0
    %1285 = vmatprep.subr.mxu0 0.0
    %1286 = vmatpush1.msra.mxu0 0.0
    %1287 = vmatprep.subr.mxu0 0.0
    %1288 = vmatpush1.msra.mxu0 0.0
    %1289 = vmatprep.subr.mxu0 0.0
    %1290 = vmatpush1.msra.mxu0 0.0
    %1291 = vmatprep.subr.mxu0 0.0
    %1292 = vmatpush1.msra.mxu0 0.0
    %1293 = vmatprep.subr.mxu0 0.0
    %1294 = vmatpush1.msra.mxu0 0.0
    %1295 = vmatprep.subr.mxu0 0.0
    %1296 = vmatpush1.msra.mxu0 0.0
    %1297 = vmatprep.subr.mxu0 0.0
    %1298 = vmatpush1.msra.mxu0 0.0
    %1299 = vmatprep.subr.mxu0 0.0
    %1300 = vmatpush1.msra.mxu0 0.0
    %1301 = vmatprep.subr.mxu0 0.0
    %1302 = vmatpush1.msra.mxu0 0.0
    %1303 = vmatprep.subr.mxu0 0.0
    %1304 = vmatpush1.msra.mxu0 0.0
    %1305 = vmatprep.subr.mxu0 0.0
    %1306 = vmatpush1.msra.mxu0 0.0
    %1307 = vmatprep.mubr.f32.mxu0 0.0
    %1308 = vmatmul.mubr.f32.gmra.mrb[0].mxu0 %v1241
    %v1309 = vpop.f32.mrb[0].mxu0
    %v1310 = vadd.f32 0.0, %v1309
    %v1311 = vpop.f32.mrb[0].mxu0
    %1312 = vdwg.mxu0
    %v1314 = vsel %vm165, %v1234, 0
    %v1317 = vsel %vm165, %v1310, 0
    %1319 = vmatprep.subr.mxu0 0.0
    %1320 = vmatpush1.msra.mxu0 %v39
    %1321 = vmatprep.subr.mxu0 0.0
    %1322 = vmatpush1.msra.mxu0 0.0
    %1323 = vmatprep.subr.mxu0 0.0
    %1324 = vmatpush1.msra.mxu0 0.0
    %1325 = vmatprep.subr.mxu0 0.0
    %1326 = vmatpush1.msra.mxu0 0.0
    %1327 = vmatprep.subr.mxu0 0.0
    %1328 = vmatpush1.msra.mxu0 0.0
    %1329 = vmatprep.subr.mxu0 0.0
    %1330 = vmatpush1.msra.mxu0 0.0
    %1331 = vmatprep.subr.mxu0 0.0
    %1332 = vmatpush1.msra.mxu0 0.0
    %1333 = vmatprep.subr.mxu0 0.0
    %1334 = vmatpush1.msra.mxu0 0.0
    %1335 = vmatprep.subr.mxu0 0.0
    %1336 = vmatpush1.msra.mxu0 0.0
    %1337 = vmatprep.subr.mxu0 0.0
    %1338 = vmatpush1.msra.mxu0 0.0
    %1339 = vmatprep.subr.mxu0 0.0
    %1340 = vmatpush1.msra.mxu0 0.0
    %1341 = vmatprep.subr.mxu0 0.0
    %1342 = vmatpush1.msra.mxu0 0.0
    %1343 = vmatprep.subr.mxu0 0.0
    %1344 = vmatpush1.msra.mxu0 0.0
    %1345 = vmatprep.subr.mxu0 0.0
    %1346 = vmatpush1.msra.mxu0 0.0
    %1347 = vmatprep.subr.mxu0 0.0
    %1348 = vmatpush1.msra.mxu0 0.0
    %1349 = vmatprep.subr.mxu0 0.0
    %1350 = vmatpush1.msra.mxu0 0.0
    %1351 = vmatprep.subr.mxu0 0.0
    %1352 = vmatpush1.msra.mxu0 0.0
    %1353 = vmatprep.subr.mxu0 0.0
    %1354 = vmatpush1.msra.mxu0 0.0
    %1355 = vmatprep.subr.mxu0 0.0
    %1356 = vmatpush1.msra.mxu0 0.0
    %1357 = vmatprep.subr.mxu0 0.0
    %1358 = vmatpush1.msra.mxu0 0.0
    %1359 = vmatprep.subr.mxu0 0.0
    %1360 = vmatpush1.msra.mxu0 0.0
    %1361 = vmatprep.subr.mxu0 0.0
    %1362 = vmatpush1.msra.mxu0 0.0
    %1363 = vmatprep.subr.mxu0 0.0
    %1364 = vmatpush1.msra.mxu0 0.0
    %1365 = vmatprep.subr.mxu0 0.0
    %1366 = vmatpush1.msra.mxu0 0.0
    %1367 = vmatprep.subr.mxu0 0.0
    %1368 = vmatpush1.msra.mxu0 0.0
    %1369 = vmatprep.subr.mxu0 0.0
    %1370 = vmatpush1.msra.mxu0 0.0
    %1371 = vmatprep.subr.mxu0 0.0
    %1372 = vmatpush1.msra.mxu0 0.0
    %1373 = vmatprep.subr.mxu0 0.0
    %1374 = vmatpush1.msra.mxu0 0.0
    %1375 = vmatprep.subr.mxu0 0.0
    %1376 = vmatpush1.msra.mxu0 0.0
    %1377 = vmatprep.subr.mxu0 0.0
    %1378 = vmatpush1.msra.mxu0 0.0
    %1379 = vmatprep.subr.mxu0 0.0
    %1380 = vmatpush1.msra.mxu0 0.0
    %1381 = vmatprep.subr.mxu0 0.0
    %1382 = vmatpush1.msra.mxu0 0.0
    %1383 = vmatprep.mubr.f32.mxu0 0.0
    %1384 = vmatmul.mubr.f32.gmra.mrb[0].mxu0 %v1314
    %v1385 = vpop.f32.mrb[0].mxu0
    %v1386 = vadd.f32 0.0, %v1385
    %v1387 = vpop.f32.mrb[0].mxu0
    %1388 = vmatprep.mubr.f32.mxu0 0.0
    %1389 = vmatmul.mubr.f32.gmra.mrb[0].mxu0 %v1317
    %v1390 = vpop.f32.mrb[0].mxu0
    %v1391 = vadd.f32 0.0, %v1390
    %v1392 = vpop.f32.mrb[0].mxu0
    %1393 = vdwg.mxu0
    %v1394 = vadd.f32 %v975, %v1386
    %v1395 = vadd.f32 %v980, %v1391
    %1396 = vrot.lane.b32.xlu0 %v154, 104
    %v1397 = vpop.permute.xlu0 %1396
    %1398 = vrot.lane.b32.xlu0 %v154, 72
    %v1399 = vpop.permute.xlu0 %1398
    %v1400 = vsel %vm165, %v1397, 0
    %v1402 = vsel %vm165, %v1399, 0
    %1404 = vmatprep.subr.mxu0 0.0
    %1405 = vmatpush1.xpose.msra.mxu0 %v1402
    %1406 = vmatprep.subr.mxu0 0.0
    %1407 = vmatpush1.xpose.msra.mxu0 0.0
    %1408 = vmatprep.subr.mxu0 0.0
    %1409 = vmatpush1.xpose.msra.mxu0 0.0
    %1410 = vmatprep.subr.mxu0 0.0
    %1411 = vmatpush1.xpose.msra.mxu0 0.0
    %1412 = vmatprep.subr.mxu0 0.0
    %1413 = vmatpush1.xpose.msra.mxu0 0.0
    %1414 = vmatprep.subr.mxu0 0.0
    %1415 = vmatpush1.xpose.msra.mxu0 0.0
    %1416 = vmatprep.subr.mxu0 0.0
    %1417 = vmatpush1.xpose.msra.mxu0 0.0
    %1418 = vmatprep.subr.mxu0 0.0
    %1419 = vmatpush1.xpose.msra.mxu0 0.0
    %1420 = vmatprep.subr.mxu0 0.0
    %1421 = vmatpush1.xpose.msra.mxu0 0.0
    %1422 = vmatprep.subr.mxu0 0.0
    %1423 = vmatpush1.xpose.msra.mxu0 0.0
    %1424 = vmatprep.subr.mxu0 0.0
    %1425 = vmatpush1.xpose.msra.mxu0 0.0
    %1426 = vmatprep.subr.mxu0 0.0
    %1427 = vmatpush1.xpose.msra.mxu0 0.0
    %1428 = vmatprep.subr.mxu0 0.0
    %1429 = vmatpush1.xpose.msra.mxu0 0.0
    %1430 = vmatprep.subr.mxu0 0.0
    %1431 = vmatpush1.xpose.msra.mxu0 0.0
    %1432 = vmatprep.subr.mxu0 0.0
    %1433 = vmatpush1.xpose.msra.mxu0 0.0
    %1434 = vmatprep.subr.mxu0 0.0
    %1435 = vmatpush1.xpose.msra.mxu0 0.0
    %1436 = vmatprep.subr.mxu0 0.0
    %1437 = vmatpush1.xpose.msra.mxu0 0.0
    %1438 = vmatprep.subr.mxu0 0.0
    %1439 = vmatpush1.xpose.msra.mxu0 0.0
    %1440 = vmatprep.subr.mxu0 0.0
    %1441 = vmatpush1.xpose.msra.mxu0 0.0
    %1442 = vmatprep.subr.mxu0 0.0
    %1443 = vmatpush1.xpose.msra.mxu0 0.0
    %1444 = vmatprep.subr.mxu0 0.0
    %1445 = vmatpush1.xpose.msra.mxu0 0.0
    %1446 = vmatprep.subr.mxu0 0.0
    %1447 = vmatpush1.xpose.msra.mxu0 0.0
    %1448 = vmatprep.subr.mxu0 0.0
    %1449 = vmatpush1.xpose.msra.mxu0 0.0
    %1450 = vmatprep.subr.mxu0 0.0
    %1451 = vmatpush1.xpose.msra.mxu0 0.0
    %1452 = vmatprep.subr.mxu0 0.0
    %1453 = vmatpush1.xpose.msra.mxu0 0.0
    %1454 = vmatprep.subr.mxu0 0.0
    %1455 = vmatpush1.xpose.msra.mxu0 0.0
    %1456 = vmatprep.subr.mxu0 0.0
    %1457 = vmatpush1.xpose.msra.mxu0 0.0
    %1458 = vmatprep.subr.mxu0 0.0
    %1459 = vmatpush1.xpose.msra.mxu0 0.0
    %1460 = vmatprep.subr.mxu0 0.0
    %1461 = vmatpush1.xpose.msra.mxu0 0.0
    %1462 = vmatprep.subr.mxu0 0.0
    %1463 = vmatpush1.xpose.msra.mxu0 0.0
    %1464 = vmatprep.subr.mxu0 0.0
    %1465 = vmatpush1.xpose.msra.mxu0 0.0
    %1466 = vmatprep.subr.mxu0 0.0
    %1467 = vmatpush1.xpose.msra.mxu0 0.0
    %1468 = vmatprep.mubr.f32.mxu0 0.0
    %1469 = vmatmul.mubr.f32.gmra.mrb[0].mxu0 %v1400
    %v1470 = vpop.f32.mrb[0].mxu0
    %v1471 = vadd.f32 0.0, %v1470
    %v1472 = vpop.f32.mrb[0].mxu0
    %1473 = vdwg.mxu0
    %1474 = vrot.lane.b32.xlu0 %v159, 104
    %v1475 = vpop.permute.xlu0 %1474
    %1476 = vrot.lane.b32.xlu0 %v159, 72
    %v1477 = vpop.permute.xlu0 %1476
    %v1478 = vsel %vm165, %v1475, 0
    %v1480 = vsel %vm165, %v1477, 0
    %1482 = vmatprep.subr.mxu0 0.0
    %1483 = vmatpush1.xpose.msra.mxu0 %v1480
    %1484 = vmatprep.subr.mxu0 0.0
    %1485 = vmatpush1.xpose.msra.mxu0 0.0
    %1486 = vmatprep.subr.mxu0 0.0
    %1487 = vmatpush1.xpose.msra.mxu0 0.0
    %1488 = vmatprep.subr.mxu0 0.0
    %1489 = vmatpush1.xpose.msra.mxu0 0.0
    %1490 = vmatprep.subr.mxu0 0.0
    %1491 = vmatpush1.xpose.msra.mxu0 0.0
    %1492 = vmatprep.subr.mxu0 0.0
    %1493 = vmatpush1.xpose.msra.mxu0 0.0
    %1494 = vmatprep.subr.mxu0 0.0
    %1495 = vmatpush1.xpose.msra.mxu0 0.0
    %1496 = vmatprep.subr.mxu0 0.0
    %1497 = vmatpush1.xpose.msra.mxu0 0.0
    %1498 = vmatprep.subr.mxu0 0.0
    %1499 = vmatpush1.xpose.msra.mxu0 0.0
    %1500 = vmatprep.subr.mxu0 0.0
    %1501 = vmatpush1.xpose.msra.mxu0 0.0
    %1502 = vmatprep.subr.mxu0 0.0
    %1503 = vmatpush1.xpose.msra.mxu0 0.0
    %1504 = vmatprep.subr.mxu0 0.0
    %1505 = vmatpush1.xpose.msra.mxu0 0.0
    %1506 = vmatprep.subr.mxu0 0.0
    %1507 = vmatpush1.xpose.msra.mxu0 0.0
    %1508 = vmatprep.subr.mxu0 0.0
    %1509 = vmatpush1.xpose.msra.mxu0 0.0
    %1510 = vmatprep.subr.mxu0 0.0
    %1511 = vmatpush1.xpose.msra.mxu0 0.0
    %1512 = vmatprep.subr.mxu0 0.0
    %1513 = vmatpush1.xpose.msra.mxu0 0.0
    %1514 = vmatprep.subr.mxu0 0.0
    %1515 = vmatpush1.xpose.msra.mxu0 0.0
    %1516 = vmatprep.subr.mxu0 0.0
    %1517 = vmatpush1.xpose.msra.mxu0 0.0
    %1518 = vmatprep.subr.mxu0 0.0
    %1519 = vmatpush1.xpose.msra.mxu0 0.0
    %1520 = vmatprep.subr.mxu0 0.0
    %1521 = vmatpush1.xpose.msra.mxu0 0.0
    %1522 = vmatprep.subr.mxu0 0.0
    %1523 = vmatpush1.xpose.msra.mxu0 0.0
    %1524 = vmatprep.subr.mxu0 0.0
    %1525 = vmatpush1.xpose.msra.mxu0 0.0
    %1526 = vmatprep.subr.mxu0 0.0
    %1527 = vmatpush1.xpose.msra.mxu0 0.0
    %1528 = vmatprep.subr.mxu0 0.0
    %1529 = vmatpush1.xpose.msra.mxu0 0.0
    %1530 = vmatprep.subr.mxu0 0.0
    %1531 = vmatpush1.xpose.msra.mxu0 0.0
    %1532 = vmatprep.subr.mxu0 0.0
    %1533 = vmatpush1.xpose.msra.mxu0 0.0
    %1534 = vmatprep.subr.mxu0 0.0
    %1535 = vmatpush1.xpose.msra.mxu0 0.0
    %1536 = vmatprep.subr.mxu0 0.0
    %1537 = vmatpush1.xpose.msra.mxu0 0.0
    %1538 = vmatprep.subr.mxu0 0.0
    %1539 = vmatpush1.xpose.msra.mxu0 0.0
    %1540 = vmatprep.subr.mxu0 0.0
    %1541 = vmatpush1.xpose.msra.mxu0 0.0
    %1542 = vmatprep.subr.mxu0 0.0
    %1543 = vmatpush1.xpose.msra.mxu0 0.0
    %1544 = vmatprep.subr.mxu0 0.0
    %1545 = vmatpush1.xpose.msra.mxu0 0.0
    %1546 = vmatprep.mubr.f32.mxu0 0.0
    %1547 = vmatmul.mubr.f32.gmra.mrb[0].mxu0 %v1478
    %v1548 = vpop.f32.mrb[0].mxu0
    %v1549 = vadd.f32 0.0, %v1548
    %v1550 = vpop.f32.mrb[0].mxu0
    %1551 = vdwg.mxu0
    %v1552 = vsel %vm165, %v1471, -inf
    %1553 = vmax.xlane.f32.xlu0 %v1552
    %v1554 = vpop.xlane.xlu0 %1553
    %v1555 = vsel %vm165, %v1549, -inf
    %1556 = vmax.xlane.f32.xlu0 %v1555
    %v1557 = vpop.xlane.xlu0 %1556
    %v1558 = vsub.f32 %v1471, %v1554
    %v1559 = vsub.f32 %v1549, %v1557
    %v1560 = vmul.f32 %v1558, 1.442695
    %v1561 = vpow.pop %v1560
    %v1562 = vmul.f32 %v1559, 1.442695
    %v1563 = vpow.pop %v1562
    %v1564 = vsel %vm165, %v1561, 0.0
    %1565 = vadd.xlane.f32.xlu0 %v1564
    %v1566 = vpop.xlane.xlu0 %1565
    %v1567 = vsel %vm165, %v1563, 0.0
    %1568 = vadd.xlane.f32.xlu0 %v1567
    %v1569 = vpop.xlane.xlu0 %1568
    %v1570 = vrcp.pop %v1566
    %v1571 = vmul.f32 %v1561, %v1570
    %v1572 = vrcp.pop %v1569
    %v1573 = vmul.f32 %v1563, %v1572
    %1574 = vrot.lane.b32.xlu0 %v154, 40
    %v1575 = vpop.permute.xlu0 %1574
    %v1578 = vsel %vm165, %v1571, 0
    %1580 = vmatprep.subr.mxu0 0.0
    %1581 = vmatpush1.msra.mxu0 %v1575
    %1582 = vmatprep.subr.mxu0 0.0
    %1583 = vmatpush1.msra.mxu0 0.0
    %1584 = vmatprep.subr.mxu0 0.0
    %1585 = vmatpush1.msra.mxu0 0.0
    %1586 = vmatprep.subr.mxu0 0.0
    %1587 = vmatpush1.msra.mxu0 0.0
    %1588 = vmatprep.subr.mxu0 0.0
    %1589 = vmatpush1.msra.mxu0 0.0
    %1590 = vmatprep.subr.mxu0 0.0
    %1591 = vmatpush1.msra.mxu0 0.0
    %1592 = vmatprep.subr.mxu0 0.0
    %1593 = vmatpush1.msra.mxu0 0.0
    %1594 = vmatprep.subr.mxu0 0.0
    %1595 = vmatpush1.msra.mxu0 0.0
    %1596 = vmatprep.subr.mxu0 0.0
    %1597 = vmatpush1.msra.mxu0 0.0
    %1598 = vmatprep.subr.mxu0 0.0
    %1599 = vmatpush1.msra.mxu0 0.0
    %1600 = vmatprep.subr.mxu0 0.0
    %1601 = vmatpush1.msra.mxu0 0.0
    %1602 = vmatprep.subr.mxu0 0.0
    %1603 = vmatpush1.msra.mxu0 0.0
    %1604 = vmatprep.subr.mxu0 0.0
    %1605 = vmatpush1.msra.mxu0 0.0
    %1606 = vmatprep.subr.mxu0 0.0
    %1607 = vmatpush1.msra.mxu0 0.0
    %1608 = vmatprep.subr.mxu0 0.0
    %1609 = vmatpush1.msra.mxu0 0.0
    %1610 = vmatprep.subr.mxu0 0.0
    %1611 = vmatpush1.msra.mxu0 0.0
    %1612 = vmatprep.subr.mxu0 0.0
    %1613 = vmatpush1.msra.mxu0 0.0
    %1614 = vmatprep.subr.mxu0 0.0
    %1615 = vmatpush1.msra.mxu0 0.0
    %1616 = vmatprep.subr.mxu0 0.0
    %1617 = vmatpush1.msra.mxu0 0.0
    %1618 = vmatprep.subr.mxu0 0.0
    %1619 = vmatpush1.msra.mxu0 0.0
    %1620 = vmatprep.subr.mxu0 0.0
    %1621 = vmatpush1.msra.mxu0 0.0
    %1622 = vmatprep.subr.mxu0 0.0
    %1623 = vmatpush1.msra.mxu0 0.0
    %1624 = vmatprep.subr.mxu0 0.0
    %1625 = vmatpush1.msra.mxu0 0.0
    %1626 = vmatprep.subr.mxu0 0.0
    %1627 = vmatpush1.msra.mxu0 0.0
    %1628 = vmatprep.subr.mxu0 0.0
    %1629 = vmatpush1.msra.mxu0 0.0
    %1630 = vmatprep.subr.mxu0 0.0
    %1631 = vmatpush1.msra.mxu0 0.0
    %1632 = vmatprep.subr.mxu0 0.0
    %1633 = vmatpush1.msra.mxu0 0.0
    %1634 = vmatprep.subr.mxu0 0.0
    %1635 = vmatpush1.msra.mxu0 0.0
    %1636 = vmatprep.subr.mxu0 0.0
    %1637 = vmatpush1.msra.mxu0 0.0
    %1638 = vmatprep.subr.mxu0 0.0
    %1639 = vmatpush1.msra.mxu0 0.0
    %1640 = vmatprep.subr.mxu0 0.0
    %1641 = vmatpush1.msra.mxu0 0.0
    %1642 = vmatprep.subr.mxu0 0.0
    %1643 = vmatpush1.msra.mxu0 0.0
    %1644 = vmatprep.mubr.f32.mxu0 0.0
    %1645 = vmatmul.mubr.f32.gmra.mrb[0].mxu0 %v1578
    %v1646 = vpop.f32.mrb[0].mxu0
    %v1647 = vadd.f32 0.0, %v1646
    %v1648 = vpop.f32.mrb[0].mxu0
    %1649 = vdwg.mxu0
    %1650 = vrot.lane.b32.xlu0 %v159, 40
    %v1651 = vpop.permute.xlu0 %1650
    %v1654 = vsel %vm165, %v1573, 0
    %1656 = vmatprep.subr.mxu0 0.0
    %1657 = vmatpush1.msra.mxu0 %v1651
    %1658 = vmatprep.subr.mxu0 0.0
    %1659 = vmatpush1.msra.mxu0 0.0
    %1660 = vmatprep.subr.mxu0 0.0
    %1661 = vmatpush1.msra.mxu0 0.0
    %1662 = vmatprep.subr.mxu0 0.0
    %1663 = vmatpush1.msra.mxu0 0.0
    %1664 = vmatprep.subr.mxu0 0.0
    %1665 = vmatpush1.msra.mxu0 0.0
    %1666 = vmatprep.subr.mxu0 0.0
    %1667 = vmatpush1.msra.mxu0 0.0
    %1668 = vmatprep.subr.mxu0 0.0
    %1669 = vmatpush1.msra.mxu0 0.0
    %1670 = vmatprep.subr.mxu0 0.0
    %1671 = vmatpush1.msra.mxu0 0.0
    %1672 = vmatprep.subr.mxu0 0.0
    %1673 = vmatpush1.msra.mxu0 0.0
    %1674 = vmatprep.subr.mxu0 0.0
    %1675 = vmatpush1.msra.mxu0 0.0
    %1676 = vmatprep.subr.mxu0 0.0
    %1677 = vmatpush1.msra.mxu0 0.0
    %1678 = vmatprep.subr.mxu0 0.0
    %1679 = vmatpush1.msra.mxu0 0.0
    %1680 = vmatprep.subr.mxu0 0.0
    %1681 = vmatpush1.msra.mxu0 0.0
    %1682 = vmatprep.subr.mxu0 0.0
    %1683 = vmatpush1.msra.mxu0 0.0
    %1684 = vmatprep.subr.mxu0 0.0
    %1685 = vmatpush1.msra.mxu0 0.0
    %1686 = vmatprep.subr.mxu0 0.0
    %1687 = vmatpush1.msra.mxu0 0.0
    %1688 = vmatprep.subr.mxu0 0.0
    %1689 = vmatpush1.msra.mxu0 0.0
    %1690 = vmatprep.subr.mxu0 0.0
    %1691 = vmatpush1.msra.mxu0 0.0
    %1692 = vmatprep.subr.mxu0 0.0
    %1693 = vmatpush1.msra.mxu0 0.0
    %1694 = vmatprep.subr.mxu0 0.0
    %1695 = vmatpush1.msra.mxu0 0.0
    %1696 = vmatprep.subr.mxu0 0.0
    %1697 = vmatpush1.msra.mxu0 0.0
    %1698 = vmatprep.subr.mxu0 0.0
    %1699 = vmatpush1.msra.mxu0 0.0
    %1700 = vmatprep.subr.mxu0 0.0
    %1701 = vmatpush1.msra.mxu0 0.0
    %1702 = vmatprep.subr.mxu0 0.0
    %1703 = vmatpush1.msra.mxu0 0.0
    %1704 = vmatprep.subr.mxu0 0.0
    %1705 = vmatpush1.msra.mxu0 0.0
    %1706 = vmatprep.subr.mxu0 0.0
    %1707 = vmatpush1.msra.mxu0 0.0
    %1708 = vmatprep.subr.mxu0 0.0
    %1709 = vmatpush1.msra.mxu0 0.0
    %1710 = vmatprep.subr.mxu0 0.0
    %1711 = vmatpush1.msra.mxu0 0.0
    %1712 = vmatprep.subr.mxu0 0.0
    %1713 = vmatpush1.msra.mxu0 0.0
    %1714 = vmatprep.subr.mxu0 0.0
    %1715 = vmatpush1.msra.mxu0 0.0
    %1716 = vmatprep.subr.mxu0 0.0
    %1717 = vmatpush1.msra.mxu0 0.0
    %1718 = vmatprep.subr.mxu0 0.0
    %1719 = vmatpush1.msra.mxu0 0.0
    %1720 = vmatprep.mubr.f32.mxu0 0.0
    %1721 = vmatmul.mubr.f32.gmra.mrb[0].mxu0 %v1654
    %v1722 = vpop.f32.mrb[0].mxu0
    %v1723 = vadd.f32 0.0, %v1722
    %v1724 = vpop.f32.mrb[0].mxu0
    %1725 = vdwg.mxu0
    %v1727 = vsel %vm165, %v1647, 0
    %v1730 = vsel %vm165, %v1723, 0
    %1732 = vmatprep.subr.mxu0 0.0
    %1733 = vmatpush1.msra.mxu0 %v40
    %1734 = vmatprep.subr.mxu0 0.0
    %1735 = vmatpush1.msra.mxu0 0.0
    %1736 = vmatprep.subr.mxu0 0.0
    %1737 = vmatpush1.msra.mxu0 0.0
    %1738 = vmatprep.subr.mxu0 0.0
    %1739 = vmatpush1.msra.mxu0 0.0
    %1740 = vmatprep.subr.mxu0 0.0
    %1741 = vmatpush1.msra.mxu0 0.0
    %1742 = vmatprep.subr.mxu0 0.0
    %1743 = vmatpush1.msra.mxu0 0.0
    %1744 = vmatprep.subr.mxu0 0.0
    %1745 = vmatpush1.msra.mxu0 0.0
    %1746 = vmatprep.subr.mxu0 0.0
    %1747 = vmatpush1.msra.mxu0 0.0
    %1748 = vmatprep.subr.mxu0 0.0
    %1749 = vmatpush1.msra.mxu0 0.0
    %1750 = vmatprep.subr.mxu0 0.0
    %1751 = vmatpush1.msra.mxu0 0.0
    %1752 = vmatprep.subr.mxu0 0.0
    %1753 = vmatpush1.msra.mxu0 0.0
    %1754 = vmatprep.subr.mxu0 0.0
    %1755 = vmatpush1.msra.mxu0 0.0
    %1756 = vmatprep.subr.mxu0 0.0
    %1757 = vmatpush1.msra.mxu0 0.0
    %1758 = vmatprep.subr.mxu0 0.0
    %1759 = vmatpush1.msra.mxu0 0.0
    %1760 = vmatprep.subr.mxu0 0.0
    %1761 = vmatpush1.msra.mxu0 0.0
    %1762 = vmatprep.subr.mxu0 0.0
    %1763 = vmatpush1.msra.mxu0 0.0
    %1764 = vmatprep.subr.mxu0 0.0
    %1765 = vmatpush1.msra.mxu0 0.0
    %1766 = vmatprep.subr.mxu0 0.0
    %1767 = vmatpush1.msra.mxu0 0.0
    %1768 = vmatprep.subr.mxu0 0.0
    %1769 = vmatpush1.msra.mxu0 0.0
    %1770 = vmatprep.subr.mxu0 0.0
    %1771 = vmatpush1.msra.mxu0 0.0
    %1772 = vmatprep.subr.mxu0 0.0
    %1773 = vmatpush1.msra.mxu0 0.0
    %1774 = vmatprep.subr.mxu0 0.0
    %1775 = vmatpush1.msra.mxu0 0.0
    %1776 = vmatprep.subr.mxu0 0.0
    %1777 = vmatpush1.msra.mxu0 0.0
    %1778 = vmatprep.subr.mxu0 0.0
    %1779 = vmatpush1.msra.mxu0 0.0
    %1780 = vmatprep.subr.mxu0 0.0
    %1781 = vmatpush1.msra.mxu0 0.0
    %1782 = vmatprep.subr.mxu0 0.0
    %1783 = vmatpush1.msra.mxu0 0.0
    %1784 = vmatprep.subr.mxu0 0.0
    %1785 = vmatpush1.msra.mxu0 0.0
    %1786 = vmatprep.subr.mxu0 0.0
    %1787 = vmatpush1.msra.mxu0 0.0
    %1788 = vmatprep.subr.mxu0 0.0
    %1789 = vmatpush1.msra.mxu0 0.0
    %1790 = vmatprep.subr.mxu0 0.0
    %1791 = vmatpush1.msra.mxu0 0.0
    %1792 = vmatprep.subr.mxu0 0.0
    %1793 = vmatpush1.msra.mxu0 0.0
    %1794 = vmatprep.subr.mxu0 0.0
    %1795 = vmatpush1.msra.mxu0 0.0
    %1796 = vmatprep.mubr.f32.mxu0 0.0
    %1797 = vmatmul.mubr.f32.gmra.mrb[0].mxu0 %v1727
    %v1798 = vpop.f32.mrb[0].mxu0
    %v1799 = vadd.f32 0.0, %v1798
    %v1800 = vpop.f32.mrb[0].mxu0
    %1801 = vmatprep.mubr.f32.mxu0 0.0
    %1802 = vmatmul.mubr.f32.gmra.mrb[0].mxu0 %v1730
    %v1803 = vpop.f32.mrb[0].mxu0
    %v1804 = vadd.f32 0.0, %v1803
    %v1805 = vpop.f32.mrb[0].mxu0
    %1806 = vdwg.mxu0
    %v1807 = vadd.f32 %v1394, %v1799
    %v1808 = vadd.f32 %v1395, %v1804
    %v1809 = vadd.f32 %v30, %v1807
    %v1810 = vadd.f32 %v31, %v1808
    %v1811 = vlaneseq
    %v1812 = vshrl.u32 %v1811, 7
    %v1813 = vsub.s32 2, %v1812
    %v1814 = vrot.slane %v32, %v1813
    %v1815 = vadd.f32 %v1809, %v1814
    %v1816 = vadd.f32 %v1810, %v1814
    %v1817 = vsel %vm41, %v1815, 0.0
    %1818 = vadd.xlane.f32.xlu0 %v1817
    %v1819 = vpop.xlane.xlu0 %1818
    %v1820 = vsel %vm41, %v1816, 0.0
    %1821 = vadd.xlane.f32.xlu0 %v1820
    %v1822 = vpop.xlane.xlu0 %1821
    %v1823 = vmul.f32 %v1819, %v48
    %v1824 = vmul.f32 %v1822, %v48
    %v1825 = vsub.f32 %v1815, %v1823
    %v1826 = vsub.f32 %v1816, %v1824
    %v1827 = vmul.f32 %v1825, %v1825
    %v1828 = vmul.f32 %v1826, %v1826
    %v1829 = vsel %vm41, %v1827, 0.0
    %1830 = vadd.xlane.f32.xlu0 %v1829
    %v1831 = vpop.xlane.xlu0 %1830
    %v1832 = vsel %vm41, %v1828, 0.0
    %1833 = vadd.xlane.f32.xlu0 %v1832
    %v1834 = vpop.xlane.xlu0 %1833
    %v1835 = vmul.f32 %v1831, %v48
    %v1836 = vmul.f32 %v1834, %v48
    %v1837 = vadd.f32 %v1835, 1e-05
    %v1838 = vadd.f32 %v1836, 1e-05
    %v1839 = vrsqrt.pop %v1837
    %v1840 = vrsqrt.pop %v1838
    %v1841 = vmul.f32 %v1825, %v1839
    %v1842 = vmul.f32 %v1826, %v1840
    %v1843 = vlaneseq
    %v1844 = vshrl.u32 %v1843, 7
    %v1845 = vsub.s32 3, %v1844
    %v1846 = vrot.slane %v32, %v1845
    %v1847 = vmul.f32 %v1841, %v1846
    %v1848 = vmul.f32 %v1842, %v1846
    %v1849 = vlaneseq
    %v1850 = vshrl.u32 %v1849, 7
    %v1851 = vsub.s32 4, %v1850
    %v1852 = vrot.slane %v32, %v1851
    %v1853 = vadd.f32 %v1847, %v1852
    %v1854 = vadd.f32 %v1848, %v1852
    %v1855 = vld [vmem:[%s4] sm:$0xff]
    %v1856 = vld [vmem:[%s4 + $0x8] sm:$0xff]
    %v1857 = vld [vmem:[%s4 + $0x10] sm:$0xff]
    %v1858 = vld [vmem:[%s4 + $0x18] sm:$0xff]
    %v1859 = vld [vmem:[%s5] sm:$0x1]
    %v1861 = vlaneseq
    %v1862 = vshrl.u32 %v1861, 7
    %v1863 = vsub.s32 0, %v1862
    %v1864 = vrot.slane %v1859, %v1863
    %v1867 = vsel %vm41, %v1853, 0
    %v1870 = vsel %vm41, %v1854, 0
    %1872 = vmatprep.subr.mxu0 0.0
    %1873 = vmatpush1.msra.mxu0 %v1855
    %1874 = vmatprep.subr.mxu0 0.0
    %1875 = vmatpush1.msra.mxu0 %v1856
    %1876 = vmatprep.subr.mxu0 0.0
    %1877 = vmatpush1.msra.mxu0 %v1857
    %1878 = vmatprep.subr.mxu0 0.0
    %1879 = vmatpush1.msra.mxu0 %v1858
    %1880 = vmatprep.subr.mxu0 0.0
    %1881 = vmatpush1.msra.mxu0 0.0
    %1882 = vmatprep.subr.mxu0 0.0
    %1883 = vmatpush1.msra.mxu0 0.0
    %1884 = vmatprep.subr.mxu0 0.0
    %1885 = vmatpush1.msra.mxu0 0.0
    %1886 = vmatprep.subr.mxu0 0.0
    %1887 = vmatpush1.msra.mxu0 0.0
    %1888 = vmatprep.subr.mxu0 0.0
    %1889 = vmatpush1.msra.mxu0 0.0
    %1890 = vmatprep.subr.mxu0 0.0
    %1891 = vmatpush1.msra.mxu0 0.0
    %1892 = vmatprep.subr.mxu0 0.0
    %1893 = vmatpush1.msra.mxu0 0.0
    %1894 = vmatprep.subr.mxu0 0.0
    %1895 = vmatpush1.msra.mxu0 0.0
    %1896 = vmatprep.subr.mxu0 0.0
    %1897 = vmatpush1.msra.mxu0 0.0
    %1898 = vmatprep.subr.mxu0 0.0
    %1899 = vmatpush1.msra.mxu0 0.0
    %1900 = vmatprep.subr.mxu0 0.0
    %1901 = vmatpush1.msra.mxu0 0.0
    %1902 = vmatprep.subr.mxu0 0.0
    %1903 = vmatpush1.msra.mxu0 0.0
    %1904 = vmatprep.subr.mxu0 0.0
    %1905 = vmatpush1.msra.mxu0 0.0
    %1906 = vmatprep.subr.mxu0 0.0
    %1907 = vmatpush1.msra.mxu0 0.0
    %1908 = vmatprep.subr.mxu0 0.0
    %1909 = vmatpush1.msra.mxu0 0.0
    %1910 = vmatprep.subr.mxu0 0.0
    %1911 = vmatpush1.msra.mxu0 0.0
    %1912 = vmatprep.subr.mxu0 0.0
    %1913 = vmatpush1.msra.mxu0 0.0
    %1914 = vmatprep.subr.mxu0 0.0
    %1915 = vmatpush1.msra.mxu0 0.0
    %1916 = vmatprep.subr.mxu0 0.0
    %1917 = vmatpush1.msra.mxu0 0.0
    %1918 = vmatprep.subr.mxu0 0.0
    %1919 = vmatpush1.msra.mxu0 0.0
    %1920 = vmatprep.subr.mxu0 0.0
    %1921 = vmatpush1.msra.mxu0 0.0
    %1922 = vmatprep.subr.mxu0 0.0
    %1923 = vmatpush1.msra.mxu0 0.0
    %1924 = vmatprep.subr.mxu0 0.0
    %1925 = vmatpush1.msra.mxu0 0.0
    %1926 = vmatprep.subr.mxu0 0.0
    %1927 = vmatpush1.msra.mxu0 0.0
    %1928 = vmatprep.subr.mxu0 0.0
    %1929 = vmatpush1.msra.mxu0 0.0
    %1930 = vmatprep.subr.mxu0 0.0
    %1931 = vmatpush1.msra.mxu0 0.0
    %1932 = vmatprep.subr.mxu0 0.0
    %1933 = vmatpush1.msra.mxu0 0.0
    %1934 = vmatprep.subr.mxu0 0.0
    %1935 = vmatpush1.msra.mxu0 0.0
    %1936 = vmatprep.mubr.f32.mxu0 0.0
    %1937 = vmatmul.mubr.f32.gmra.mrb[0].mxu0 %v1867
    %v1938 = vpop.f32.mrb[0].mxu0
    %v1939 = vadd.f32 %v1864, %v1938
    %v1940 = vpop.f32.mrb[0].mxu0
    %1941 = vmatprep.mubr.f32.mxu0 0.0
    %1942 = vmatmul.mubr.f32.gmra.mrb[0].mxu0 %v1870
    %v1943 = vpop.f32.mrb[0].mxu0
    %v1944 = vadd.f32 %v1864, %v1943
    %v1945 = vpop.f32.mrb[0].mxu0
    %1946 = vdwg.mxu0
    %v1947 = vmul.f32 %v1939, 0.5
    %v1948 = vmul.f32 %v1944, 0.5
    %v1949 = vmul.f32 %v1939, 0.70710677
    %v1950 = vmul.f32 %v1944, 0.70710677
    %v1951 = verf.f32.pop %v1949
    %v1952 = verf.f32.pop %v1950
    %v1953 = vadd.f32 %v1951, 1.0
    %v1954 = vadd.f32 %v1952, 1.0
    %v1955 = vmul.f32 %v1947, %v1953
    %v1956 = vmul.f32 %v1948, %v1954
    %v1957 = vld [vmem:[%s6] sm:$0xff]
    %v1958 = vld [vmem:[%s6 + $0x8] sm:$0xff]
    %v1959 = vld [vmem:[%s6 + $0x10] sm:$0xff]
    %v1960 = vld [vmem:[%s6 + $0x18] sm:$0xff]
    %v1961 = vld [vmem:[%s6 + $0x20] sm:$0xff]
    %v1962 = vld [vmem:[%s6 + $0x28] sm:$0xff]
    %v1963 = vld [vmem:[%s6 + $0x30] sm:$0xff]
    %v1964 = vld [vmem:[%s6 + $0x38] sm:$0xff]
    %vm1965 = vcmask 523264
    %v1967 = vsel %vm1965, %v1955, 0
    %v1970 = vsel %vm1965, %v1956, 0
    %1972 = vmatprep.subr.mxu0 0.0
    %1973 = vmatpush1.msra.mxu0 %v1957
    %1974 = vmatprep.subr.mxu0 0.0
    %1975 = vmatpush1.msra.mxu0 %v1958
    %1976 = vmatprep.subr.mxu0 0.0
    %1977 = vmatpush1.msra.mxu0 %v1959
    %1978 = vmatprep.subr.mxu0 0.0
    %1979 = vmatpush1.msra.mxu0 %v1960
    %1980 = vmatprep.subr.mxu0 0.0
    %1981 = vmatpush1.msra.mxu0 %v1961
    %1982 = vmatprep.subr.mxu0 0.0
    %1983 = vmatpush1.msra.mxu0 %v1962
    %1984 = vmatprep.subr.mxu0 0.0
    %1985 = vmatpush1.msra.mxu0 %v1963
    %1986 = vmatprep.subr.mxu0 0.0
    %1987 = vmatpush1.msra.mxu0 %v1964
    %1988 = vmatprep.subr.mxu0 0.0
    %1989 = vmatpush1.msra.mxu0 0.0
    %1990 = vmatprep.subr.mxu0 0.0
    %1991 = vmatpush1.msra.mxu0 0.0
    %1992 = vmatprep.subr.mxu0 0.0
    %1993 = vmatpush1.msra.mxu0 0.0
    %1994 = vmatprep.subr.mxu0 0.0
    %1995 = vmatpush1.msra.mxu0 0.0
    %1996 = vmatprep.subr.mxu0 0.0
    %1997 = vmatpush1.msra.mxu0 0.0
    %1998 = vmatprep.subr.mxu0 0.0
    %1999 = vmatpush1.msra.mxu0 0.0
    %2000 = vmatprep.subr.mxu0 0.0
    %2001 = vmatpush1.msra.mxu0 0.0
    %2002 = vmatprep.subr.mxu0 0.0
    %2003 = vmatpush1.msra.mxu0 0.0
    %2004 = vmatprep.subr.mxu0 0.0
    %2005 = vmatpush1.msra.mxu0 0.0
    %2006 = vmatprep.subr.mxu0 0.0
    %2007 = vmatpush1.msra.mxu0 0.0
    %2008 = vmatprep.subr.mxu0 0.0
    %2009 = vmatpush1.msra.mxu0 0.0
    %2010 = vmatprep.subr.mxu0 0.0
    %2011 = vmatpush1.msra.mxu0 0.0
    %2012 = vmatprep.subr.mxu0 0.0
    %2013 = vmatpush1.msra.mxu0 0.0
    %2014 = vmatprep.subr.mxu0 0.0
    %2015 = vmatpush1.msra.mxu0 0.0
    %2016 = vmatprep.subr.mxu0 0.0
    %2017 = vmatpush1.msra.mxu0 0.0
    %2018 = vmatprep.subr.mxu0 0.0
    %2019 = vmatpush1.msra.mxu0 0.0
    %2020 = vmatprep.subr.mxu0 0.0
    %2021 = vmatpush1.msra.mxu0 0.0
    %2022 = vmatprep.subr.mxu0 0.0
    %2023 = vmatpush1.msra.mxu0 0.0
    %2024 = vmatprep.subr.mxu0 0.0
    %2025 = vmatpush1.msra.mxu0 0.0
    %2026 = vmatprep.subr.mxu0 0.0
    %2027 = vmatpush1.msra.mxu0 0.0
    %2028 = vmatprep.subr.mxu0 0.0
    %2029 = vmatpush1.msra.mxu0 0.0
    %2030 = vmatprep.subr.mxu0 0.0
    %2031 = vmatpush1.msra.mxu0 0.0
    %2032 = vmatprep.subr.mxu0 0.0
    %2033 = vmatpush1.msra.mxu0 0.0
    %2034 = vmatprep.subr.mxu0 0.0
    %2035 = vmatpush1.msra.mxu0 0.0
    %2036 = vmatprep.mubr.f32.mxu0 0.0
    %2037 = vmatmul.mubr.f32.gmra.mrb[0].mxu0 %v1967
    %v2038 = vpop.f32.mrb[0].mxu0
    %v2039 = vadd.f32 0.0, %v2038
    %v2040 = vpop.f32.mrb[0].mxu0
    %2041 = vmatprep.mubr.f32.mxu0 0.0
    %2042 = vmatmul.mubr.f32.gmra.mrb[0].mxu0 %v1970
    %v2043 = vpop.f32.mrb[0].mxu0
    %v2044 = vadd.f32 0.0, %v2043
    %v2045 = vpop.f32.mrb[0].mxu0
    %2046 = vdwg.mxu0
    %v2047 = vadd.f32 %v1815, %v2039
    %v2048 = vadd.f32 %v1816, %v2044
    %v2049 = vlaneseq
    %v2050 = vshrl.u32 %v2049, 7
    %v2051 = vsub.s32 5, %v2050
    %v2052 = vrot.slane %v32, %v2051
    %v2053 = vadd.f32 %v2047, %v2052
    %v2054 = vadd.f32 %v2048, %v2052
    %s2055 = scalar_lea.vmem %s1, 8
    %v2056 = vld [vmem:[%s2055] sm:$0x3f]
    %s2057 = scalar_lea.vmem %s2, 32
    %v2058 = vld [vmem:[%s2057] sm:$0xff]
    %v2059 = vld [vmem:[%s2057 + $0x8] sm:$0xff]
    %v2060 = vld [vmem:[%s2057 + $0x10] sm:$0xff]
    %v2061 = vld [vmem:[%s2057 + $0x18] sm:$0xff]
    %s2062 = scalar_lea.vmem %s3, 32
    %v2063 = vld [vmem:[%s2062] sm:$0xff]
    %v2064 = vld [vmem:[%s2062 + $0x8] sm:$0xff]
    %v2065 = vld [vmem:[%s2062 + $0x10] sm:$0xff]
    %v2066 = vld [vmem:[%s2062 + $0x18] sm:$0xff]
    %v2067 = vsel %vm41, %v2053, 0.0
    %2068 = vadd.xlane.f32.xlu0 %v2067
    %v2069 = vpop.xlane.xlu0 %2068
    %v2070 = vsel %vm41, %v2054, 0.0
    %2071 = vadd.xlane.f32.xlu0 %v2070
    %v2072 = vpop.xlane.xlu0 %2071
    %v2073 = vmul.f32 %v2069, %v48
    %v2074 = vmul.f32 %v2072, %v48
    %v2075 = vsub.f32 %v2053, %v2073
    %v2076 = vsub.f32 %v2054, %v2074
    %v2077 = vmul.f32 %v2075, %v2075
    %v2078 = vmul.f32 %v2076, %v2076
    %v2079 = vsel %vm41, %v2077, 0.0
    %2080 = vadd.xlane.f32.xlu0 %v2079
    %v2081 = vpop.xlane.xlu0 %2080
    %v2082 = vsel %vm41, %v2078, 0.0
    %2083 = vadd.xlane.f32.xlu0 %v2082
    %v2084 = vpop.xlane.xlu0 %2083
    %v2085 = vmul.f32 %v2081, %v48
    %v2086 = vmul.f32 %v2084, %v48
    %v2087 = vadd.f32 %v2085, 1e-05
    %v2088 = vadd.f32 %v2086, 1e-05
    %v2089 = vrsqrt.pop %v2087
    %v2090 = vrsqrt.pop %v2088
    %v2091 = vmul.f32 %v2075, %v2089
    %v2092 = vmul.f32 %v2076, %v2090
    %v2093 = vlaneseq
    %v2094 = vshrl.u32 %v2093, 7
    %v2095 = vsub.s32 0, %v2094
    %v2096 = vrot.slane %v2056, %v2095
    %v2097 = vmul.f32 %v2091, %v2096
    %v2098 = vmul.f32 %v2092, %v2096
    %v2099 = vlaneseq
    %v2100 = vshrl.u32 %v2099, 7
    %v2101 = vsub.s32 1, %v2100
    %v2102 = vrot.slane %v2056, %v2101
    %v2103 = vadd.f32 %v2097, %v2102
    %v2104 = vadd.f32 %v2098, %v2102
    %v2106 = vsel %vm41, %v2103, 0
    %v2109 = vsel %vm41, %v2104, 0
    %2111 = vmatprep.subr.mxu0 0.0
    %2112 = vmatpush1.msra.mxu0 %v2058
    %2113 = vmatprep.subr.mxu0 0.0
    %2114 = vmatpush1.msra.mxu0 %v2059
    %2115 = vmatprep.subr.mxu0 0.0
    %2116 = vmatpush1.msra.mxu0 %v2060
    %2117 = vmatprep.subr.mxu0 0.0
    %2118 = vmatpush1.msra.mxu0 %v2061
    %2119 = vmatprep.subr.mxu0 0.0
    %2120 = vmatpush1.msra.mxu0 0.0
    %2121 = vmatprep.subr.mxu0 0.0
    %2122 = vmatpush1.msra.mxu0 0.0
    %2123 = vmatprep.subr.mxu0 0.0
    %2124 = vmatpush1.msra.mxu0 0.0
    %2125 = vmatprep.subr.mxu0 0.0
    %2126 = vmatpush1.msra.mxu0 0.0
    %2127 = vmatprep.subr.mxu0 0.0
    %2128 = vmatpush1.msra.mxu0 0.0
    %2129 = vmatprep.subr.mxu0 0.0
    %2130 = vmatpush1.msra.mxu0 0.0
    %2131 = vmatprep.subr.mxu0 0.0
    %2132 = vmatpush1.msra.mxu0 0.0
    %2133 = vmatprep.subr.mxu0 0.0
    %2134 = vmatpush1.msra.mxu0 0.0
    %2135 = vmatprep.subr.mxu0 0.0
    %2136 = vmatpush1.msra.mxu0 0.0
    %2137 = vmatprep.subr.mxu0 0.0
    %2138 = vmatpush1.msra.mxu0 0.0
    %2139 = vmatprep.subr.mxu0 0.0
    %2140 = vmatpush1.msra.mxu0 0.0
    %2141 = vmatprep.subr.mxu0 0.0
    %2142 = vmatpush1.msra.mxu0 0.0
    %2143 = vmatprep.subr.mxu0 0.0
    %2144 = vmatpush1.msra.mxu0 0.0
    %2145 = vmatprep.subr.mxu0 0.0
    %2146 = vmatpush1.msra.mxu0 0.0
    %2147 = vmatprep.subr.mxu0 0.0
    %2148 = vmatpush1.msra.mxu0 0.0
    %2149 = vmatprep.subr.mxu0 0.0
    %2150 = vmatpush1.msra.mxu0 0.0
    %2151 = vmatprep.subr.mxu0 0.0
    %2152 = vmatpush1.msra.mxu0 0.0
    %2153 = vmatprep.subr.mxu0 0.0
    %2154 = vmatpush1.msra.mxu0 0.0
    %2155 = vmatprep.subr.mxu0 0.0
    %2156 = vmatpush1.msra.mxu0 0.0
    %2157 = vmatprep.subr.mxu0 0.0
    %2158 = vmatpush1.msra.mxu0 0.0
    %2159 = vmatprep.subr.mxu0 0.0
    %2160 = vmatpush1.msra.mxu0 0.0
    %2161 = vmatprep.subr.mxu0 0.0
    %2162 = vmatpush1.msra.mxu0 0.0
    %2163 = vmatprep.subr.mxu0 0.0
    %2164 = vmatpush1.msra.mxu0 0.0
    %2165 = vmatprep.subr.mxu0 0.0
    %2166 = vmatpush1.msra.mxu0 0.0
    %2167 = vmatprep.subr.mxu0 0.0
    %2168 = vmatpush1.msra.mxu0 0.0
    %2169 = vmatprep.subr.mxu0 0.0
    %2170 = vmatpush1.msra.mxu0 0.0
    %2171 = vmatprep.subr.mxu0 0.0
    %2172 = vmatpush1.msra.mxu0 0.0
    %2173 = vmatprep.subr.mxu0 0.0
    %2174 = vmatpush1.msra.mxu0 0.0
    %2175 = vmatprep.mubr.f32.mxu0 0.0
    %2176 = vmatmul.mubr.f32.gmra.mrb[0].mxu0 %v2106
    %v2177 = vpop.f32.mrb[0].mxu0
    %v2178 = vadd.f32 0.0, %v2177
    %v2179 = vpop.f32.mrb[0].mxu0
    %2180 = vmatprep.mubr.f32.mxu0 0.0
    %2181 = vmatmul.mubr.f32.gmra.mrb[0].mxu0 %v2109
    %v2182 = vpop.f32.mrb[0].mxu0
    %v2183 = vadd.f32 0.0, %v2182
    %v2184 = vpop.f32.mrb[0].mxu0
    %2185 = vdwg.mxu0
    %2187 = vrot.lane.b32.xlu0 %v2178, 96
    %v2188 = vpop.permute.xlu0 %2187
    %v2189 = vsel %vm165, %v2178, 0
    %v2191 = vsel %vm165, %v2188, 0
    %2193 = vmatprep.subr.mxu0 0.0
    %2194 = vmatpush1.xpose.msra.mxu0 %v2191
    %2195 = vmatprep.subr.mxu0 0.0
    %2196 = vmatpush1.xpose.msra.mxu0 0.0
    %2197 = vmatprep.subr.mxu0 0.0
    %2198 = vmatpush1.xpose.msra.mxu0 0.0
    %2199 = vmatprep.subr.mxu0 0.0
    %2200 = vmatpush1.xpose.msra.mxu0 0.0
    %2201 = vmatprep.subr.mxu0 0.0
    %2202 = vmatpush1.xpose.msra.mxu0 0.0
    %2203 = vmatprep.subr.mxu0 0.0
    %2204 = vmatpush1.xpose.msra.mxu0 0.0
    %2205 = vmatprep.subr.mxu0 0.0
    %2206 = vmatpush1.xpose.msra.mxu0 0.0
    %2207 = vmatprep.subr.mxu0 0.0
    %2208 = vmatpush1.xpose.msra.mxu0 0.0
    %2209 = vmatprep.subr.mxu0 0.0
    %2210 = vmatpush1.xpose.msra.mxu0 0.0
    %2211 = vmatprep.subr.mxu0 0.0
    %2212 = vmatpush1.xpose.msra.mxu0 0.0
    %2213 = vmatprep.subr.mxu0 0.0
    %2214 = vmatpush1.xpose.msra.mxu0 0.0
    %2215 = vmatprep.subr.mxu0 0.0
    %2216 = vmatpush1.xpose.msra.mxu0 0.0
    %2217 = vmatprep.subr.mxu0 0.0
    %2218 = vmatpush1.xpose.msra.mxu0 0.0
    %2219 = vmatprep.subr.mxu0 0.0
    %2220 = vmatpush1.xpose.msra.mxu0 0.0
    %2221 = vmatprep.subr.mxu0 0.0
    %2222 = vmatpush1.xpose.msra.mxu0 0.0
    %2223 = vmatprep.subr.mxu0 0.0
    %2224 = vmatpush1.xpose.msra.mxu0 0.0
    %2225 = vmatprep.subr.mxu0 0.0
    %2226 = vmatpush1.xpose.msra.mxu0 0.0
    %2227 = vmatprep.subr.mxu0 0.0
    %2228 = vmatpush1.xpose.msra.mxu0 0.0
    %2229 = vmatprep.subr.mxu0 0.0
    %2230 = vmatpush1.xpose.msra.mxu0 0.0
    %2231 = vmatprep.subr.mxu0 0.0
    %2232 = vmatpush1.xpose.msra.mxu0 0.0
    %2233 = vmatprep.subr.mxu0 0.0
    %2234 = vmatpush1.xpose.msra.mxu0 0.0
    %2235 = vmatprep.subr.mxu0 0.0
    %2236 = vmatpush1.xpose.msra.mxu0 0.0
    %2237 = vmatprep.subr.mxu0 0.0
    %2238 = vmatpush1.xpose.msra.mxu0 0.0
    %2239 = vmatprep.subr.mxu0 0.0
    %2240 = vmatpush1.xpose.msra.mxu0 0.0
    %2241 = vmatprep.subr.mxu0 0.0
    %2242 = vmatpush1.xpose.msra.mxu0 0.0
    %2243 = vmatprep.subr.mxu0 0.0
    %2244 = vmatpush1.xpose.msra.mxu0 0.0
    %2245 = vmatprep.subr.mxu0 0.0
    %2246 = vmatpush1.xpose.msra.mxu0 0.0
    %2247 = vmatprep.subr.mxu0 0.0
    %2248 = vmatpush1.xpose.msra.mxu0 0.0
    %2249 = vmatprep.subr.mxu0 0.0
    %2250 = vmatpush1.xpose.msra.mxu0 0.0
    %2251 = vmatprep.subr.mxu0 0.0
    %2252 = vmatpush1.xpose.msra.mxu0 0.0
    %2253 = vmatprep.subr.mxu0 0.0
    %2254 = vmatpush1.xpose.msra.mxu0 0.0
    %2255 = vmatprep.subr.mxu0 0.0
    %2256 = vmatpush1.xpose.msra.mxu0 0.0
    %2257 = vmatprep.mubr.f32.mxu0 0.0
    %2258 = vmatmul.mubr.f32.gmra.mrb[0].mxu0 %v2189
    %v2259 = vpop.f32.mrb[0].mxu0
    %v2260 = vadd.f32 0.0, %v2259
    %v2261 = vpop.f32.mrb[0].mxu0
    %2262 = vdwg.mxu0
    %2264 = vrot.lane.b32.xlu0 %v2183, 96
    %v2265 = vpop.permute.xlu0 %2264
    %v2266 = vsel %vm165, %v2183, 0
    %v2268 = vsel %vm165, %v2265, 0
    %2270 = vmatprep.subr.mxu0 0.0
    %2271 = vmatpush1.xpose.msra.mxu0 %v2268
    %2272 = vmatprep.subr.mxu0 0.0
    %2273 = vmatpush1.xpose.msra.mxu0 0.0
    %2274 = vmatprep.subr.mxu0 0.0
    %2275 = vmatpush1.xpose.msra.mxu0 0.0
    %2276 = vmatprep.subr.mxu0 0.0
    %2277 = vmatpush1.xpose.msra.mxu0 0.0
    %2278 = vmatprep.subr.mxu0 0.0
    %2279 = vmatpush1.xpose.msra.mxu0 0.0
    %2280 = vmatprep.subr.mxu0 0.0
    %2281 = vmatpush1.xpose.msra.mxu0 0.0
    %2282 = vmatprep.subr.mxu0 0.0
    %2283 = vmatpush1.xpose.msra.mxu0 0.0
    %2284 = vmatprep.subr.mxu0 0.0
    %2285 = vmatpush1.xpose.msra.mxu0 0.0
    %2286 = vmatprep.subr.mxu0 0.0
    %2287 = vmatpush1.xpose.msra.mxu0 0.0
    %2288 = vmatprep.subr.mxu0 0.0
    %2289 = vmatpush1.xpose.msra.mxu0 0.0
    %2290 = vmatprep.subr.mxu0 0.0
    %2291 = vmatpush1.xpose.msra.mxu0 0.0
    %2292 = vmatprep.subr.mxu0 0.0
    %2293 = vmatpush1.xpose.msra.mxu0 0.0
    %2294 = vmatprep.subr.mxu0 0.0
    %2295 = vmatpush1.xpose.msra.mxu0 0.0
    %2296 = vmatprep.subr.mxu0 0.0
    %2297 = vmatpush1.xpose.msra.mxu0 0.0
    %2298 = vmatprep.subr.mxu0 0.0
    %2299 = vmatpush1.xpose.msra.mxu0 0.0
    %2300 = vmatprep.subr.mxu0 0.0
    %2301 = vmatpush1.xpose.msra.mxu0 0.0
    %2302 = vmatprep.subr.mxu0 0.0
    %2303 = vmatpush1.xpose.msra.mxu0 0.0
    %2304 = vmatprep.subr.mxu0 0.0
    %2305 = vmatpush1.xpose.msra.mxu0 0.0
    %2306 = vmatprep.subr.mxu0 0.0
    %2307 = vmatpush1.xpose.msra.mxu0 0.0
    %2308 = vmatprep.subr.mxu0 0.0
    %2309 = vmatpush1.xpose.msra.mxu0 0.0
    %2310 = vmatprep.subr.mxu0 0.0
    %2311 = vmatpush1.xpose.msra.mxu0 0.0
    %2312 = vmatprep.subr.mxu0 0.0
    %2313 = vmatpush1.xpose.msra.mxu0 0.0
    %2314 = vmatprep.subr.mxu0 0.0
    %2315 = vmatpush1.xpose.msra.mxu0 0.0
    %2316 = vmatprep.subr.mxu0 0.0
    %2317 = vmatpush1.xpose.msra.mxu0 0.0
    %2318 = vmatprep.subr.mxu0 0.0
    %2319 = vmatpush1.xpose.msra.mxu0 0.0
    %2320 = vmatprep.subr.mxu0 0.0
    %2321 = vmatpush1.xpose.msra.mxu0 0.0
    %2322 = vmatprep.subr.mxu0 0.0
    %2323 = vmatpush1.xpose.msra.mxu0 0.0
    %2324 = vmatprep.subr.mxu0 0.0
    %2325 = vmatpush1.xpose.msra.mxu0 0.0
    %2326 = vmatprep.subr.mxu0 0.0
    %2327 = vmatpush1.xpose.msra.mxu0 0.0
    %2328 = vmatprep.subr.mxu0 0.0
    %2329 = vmatpush1.xpose.msra.mxu0 0.0
    %2330 = vmatprep.subr.mxu0 0.0
    %2331 = vmatpush1.xpose.msra.mxu0 0.0
    %2332 = vmatprep.subr.mxu0 0.0
    %2333 = vmatpush1.xpose.msra.mxu0 0.0
    %2334 = vmatprep.mubr.f32.mxu0 0.0
    %2335 = vmatmul.mubr.f32.gmra.mrb[0].mxu0 %v2266
    %v2336 = vpop.f32.mrb[0].mxu0
    %v2337 = vadd.f32 0.0, %v2336
    %v2338 = vpop.f32.mrb[0].mxu0
    %2339 = vdwg.mxu0
    %v2340 = vsel %vm165, %v2260, -inf
    %2341 = vmax.xlane.f32.xlu0 %v2340
    %v2342 = vpop.xlane.xlu0 %2341
    %v2343 = vsel %vm165, %v2337, -inf
    %2344 = vmax.xlane.f32.xlu0 %v2343
    %v2345 = vpop.xlane.xlu0 %2344
    %v2346 = vsub.f32 %v2260, %v2342
    %v2347 = vsub.f32 %v2337, %v2345
    %v2348 = vmul.f32 %v2346, 1.442695
    %v2349 = vpow.pop %v2348
    %v2350 = vmul.f32 %v2347, 1.442695
    %v2351 = vpow.pop %v2350
    %v2352 = vsel %vm165, %v2349, 0.0
    %2353 = vadd.xlane.f32.xlu0 %v2352
    %v2354 = vpop.xlane.xlu0 %2353
    %v2355 = vsel %vm165, %v2351, 0.0
    %2356 = vadd.xlane.f32.xlu0 %v2355
    %v2357 = vpop.xlane.xlu0 %2356
    %v2358 = vrcp.pop %v2354
    %v2359 = vmul.f32 %v2349, %v2358
    %v2360 = vrcp.pop %v2357
    %v2361 = vmul.f32 %v2351, %v2360
    %2362 = vrot.lane.b32.xlu0 %v2178, 64
    %v2363 = vpop.permute.xlu0 %2362
    %v2366 = vsel %vm165, %v2359, 0
    %2368 = vmatprep.subr.mxu0 0.0
    %2369 = vmatpush1.msra.mxu0 %v2363
    %2370 = vmatprep.subr.mxu0 0.0
    %2371 = vmatpush1.msra.mxu0 0.0
    %2372 = vmatprep.subr.mxu0 0.0
    %2373 = vmatpush1.msra.mxu0 0.0
    %2374 = vmatprep.subr.mxu0 0.0
    %2375 = vmatpush1.msra.mxu0 0.0
    %2376 = vmatprep.subr.mxu0 0.0
    %2377 = vmatpush1.msra.mxu0 0.0
    %2378 = vmatprep.subr.mxu0 0.0
    %2379 = vmatpush1.msra.mxu0 0.0
    %2380 = vmatprep.subr.mxu0 0.0
    %2381 = vmatpush1.msra.mxu0 0.0
    %2382 = vmatprep.subr.mxu0 0.0
    %2383 = vmatpush1.msra.mxu0 0.0
    %2384 = vmatprep.subr.mxu0 0.0
    %2385 = vmatpush1.msra.mxu0 0.0
    %2386 = vmatprep.subr.mxu0 0.0
    %2387 = vmatpush1.msra.mxu0 0.0
    %2388 = vmatprep.subr.mxu0 0.0
    %2389 = vmatpush1.msra.mxu0 0.0
    %2390 = vmatprep.subr.mxu0 0.0
    %2391 = vmatpush1.msra.mxu0 0.0
    %2392 = vmatprep.subr.mxu0 0.0
    %2393 = vmatpush1.msra.mxu0 0.0
    %2394 = vmatprep.subr.mxu0 0.0
    %2395 = vmatpush1.msra.mxu0 0.0
    %2396 = vmatprep.subr.mxu0 0.0
    %2397 = vmatpush1.msra.mxu0 0.0
    %2398 = vmatprep.subr.mxu0 0.0
    %2399 = vmatpush1.msra.mxu0 0.0
    %2400 = vmatprep.subr.mxu0 0.0
    %2401 = vmatpush1.msra.mxu0 0.0
    %2402 = vmatprep.subr.mxu0 0.0
    %2403 = vmatpush1.msra.mxu0 0.0
    %2404 = vmatprep.subr.mxu0 0.0
    %2405 = vmatpush1.msra.mxu0 0.0
    %2406 = vmatprep.subr.mxu0 0.0
    %2407 = vmatpush1.msra.mxu0 0.0
    %2408 = vmatprep.subr.mxu0 0.0
    %2409 = vmatpush1.msra.mxu0 0.0
    %2410 = vmatprep.subr.mxu0 0.0
    %2411 = vmatpush1.msra.mxu0 0.0
    %2412 = vmatprep.subr.mxu0 0.0
    %2413 = vmatpush1.msra.mxu0 0.0
    %2414 = vmatprep.subr.mxu0 0.0
    %2415 = vmatpush1.msra.mxu0 0.0
    %2416 = vmatprep.subr.mxu0 0.0
    %2417 = vmatpush1.msra.mxu0 0.0
    %2418 = vmatprep.subr.mxu0 0.0
    %2419 = vmatpush1.msra.mxu0 0.0
    %2420 = vmatprep.subr.mxu0 0.0
    %2421 = vmatpush1.msra.mxu0 0.0
    %2422 = vmatprep.subr.mxu0 0.0
    %2423 = vmatpush1.msra.mxu0 0.0
    %2424 = vmatprep.subr.mxu0 0.0
    %2425 = vmatpush1.msra.mxu0 0.0
    %2426 = vmatprep.subr.mxu0 0.0
    %2427 = vmatpush1.msra.mxu0 0.0
    %2428 = vmatprep.subr.mxu0 0.0
    %2429 = vmatpush1.msra.mxu0 0.0
    %2430 = vmatprep.subr.mxu0 0.0
    %2431 = vmatpush1.msra.mxu0 0.0
    %2432 = vmatprep.mubr.f32.mxu0 0.0
    %2433 = vmatmul.mubr.f32.gmra.mrb[0].mxu0 %v2366
    %v2434 = vpop.f32.mrb[0].mxu0
    %v2435 = vadd.f32 0.0, %v2434
    %v2436 = vpop.f32.mrb[0].mxu0
    %2437 = vdwg.mxu0
    %2438 = vrot.lane.b32.xlu0 %v2183, 64
    %v2439 = vpop.permute.xlu0 %2438
    %v2442 = vsel %vm165, %v2361, 0
    %2444 = vmatprep.subr.mxu0 0.0
    %2445 = vmatpush1.msra.mxu0 %v2439
    %2446 = vmatprep.subr.mxu0 0.0
    %2447 = vmatpush1.msra.mxu0 0.0
    %2448 = vmatprep.subr.mxu0 0.0
    %2449 = vmatpush1.msra.mxu0 0.0
    %2450 = vmatprep.subr.mxu0 0.0
    %2451 = vmatpush1.msra.mxu0 0.0
    %2452 = vmatprep.subr.mxu0 0.0
    %2453 = vmatpush1.msra.mxu0 0.0
    %2454 = vmatprep.subr.mxu0 0.0
    %2455 = vmatpush1.msra.mxu0 0.0
    %2456 = vmatprep.subr.mxu0 0.0
    %2457 = vmatpush1.msra.mxu0 0.0
    %2458 = vmatprep.subr.mxu0 0.0
    %2459 = vmatpush1.msra.mxu0 0.0
    %2460 = vmatprep.subr.mxu0 0.0
    %2461 = vmatpush1.msra.mxu0 0.0
    %2462 = vmatprep.subr.mxu0 0.0
    %2463 = vmatpush1.msra.mxu0 0.0
    %2464 = vmatprep.subr.mxu0 0.0
    %2465 = vmatpush1.msra.mxu0 0.0
    %2466 = vmatprep.subr.mxu0 0.0
    %2467 = vmatpush1.msra.mxu0 0.0
    %2468 = vmatprep.subr.mxu0 0.0
    %2469 = vmatpush1.msra.mxu0 0.0
    %2470 = vmatprep.subr.mxu0 0.0
    %2471 = vmatpush1.msra.mxu0 0.0
    %2472 = vmatprep.subr.mxu0 0.0
    %2473 = vmatpush1.msra.mxu0 0.0
    %2474 = vmatprep.subr.mxu0 0.0
    %2475 = vmatpush1.msra.mxu0 0.0
    %2476 = vmatprep.subr.mxu0 0.0
    %2477 = vmatpush1.msra.mxu0 0.0
    %2478 = vmatprep.subr.mxu0 0.0
    %2479 = vmatpush1.msra.mxu0 0.0
    %2480 = vmatprep.subr.mxu0 0.0
    %2481 = vmatpush1.msra.mxu0 0.0
    %2482 = vmatprep.subr.mxu0 0.0
    %2483 = vmatpush1.msra.mxu0 0.0
    %2484 = vmatprep.subr.mxu0 0.0
    %2485 = vmatpush1.msra.mxu0 0.0
    %2486 = vmatprep.subr.mxu0 0.0
    %2487 = vmatpush1.msra.mxu0 0.0
    %2488 = vmatprep.subr.mxu0 0.0
    %2489 = vmatpush1.msra.mxu0 0.0
    %2490 = vmatprep.subr.mxu0 0.0
    %2491 = vmatpush1.msra.mxu0 0.0
    %2492 = vmatprep.subr.mxu0 0.0
    %2493 = vmatpush1.msra.mxu0 0.0
    %2494 = vmatprep.subr.mxu0 0.0
    %2495 = vmatpush1.msra.mxu0 0.0
    %2496 = vmatprep.subr.mxu0 0.0
    %2497 = vmatpush1.msra.mxu0 0.0
    %2498 = vmatprep.subr.mxu0 0.0
    %2499 = vmatpush1.msra.mxu0 0.0
    %2500 = vmatprep.subr.mxu0 0.0
    %2501 = vmatpush1.msra.mxu0 0.0
    %2502 = vmatprep.subr.mxu0 0.0
    %2503 = vmatpush1.msra.mxu0 0.0
    %2504 = vmatprep.subr.mxu0 0.0
    %2505 = vmatpush1.msra.mxu0 0.0
    %2506 = vmatprep.subr.mxu0 0.0
    %2507 = vmatpush1.msra.mxu0 0.0
    %2508 = vmatprep.mubr.f32.mxu0 0.0
    %2509 = vmatmul.mubr.f32.gmra.mrb[0].mxu0 %v2442
    %v2510 = vpop.f32.mrb[0].mxu0
    %v2511 = vadd.f32 0.0, %v2510
    %v2512 = vpop.f32.mrb[0].mxu0
    %2513 = vdwg.mxu0
    %2514 = vrot.lane.b32.xlu0 %v2178, 120
    %v2515 = vpop.permute.xlu0 %2514
    %2516 = vrot.lane.b32.xlu0 %v2178, 88
    %v2517 = vpop.permute.xlu0 %2516
    %v2518 = vsel %vm165, %v2515, 0
    %v2520 = vsel %vm165, %v2517, 0
    %2522 = vmatprep.subr.mxu0 0.0
    %2523 = vmatpush1.xpose.msra.mxu0 %v2520
    %2524 = vmatprep.subr.mxu0 0.0
    %2525 = vmatpush1.xpose.msra.mxu0 0.0
    %2526 = vmatprep.subr.mxu0 0.0
    %2527 = vmatpush1.xpose.msra.mxu0 0.0
    %2528 = vmatprep.subr.mxu0 0.0
    %2529 = vmatpush1.xpose.msra.mxu0 0.0
    %2530 = vmatprep.subr.mxu0 0.0
    %2531 = vmatpush1.xpose.msra.mxu0 0.0
    %2532 = vmatprep.subr.mxu0 0.0
    %2533 = vmatpush1.xpose.msra.mxu0 0.0
    %2534 = vmatprep.subr.mxu0 0.0
    %2535 = vmatpush1.xpose.msra.mxu0 0.0
    %2536 = vmatprep.subr.mxu0 0.0
    %2537 = vmatpush1.xpose.msra.mxu0 0.0
    %2538 = vmatprep.subr.mxu0 0.0
    %2539 = vmatpush1.xpose.msra.mxu0 0.0
    %2540 = vmatprep.subr.mxu0 0.0
    %2541 = vmatpush1.xpose.msra.mxu0 0.0
    %2542 = vmatprep.subr.mxu0 0.0
    %2543 = vmatpush1.xpose.msra.mxu0 0.0
    %2544 = vmatprep.subr.mxu0 0.0
    %2545 = vmatpush1.xpose.msra.mxu0 0.0
    %2546 = vmatprep.subr.mxu0 0.0
    %2547 = vmatpush1.xpose.msra.mxu0 0.0
    %2548 = vmatprep.subr.mxu0 0.0
    %2549 = vmatpush1.xpose.msra.mxu0 0.0
    %2550 = vmatprep.subr.mxu0 0.0
    %2551 = vmatpush1.xpose.msra.mxu0 0.0
    %2552 = vmatprep.subr.mxu0 0.0
    %2553 = vmatpush1.xpose.msra.mxu0 0.0
    %2554 = vmatprep.subr.mxu0 0.0
    %2555 = vmatpush1.xpose.msra.mxu0 0.0
    %2556 = vmatprep.subr.mxu0 0.0
    %2557 = vmatpush1.xpose.msra.mxu0 0.0
    %2558 = vmatprep.subr.mxu0 0.0
    %2559 = vmatpush1.xpose.msra.mxu0 0.0
    %2560 = vmatprep.subr.mxu0 0.0
    %2561 = vmatpush1.xpose.msra.mxu0 0.0
    %2562 = vmatprep.subr.mxu0 0.0
    %2563 = vmatpush1.xpose.msra.mxu0 0.0
    %2564 = vmatprep.subr.mxu0 0.0
    %2565 = vmatpush1.xpose.msra.mxu0 0.0
    %2566 = vmatprep.subr.mxu0 0.0
    %2567 = vmatpush1.xpose.msra.mxu0 0.0
    %2568 = vmatprep.subr.mxu0 0.0
    %2569 = vmatpush1.xpose.msra.mxu0 0.0
    %2570 = vmatprep.subr.mxu0 0.0
    %2571 = vmatpush1.xpose.msra.mxu0 0.0
    %2572 = vmatprep.subr.mxu0 0.0
    %2573 = vmatpush1.xpose.msra.mxu0 0.0
    %2574 = vmatprep.subr.mxu0 0.0
    %2575 = vmatpush1.xpose.msra.mxu0 0.0
    %2576 = vmatprep.subr.mxu0 0.0
    %2577 = vmatpush1.xpose.msra.mxu0 0.0
    %2578 = vmatprep.subr.mxu0 0.0
    %2579 = vmatpush1.xpose.msra.mxu0 0.0
    %2580 = vmatprep.subr.mxu0 0.0
    %2581 = vmatpush1.xpose.msra.mxu0 0.0
    %2582 = vmatprep.subr.mxu0 0.0
    %2583 = vmatpush1.xpose.msra.mxu0 0.0
    %2584 = vmatprep.subr.mxu0 0.0
    %2585 = vmatpush1.xpose.msra.mxu0 0.0
    %2586 = vmatprep.mubr.f32.mxu0 0.0
    %2587 = vmatmul.mubr.f32.gmra.mrb[0].mxu0 %v2518
    %v2588 = vpop.f32.mrb[0].mxu0
    %v2589 = vadd.f32 0.0, %v2588
    %v2590 = vpop.f32.mrb[0].mxu0
    %2591 = vdwg.mxu0
    %2592 = vrot.lane.b32.xlu0 %v2183, 120
    %v2593 = vpop.permute.xlu0 %2592
    %2594 = vrot.lane.b32.xlu0 %v2183, 88
    %v2595 = vpop.permute.xlu0 %2594
    %v2596 = vsel %vm165, %v2593, 0
    %v2598 = vsel %vm165, %v2595, 0
    %2600 = vmatprep.subr.mxu0 0.0
    %2601 = vmatpush1.xpose.msra.mxu0 %v2598
    %2602 = vmatprep.subr.mxu0 0.0
    %2603 = vmatpush1.xpose.msra.mxu0 0.0
    %2604 = vmatprep.subr.mxu0 0.0
    %2605 = vmatpush1.xpose.msra.mxu0 0.0
    %2606 = vmatprep.subr.mxu0 0.0
    %2607 = vmatpush1.xpose.msra.mxu0 0.0
    %2608 = vmatprep.subr.mxu0 0.0
    %2609 = vmatpush1.xpose.msra.mxu0 0.0
    %2610 = vmatprep.subr.mxu0 0.0
    %2611 = vmatpush1.xpose.msra.mxu0 0.0
    %2612 = vmatprep.subr.mxu0 0.0
    %2613 = vmatpush1.xpose.msra.mxu0 0.0
    %2614 = vmatprep.subr.mxu0 0.0
    %2615 = vmatpush1.xpose.msra.mxu0 0.0
    %2616 = vmatprep.subr.mxu0 0.0
    %2617 = vmatpush1.xpose.msra.mxu0 0.0
    %2618 = vmatprep.subr.mxu0 0.0
    %2619 = vmatpush1.xpose.msra.mxu0 0.0
    %2620 = vmatprep.subr.mxu0 0.0
    %2621 = vmatpush1.xpose.msra.mxu0 0.0
    %2622 = vmatprep.subr.mxu0 0.0
    %2623 = vmatpush1.xpose.msra.mxu0 0.0
    %2624 = vmatprep.subr.mxu0 0.0
    %2625 = vmatpush1.xpose.msra.mxu0 0.0
    %2626 = vmatprep.subr.mxu0 0.0
    %2627 = vmatpush1.xpose.msra.mxu0 0.0
    %2628 = vmatprep.subr.mxu0 0.0
    %2629 = vmatpush1.xpose.msra.mxu0 0.0
    %2630 = vmatprep.subr.mxu0 0.0
    %2631 = vmatpush1.xpose.msra.mxu0 0.0
    %2632 = vmatprep.subr.mxu0 0.0
    %2633 = vmatpush1.xpose.msra.mxu0 0.0
    %2634 = vmatprep.subr.mxu0 0.0
    %2635 = vmatpush1.xpose.msra.mxu0 0.0
    %2636 = vmatprep.subr.mxu0 0.0
    %2637 = vmatpush1.xpose.msra.mxu0 0.0
    %2638 = vmatprep.subr.mxu0 0.0
    %2639 = vmatpush1.xpose.msra.mxu0 0.0
    %2640 = vmatprep.subr.mxu0 0.0
    %2641 = vmatpush1.xpose.msra.mxu0 0.0
    %2642 = vmatprep.subr.mxu0 0.0
    %2643 = vmatpush1.xpose.msra.mxu0 0.0
    %2644 = vmatprep.subr.mxu0 0.0
    %2645 = vmatpush1.xpose.msra.mxu0 0.0
    %2646 = vmatprep.subr.mxu0 0.0
    %2647 = vmatpush1.xpose.msra.mxu0 0.0
    %2648 = vmatprep.subr.mxu0 0.0
    %2649 = vmatpush1.xpose.msra.mxu0 0.0
    %2650 = vmatprep.subr.mxu0 0.0
    %2651 = vmatpush1.xpose.msra.mxu0 0.0
    %2652 = vmatprep.subr.mxu0 0.0
    %2653 = vmatpush1.xpose.msra.mxu0 0.0
    %2654 = vmatprep.subr.mxu0 0.0
    %2655 = vmatpush1.xpose.msra.mxu0 0.0
    %2656 = vmatprep.subr.mxu0 0.0
    %2657 = vmatpush1.xpose.msra.mxu0 0.0
    %2658 = vmatprep.subr.mxu0 0.0
    %2659 = vmatpush1.xpose.msra.mxu0 0.0
    %2660 = vmatprep.subr.mxu0 0.0
    %2661 = vmatpush1.xpose.msra.mxu0 0.0
    %2662 = vmatprep.subr.mxu0 0.0
    %2663 = vmatpush1.xpose.msra.mxu0 0.0
    %2664 = vmatprep.mubr.f32.mxu0 0.0
    %2665 = vmatmul.mubr.f32.gmra.mrb[0].mxu0 %v2596
    %v2666 = vpop.f32.mrb[0].mxu0
    %v2667 = vadd.f32 0.0, %v2666
    %v2668 = vpop.f32.mrb[0].mxu0
    %2669 = vdwg.mxu0
    %v2670 = vsel %vm165, %v2589, -inf
    %2671 = vmax.xlane.f32.xlu0 %v2670
    %v2672 = vpop.xlane.xlu0 %2671
    %v2673 = vsel %vm165, %v2667, -inf
    %2674 = vmax.xlane.f32.xlu0 %v2673
    %v2675 = vpop.xlane.xlu0 %2674
    %v2676 = vsub.f32 %v2589, %v2672
    %v2677 = vsub.f32 %v2667, %v2675
    %v2678 = vmul.f32 %v2676, 1.442695
    %v2679 = vpow.pop %v2678
    %v2680 = vmul.f32 %v2677, 1.442695
    %v2681 = vpow.pop %v2680
    %v2682 = vsel %vm165, %v2679, 0.0
    %2683 = vadd.xlane.f32.xlu0 %v2682
    %v2684 = vpop.xlane.xlu0 %2683
    %v2685 = vsel %vm165, %v2681, 0.0
    %2686 = vadd.xlane.f32.xlu0 %v2685
    %v2687 = vpop.xlane.xlu0 %2686
    %v2688 = vrcp.pop %v2684
    %v2689 = vmul.f32 %v2679, %v2688
    %v2690 = vrcp.pop %v2687
    %v2691 = vmul.f32 %v2681, %v2690
    %2692 = vrot.lane.b32.xlu0 %v2178, 56
    %v2693 = vpop.permute.xlu0 %2692
    %v2696 = vsel %vm165, %v2689, 0
    %2698 = vmatprep.subr.mxu0 0.0
    %2699 = vmatpush1.msra.mxu0 %v2693
    %2700 = vmatprep.subr.mxu0 0.0
    %2701 = vmatpush1.msra.mxu0 0.0
    %2702 = vmatprep.subr.mxu0 0.0
    %2703 = vmatpush1.msra.mxu0 0.0
    %2704 = vmatprep.subr.mxu0 0.0
    %2705 = vmatpush1.msra.mxu0 0.0
    %2706 = vmatprep.subr.mxu0 0.0
    %2707 = vmatpush1.msra.mxu0 0.0
    %2708 = vmatprep.subr.mxu0 0.0
    %2709 = vmatpush1.msra.mxu0 0.0
    %2710 = vmatprep.subr.mxu0 0.0
    %2711 = vmatpush1.msra.mxu0 0.0
    %2712 = vmatprep.subr.mxu0 0.0
    %2713 = vmatpush1.msra.mxu0 0.0
    %2714 = vmatprep.subr.mxu0 0.0
    %2715 = vmatpush1.msra.mxu0 0.0
    %2716 = vmatprep.subr.mxu0 0.0
    %2717 = vmatpush1.msra.mxu0 0.0
    %2718 = vmatprep.subr.mxu0 0.0
    %2719 = vmatpush1.msra.mxu0 0.0
    %2720 = vmatprep.subr.mxu0 0.0
    %2721 = vmatpush1.msra.mxu0 0.0
    %2722 = vmatprep.subr.mxu0 0.0
    %2723 = vmatpush1.msra.mxu0 0.0
    %2724 = vmatprep.subr.mxu0 0.0
    %2725 = vmatpush1.msra.mxu0 0.0
    %2726 = vmatprep.subr.mxu0 0.0
    %2727 = vmatpush1.msra.mxu0 0.0
    %2728 = vmatprep.subr.mxu0 0.0
    %2729 = vmatpush1.msra.mxu0 0.0
    %2730 = vmatprep.subr.mxu0 0.0
    %2731 = vmatpush1.msra.mxu0 0.0
    %2732 = vmatprep.subr.mxu0 0.0
    %2733 = vmatpush1.msra.mxu0 0.0
    %2734 = vmatprep.subr.mxu0 0.0
    %2735 = vmatpush1.msra.mxu0 0.0
    %2736 = vmatprep.subr.mxu0 0.0
    %2737 = vmatpush1.msra.mxu0 0.0
    %2738 = vmatprep.subr.mxu0 0.0
    %2739 = vmatpush1.msra.mxu0 0.0
    %2740 = vmatprep.subr.mxu0 0.0
    %2741 = vmatpush1.msra.mxu0 0.0
    %2742 = vmatprep.subr.mxu0 0.0
    %2743 = vmatpush1.msra.mxu0 0.0
    %2744 = vmatprep.subr.mxu0 0.0
    %2745 = vmatpush1.msra.mxu0 0.0
    %2746 = vmatprep.subr.mxu0 0.0
    %2747 = vmatpush1.msra.mxu0 0.0
    %2748 = vmatprep.subr.mxu0 0.0
    %2749 = vmatpush1.msra.mxu0 0.0
    %2750 = vmatprep.subr.mxu0 0.0
    %2751 = vmatpush1.msra.mxu0 0.0
    %2752 = vmatprep.subr.mxu0 0.0
    %2753 = vmatpush1.msra.mxu0 0.0
    %2754 = vmatprep.subr.mxu0 0.0
    %2755 = vmatpush1.msra.mxu0 0.0
    %2756 = vmatprep.subr.mxu0 0.0
    %2757 = vmatpush1.msra.mxu0 0.0
    %2758 = vmatprep.subr.mxu0 0.0
    %2759 = vmatpush1.msra.mxu0 0.0
    %2760 = vmatprep.subr.mxu0 0.0
    %2761 = vmatpush1.msra.mxu0 0.0
    %2762 = vmatprep.mubr.f32.mxu0 0.0
    %2763 = vmatmul.mubr.f32.gmra.mrb[0].mxu0 %v2696
    %v2764 = vpop.f32.mrb[0].mxu0
    %v2765 = vadd.f32 0.0, %v2764
    %v2766 = vpop.f32.mrb[0].mxu0
    %2767 = vdwg.mxu0
    %2768 = vrot.lane.b32.xlu0 %v2183, 56
    %v2769 = vpop.permute.xlu0 %2768
    %v2772 = vsel %vm165, %v2691, 0
    %2774 = vmatprep.subr.mxu0 0.0
    %2775 = vmatpush1.msra.mxu0 %v2769
    %2776 = vmatprep.subr.mxu0 0.0
    %2777 = vmatpush1.msra.mxu0 0.0
    %2778 = vmatprep.subr.mxu0 0.0
    %2779 = vmatpush1.msra.mxu0 0.0
    %2780 = vmatprep.subr.mxu0 0.0
    %2781 = vmatpush1.msra.mxu0 0.0
    %2782 = vmatprep.subr.mxu0 0.0
    %2783 = vmatpush1.msra.mxu0 0.0
    %2784 = vmatprep.subr.mxu0 0.0
    %2785 = vmatpush1.msra.mxu0 0.0
    %2786 = vmatprep.subr.mxu0 0.0
    %2787 = vmatpush1.msra.mxu0 0.0
    %2788 = vmatprep.subr.mxu0 0.0
    %2789 = vmatpush1.msra.mxu0 0.0
    %2790 = vmatprep.subr.mxu0 0.0
    %2791 = vmatpush1.msra.mxu0 0.0
    %2792 = vmatprep.subr.mxu0 0.0
    %2793 = vmatpush1.msra.mxu0 0.0
    %2794 = vmatprep.subr.mxu0 0.0
    %2795 = vmatpush1.msra.mxu0 0.0
    %2796 = vmatprep.subr.mxu0 0.0
    %2797 = vmatpush1.msra.mxu0 0.0
    %2798 = vmatprep.subr.mxu0 0.0
    %2799 = vmatpush1.msra.mxu0 0.0
    %2800 = vmatprep.subr.mxu0 0.0
    %2801 = vmatpush1.msra.mxu0 0.0
    %2802 = vmatprep.subr.mxu0 0.0
    %2803 = vmatpush1.msra.mxu0 0.0
    %2804 = vmatprep.subr.mxu0 0.0
    %2805 = vmatpush1.msra.mxu0 0.0
    %2806 = vmatprep.subr.mxu0 0.0
    %2807 = vmatpush1.msra.mxu0 0.0
    %2808 = vmatprep.subr.mxu0 0.0
    %2809 = vmatpush1.msra.mxu0 0.0
    %2810 = vmatprep.subr.mxu0 0.0
    %2811 = vmatpush1.msra.mxu0 0.0
    %2812 = vmatprep.subr.mxu0 0.0
    %2813 = vmatpush1.msra.mxu0 0.0
    %2814 = vmatprep.subr.mxu0 0.0
    %2815 = vmatpush1.msra.mxu0 0.0
    %2816 = vmatprep.subr.mxu0 0.0
    %2817 = vmatpush1.msra.mxu0 0.0
    %2818 = vmatprep.subr.mxu0 0.0
    %2819 = vmatpush1.msra.mxu0 0.0
    %2820 = vmatprep.subr.mxu0 0.0
    %2821 = vmatpush1.msra.mxu0 0.0
    %2822 = vmatprep.subr.mxu0 0.0
    %2823 = vmatpush1.msra.mxu0 0.0
    %2824 = vmatprep.subr.mxu0 0.0
    %2825 = vmatpush1.msra.mxu0 0.0
    %2826 = vmatprep.subr.mxu0 0.0
    %2827 = vmatpush1.msra.mxu0 0.0
    %2828 = vmatprep.subr.mxu0 0.0
    %2829 = vmatpush1.msra.mxu0 0.0
    %2830 = vmatprep.subr.mxu0 0.0
    %2831 = vmatpush1.msra.mxu0 0.0
    %2832 = vmatprep.subr.mxu0 0.0
    %2833 = vmatpush1.msra.mxu0 0.0
    %2834 = vmatprep.subr.mxu0 0.0
    %2835 = vmatpush1.msra.mxu0 0.0
    %2836 = vmatprep.subr.mxu0 0.0
    %2837 = vmatpush1.msra.mxu0 0.0
    %2838 = vmatprep.mubr.f32.mxu0 0.0
    %2839 = vmatmul.mubr.f32.gmra.mrb[0].mxu0 %v2772
    %v2840 = vpop.f32.mrb[0].mxu0
    %v2841 = vadd.f32 0.0, %v2840
    %v2842 = vpop.f32.mrb[0].mxu0
    %2843 = vdwg.mxu0
    %v2845 = vsel %vm165, %v2765, 0
    %v2848 = vsel %vm165, %v2841, 0
    %2850 = vmatprep.subr.mxu0 0.0
    %2851 = vmatpush1.msra.mxu0 %v2064
    %2852 = vmatprep.subr.mxu0 0.0
    %2853 = vmatpush1.msra.mxu0 0.0
    %2854 = vmatprep.subr.mxu0 0.0
    %2855 = vmatpush1.msra.mxu0 0.0
    %2856 = vmatprep.subr.mxu0 0.0
    %2857 = vmatpush1.msra.mxu0 0.0
    %2858 = vmatprep.subr.mxu0 0.0
    %2859 = vmatpush1.msra.mxu0 0.0
    %2860 = vmatprep.subr.mxu0 0.0
    %2861 = vmatpush1.msra.mxu0 0.0
    %2862 = vmatprep.subr.mxu0 0.0
    %2863 = vmatpush1.msra.mxu0 0.0
    %2864 = vmatprep.subr.mxu0 0.0
    %2865 = vmatpush1.msra.mxu0 0.0
    %2866 = vmatprep.subr.mxu0 0.0
    %2867 = vmatpush1.msra.mxu0 0.0
    %2868 = vmatprep.subr.mxu0 0.0
    %2869 = vmatpush1.msra.mxu0 0.0
    %2870 = vmatprep.subr.mxu0 0.0
    %2871 = vmatpush1.msra.mxu0 0.0
    %2872 = vmatprep.subr.mxu0 0.0
    %2873 = vmatpush1.msra.mxu0 0.0
    %2874 = vmatprep.subr.mxu0 0.0
    %2875 = vmatpush1.msra.mxu0 0.0
    %2876 = vmatprep.subr.mxu0 0.0
    %2877 = vmatpush1.msra.mxu0 0.0
    %2878 = vmatprep.subr.mxu0 0.0
    %2879 = vmatpush1.msra.mxu0 0.0
    %2880 = vmatprep.subr.mxu0 0.0
    %2881 = vmatpush1.msra.mxu0 0.0
    %2882 = vmatprep.subr.mxu0 0.0
    %2883 = vmatpush1.msra.mxu0 0.0
    %2884 = vmatprep.subr.mxu0 0.0
    %2885 = vmatpush1.msra.mxu0 0.0
    %2886 = vmatprep.subr.mxu0 0.0
    %2887 = vmatpush1.msra.mxu0 0.0
    %2888 = vmatprep.subr.mxu0 0.0
    %2889 = vmatpush1.msra.mxu0 0.0
    %2890 = vmatprep.subr.mxu0 0.0
    %2891 = vmatpush1.msra.mxu0 0.0
    %2892 = vmatprep.subr.mxu0 0.0
    %2893 = vmatpush1.msra.mxu0 0.0
    %2894 = vmatprep.subr.mxu0 0.0
    %2895 = vmatpush1.msra.mxu0 0.0
    %2896 = vmatprep.subr.mxu0 0.0
    %2897 = vmatpush1.msra.mxu0 0.0
    %2898 = vmatprep.subr.mxu0 0.0
    %2899 = vmatpush1.msra.mxu0 0.0
    %2900 = vmatprep.subr.mxu0 0.0
    %2901 = vmatpush1.msra.mxu0 0.0
    %2902 = vmatprep.subr.mxu0 0.0
    %2903 = vmatpush1.msra.mxu0 0.0
    %2904 = vmatprep.subr.mxu0 0.0
    %2905 = vmatpush1.msra.mxu0 0.0
    %2906 = vmatprep.subr.mxu0 0.0
    %2907 = vmatpush1.msra.mxu0 0.0
    %2908 = vmatprep.subr.mxu0 0.0
    %2909 = vmatpush1.msra.mxu0 0.0
    %2910 = vmatprep.subr.mxu0 0.0
    %2911 = vmatpush1.msra.mxu0 0.0
    %2912 = vmatprep.subr.mxu0 0.0
    %2913 = vmatpush1.msra.mxu0 0.0
    %2914 = vmatprep.mubr.f32.mxu0 0.0
    %2915 = vmatmul.mubr.f32.gmra.mrb[0].mxu0 %v2845
    %v2916 = vpop.f32.mrb[0].mxu0
    %v2917 = vadd.f32 0.0, %v2916
    %v2918 = vpop.f32.mrb[0].mxu0
    %2919 = vmatprep.mubr.f32.mxu0 0.0
    %2920 = vmatmul.mubr.f32.gmra.mrb[0].mxu0 %v2848
    %v2921 = vpop.f32.mrb[0].mxu0
    %v2922 = vadd.f32 0.0, %v2921
    %v2923 = vpop.f32.mrb[0].mxu0
    %2924 = vdwg.mxu0
    %v2926 = vsel %vm165, %v2435, 0
    %v2929 = vsel %vm165, %v2511, 0
    %2931 = vmatprep.subr.mxu0 0.0
    %2932 = vmatpush1.msra.mxu0 %v2063
    %2933 = vmatprep.subr.mxu0 0.0
    %2934 = vmatpush1.msra.mxu0 0.0
    %2935 = vmatprep.subr.mxu0 0.0
    %2936 = vmatpush1.msra.mxu0 0.0
    %2937 = vmatprep.subr.mxu0 0.0
    %2938 = vmatpush1.msra.mxu0 0.0
    %2939 = vmatprep.subr.mxu0 0.0
    %2940 = vmatpush1.msra.mxu0 0.0
    %2941 = vmatprep.subr.mxu0 0.0
    %2942 = vmatpush1.msra.mxu0 0.0
    %2943 = vmatprep.subr.mxu0 0.0
    %2944 = vmatpush1.msra.mxu0 0.0
    %2945 = vmatprep.subr.mxu0 0.0
    %2946 = vmatpush1.msra.mxu0 0.0
    %2947 = vmatprep.subr.mxu0 0.0
    %2948 = vmatpush1.msra.mxu0 0.0
    %2949 = vmatprep.subr.mxu0 0.0
    %2950 = vmatpush1.msra.mxu0 0.0
    %2951 = vmatprep.subr.mxu0 0.0
    %2952 = vmatpush1.msra.mxu0 0.0
    %2953 = vmatprep.subr.mxu0 0.0
    %2954 = vmatpush1.msra.mxu0 0.0
    %2955 = vmatprep.subr.mxu0 0.0
    %2956 = vmatpush1.msra.mxu0 0.0
    %2957 = vmatprep.subr.mxu0 0.0
    %2958 = vmatpush1.msra.mxu0 0.0
    %2959 = vmatprep.subr.mxu0 0.0
    %2960 = vmatpush1.msra.mxu0 0.0
    %2961 = vmatprep.subr.mxu0 0.0
    %2962 = vmatpush1.msra.mxu0 0.0
    %2963 = vmatprep.subr.mxu0 0.0
    %2964 = vmatpush1.msra.mxu0 0.0
    %2965 = vmatprep.subr.mxu0 0.0
    %2966 = vmatpush1.msra.mxu0 0.0
    %2967 = vmatprep.subr.mxu0 0.0
    %2968 = vmatpush1.msra.mxu0 0.0
    %2969 = vmatprep.subr.mxu0 0.0
    %2970 = vmatpush1.msra.mxu0 0.0
    %2971 = vmatprep.subr.mxu0 0.0
    %2972 = vmatpush1.msra.mxu0 0.0
    %2973 = vmatprep.subr.mxu0 0.0
    %2974 = vmatpush1.msra.mxu0 0.0
    %2975 = vmatprep.subr.mxu0 0.0
    %2976 = vmatpush1.msra.mxu0 0.0
    %2977 = vmatprep.subr.mxu0 0.0
    %2978 = vmatpush1.msra.mxu0 0.0
    %2979 = vmatprep.subr.mxu0 0.0
    %2980 = vmatpush1.msra.mxu0 0.0
    %2981 = vmatprep.subr.mxu0 0.0
    %2982 = vmatpush1.msra.mxu0 0.0
    %2983 = vmatprep.subr.mxu0 0.0
    %2984 = vmatpush1.msra.mxu0 0.0
    %2985 = vmatprep.subr.mxu0 0.0
    %2986 = vmatpush1.msra.mxu0 0.0
    %2987 = vmatprep.subr.mxu0 0.0
    %2988 = vmatpush1.msra.mxu0 0.0
    %2989 = vmatprep.subr.mxu0 0.0
    %2990 = vmatpush1.msra.mxu0 0.0
    %2991 = vmatprep.subr.mxu0 0.0
    %2992 = vmatpush1.msra.mxu0 0.0
    %2993 = vmatprep.subr.mxu0 0.0
    %2994 = vmatpush1.msra.mxu0 0.0
    %2995 = vmatprep.mubr.f32.mxu0 0.0
    %2996 = vmatmul.mubr.f32.gmra.mrb[0].mxu0 %v2926
    %v2997 = vpop.f32.mrb[0].mxu0
    %v2998 = vadd.f32 %v2917, %v2997
    %v2999 = vpop.f32.mrb[0].mxu0
    %3000 = vmatprep.mubr.f32.mxu0 0.0
    %3001 = vmatmul.mubr.f32.gmra.mrb[0].mxu0 %v2929
    %v3002 = vpop.f32.mrb[0].mxu0
    %v3003 = vadd.f32 %v2922, %v3002
    %v3004 = vpop.f32.mrb[0].mxu0
    %3005 = vdwg.mxu0
    %3006 = vrot.lane.b32.xlu0 %v2178, 112
    %v3007 = vpop.permute.xlu0 %3006
    %3008 = vrot.lane.b32.xlu0 %v2178, 80
    %v3009 = vpop.permute.xlu0 %3008
    %v3010 = vsel %vm165, %v3007, 0
    %v3012 = vsel %vm165, %v3009, 0
    %3014 = vmatprep.subr.mxu0 0.0
    %3015 = vmatpush1.xpose.msra.mxu0 %v3012
    %3016 = vmatprep.subr.mxu0 0.0
    %3017 = vmatpush1.xpose.msra.mxu0 0.0
    %3018 = vmatprep.subr.mxu0 0.0
    %3019 = vmatpush1.xpose.msra.mxu0 0.0
    %3020 = vmatprep.subr.mxu0 0.0
    %3021 = vmatpush1.xpose.msra.mxu0 0.0
    %3022 = vmatprep.subr.mxu0 0.0
    %3023 = vmatpush1.xpose.msra.mxu0 0.0
    %3024 = vmatprep.subr.mxu0 0.0
    %3025 = vmatpush1.xpose.msra.mxu0 0.0
    %3026 = vmatprep.subr.mxu0 0.0
    %3027 = vmatpush1.xpose.msra.mxu0 0.0
    %3028 = vmatprep.subr.mxu0 0.0
    %3029 = vmatpush1.xpose.msra.mxu0 0.0
    %3030 = vmatprep.subr.mxu0 0.0
    %3031 = vmatpush1.xpose.msra.mxu0 0.0
    %3032 = vmatprep.subr.mxu0 0.0
    %3033 = vmatpush1.xpose.msra.mxu0 0.0
    %3034 = vmatprep.subr.mxu0 0.0
    %3035 = vmatpush1.xpose.msra.mxu0 0.0
    %3036 = vmatprep.subr.mxu0 0.0
    %3037 = vmatpush1.xpose.msra.mxu0 0.0
    %3038 = vmatprep.subr.mxu0 0.0
    %3039 = vmatpush1.xpose.msra.mxu0 0.0
    %3040 = vmatprep.subr.mxu0 0.0
    %3041 = vmatpush1.xpose.msra.mxu0 0.0
    %3042 = vmatprep.subr.mxu0 0.0
    %3043 = vmatpush1.xpose.msra.mxu0 0.0
    %3044 = vmatprep.subr.mxu0 0.0
    %3045 = vmatpush1.xpose.msra.mxu0 0.0
    %3046 = vmatprep.subr.mxu0 0.0
    %3047 = vmatpush1.xpose.msra.mxu0 0.0
    %3048 = vmatprep.subr.mxu0 0.0
    %3049 = vmatpush1.xpose.msra.mxu0 0.0
    %3050 = vmatprep.subr.mxu0 0.0
    %3051 = vmatpush1.xpose.msra.mxu0 0.0
    %3052 = vmatprep.subr.mxu0 0.0
    %3053 = vmatpush1.xpose.msra.mxu0 0.0
    %3054 = vmatprep.subr.mxu0 0.0
    %3055 = vmatpush1.xpose.msra.mxu0 0.0
    %3056 = vmatprep.subr.mxu0 0.0
    %3057 = vmatpush1.xpose.msra.mxu0 0.0
    %3058 = vmatprep.subr.mxu0 0.0
    %3059 = vmatpush1.xpose.msra.mxu0 0.0
    %3060 = vmatprep.subr.mxu0 0.0
    %3061 = vmatpush1.xpose.msra.mxu0 0.0
    %3062 = vmatprep.subr.mxu0 0.0
    %3063 = vmatpush1.xpose.msra.mxu0 0.0
    %3064 = vmatprep.subr.mxu0 0.0
    %3065 = vmatpush1.xpose.msra.mxu0 0.0
    %3066 = vmatprep.subr.mxu0 0.0
    %3067 = vmatpush1.xpose.msra.mxu0 0.0
    %3068 = vmatprep.subr.mxu0 0.0
    %3069 = vmatpush1.xpose.msra.mxu0 0.0
    %3070 = vmatprep.subr.mxu0 0.0
    %3071 = vmatpush1.xpose.msra.mxu0 0.0
    %3072 = vmatprep.subr.mxu0 0.0
    %3073 = vmatpush1.xpose.msra.mxu0 0.0
    %3074 = vmatprep.subr.mxu0 0.0
    %3075 = vmatpush1.xpose.msra.mxu0 0.0
    %3076 = vmatprep.subr.mxu0 0.0
    %3077 = vmatpush1.xpose.msra.mxu0 0.0
    %3078 = vmatprep.mubr.f32.mxu0 0.0
    %3079 = vmatmul.mubr.f32.gmra.mrb[0].mxu0 %v3010
    %v3080 = vpop.f32.mrb[0].mxu0
    %v3081 = vadd.f32 0.0, %v3080
    %v3082 = vpop.f32.mrb[0].mxu0
    %3083 = vdwg.mxu0
    %3084 = vrot.lane.b32.xlu0 %v2183, 112
    %v3085 = vpop.permute.xlu0 %3084
    %3086 = vrot.lane.b32.xlu0 %v2183, 80
    %v3087 = vpop.permute.xlu0 %3086
    %v3088 = vsel %vm165, %v3085, 0
    %v3090 = vsel %vm165, %v3087, 0
    %3092 = vmatprep.subr.mxu0 0.0
    %3093 = vmatpush1.xpose.msra.mxu0 %v3090
    %3094 = vmatprep.subr.mxu0 0.0
    %3095 = vmatpush1.xpose.msra.mxu0 0.0
    %3096 = vmatprep.subr.mxu0 0.0
    %3097 = vmatpush1.xpose.msra.mxu0 0.0
    %3098 = vmatprep.subr.mxu0 0.0
    %3099 = vmatpush1.xpose.msra.mxu0 0.0
    %3100 = vmatprep.subr.mxu0 0.0
    %3101 = vmatpush1.xpose.msra.mxu0 0.0
    %3102 = vmatprep.subr.mxu0 0.0
    %3103 = vmatpush1.xpose.msra.mxu0 0.0
    %3104 = vmatprep.subr.mxu0 0.0
    %3105 = vmatpush1.xpose.msra.mxu0 0.0
    %3106 = vmatprep.subr.mxu0 0.0
    %3107 = vmatpush1.xpose.msra.mxu0 0.0
    %3108 = vmatprep.subr.mxu0 0.0
    %3109 = vmatpush1.xpose.msra.mxu0 0.0
    %3110 = vmatprep.subr.mxu0 0.0
    %3111 = vmatpush1.xpose.msra.mxu0 0.0
    %3112 = vmatprep.subr.mxu0 0.0
    %3113 = vmatpush1.xpose.msra.mxu0 0.0
    %3114 = vmatprep.subr.mxu0 0.0
    %3115 = vmatpush1.xpose.msra.mxu0 0.0
    %3116 = vmatprep.subr.mxu0 0.0
    %3117 = vmatpush1.xpose.msra.mxu0 0.0
    %3118 = vmatprep.subr.mxu0 0.0
    %3119 = vmatpush1.xpose.msra.mxu0 0.0
    %3120 = vmatprep.subr.mxu0 0.0
    %3121 = vmatpush1.xpose.msra.mxu0 0.0
    %3122 = vmatprep.subr.mxu0 0.0
    %3123 = vmatpush1.xpose.msra.mxu0 0.0
    %3124 = vmatprep.subr.mxu0 0.0
    %3125 = vmatpush1.xpose.msra.mxu0 0.0
    %3126 = vmatprep.subr.mxu0 0.0
    %3127 = vmatpush1.xpose.msra.mxu0 0.0
    %3128 = vmatprep.subr.mxu0 0.0
    %3129 = vmatpush1.xpose.msra.mxu0 0.0
    %3130 = vmatprep.subr.mxu0 0.0
    %3131 = vmatpush1.xpose.msra.mxu0 0.0
    %3132 = vmatprep.subr.mxu0 0.0
    %3133 = vmatpush1.xpose.msra.mxu0 0.0
    %3134 = vmatprep.subr.mxu0 0.0
    %3135 = vmatpush1.xpose.msra.mxu0 0.0
    %3136 = vmatprep.subr.mxu0 0.0
    %3137 = vmatpush1.xpose.msra.mxu0 0.0
    %3138 = vmatprep.subr.mxu0 0.0
    %3139 = vmatpush1.xpose.msra.mxu0 0.0
    %3140 = vmatprep.subr.mxu0 0.0
    %3141 = vmatpush1.xpose.msra.mxu0 0.0
    %3142 = vmatprep.subr.mxu0 0.0
    %3143 = vmatpush1.xpose.msra.mxu0 0.0
    %3144 = vmatprep.subr.mxu0 0.0
    %3145 = vmatpush1.xpose.msra.mxu0 0.0
    %3146 = vmatprep.subr.mxu0 0.0
    %3147 = vmatpush1.xpose.msra.mxu0 0.0
    %3148 = vmatprep.subr.mxu0 0.0
    %3149 = vmatpush1.xpose.msra.mxu0 0.0
    %3150 = vmatprep.subr.mxu0 0.0
    %3151 = vmatpush1.xpose.msra.mxu0 0.0
    %3152 = vmatprep.subr.mxu0 0.0
    %3153 = vmatpush1.xpose.msra.mxu0 0.0
    %3154 = vmatprep.subr.mxu0 0.0
    %3155 = vmatpush1.xpose.msra.mxu0 0.0
    %3156 = vmatprep.mubr.f32.mxu0 0.0
    %3157 = vmatmul.mubr.f32.gmra.mrb[0].mxu0 %v3088
    %v3158 = vpop.f32.mrb[0].mxu0
    %v3159 = vadd.f32 0.0, %v3158
    %v3160 = vpop.f32.mrb[0].mxu0
    %3161 = vdwg.mxu0
    %v3162 = vsel %vm165, %v3081, -inf
    %3163 = vmax.xlane.f32.xlu0 %v3162
    %v3164 = vpop.xlane.xlu0 %3163
    %v3165 = vsel %vm165, %v3159, -inf
    %3166 = vmax.xlane.f32.xlu0 %v3165
    %v3167 = vpop.xlane.xlu0 %3166
    %v3168 = vsub.f32 %v3081, %v3164
    %v3169 = vsub.f32 %v3159, %v3167
    %v3170 = vmul.f32 %v3168, 1.442695
    %v3171 = vpow.pop %v3170
    %v3172 = vmul.f32 %v3169, 1.442695
    %v3173 = vpow.pop %v3172
    %v3174 = vsel %vm165, %v3171, 0.0
    %3175 = vadd.xlane.f32.xlu0 %v3174
    %v3176 = vpop.xlane.xlu0 %3175
    %v3177 = vsel %vm165, %v3173, 0.0
    %3178 = vadd.xlane.f32.xlu0 %v3177
    %v3179 = vpop.xlane.xlu0 %3178
    %v3180 = vrcp.pop %v3176
    %v3181 = vmul.f32 %v3171, %v3180
    %v3182 = vrcp.pop %v3179
    %v3183 = vmul.f32 %v3173, %v3182
    %3184 = vrot.lane.b32.xlu0 %v2178, 48
    %v3185 = vpop.permute.xlu0 %3184
    %v3188 = vsel %vm165, %v3181, 0
    %3190 = vmatprep.subr.mxu0 0.0
    %3191 = vmatpush1.msra.mxu0 %v3185
    %3192 = vmatprep.subr.mxu0 0.0
    %3193 = vmatpush1.msra.mxu0 0.0
    %3194 = vmatprep.subr.mxu0 0.0
    %3195 = vmatpush1.msra.mxu0 0.0
    %3196 = vmatprep.subr.mxu0 0.0
    %3197 = vmatpush1.msra.mxu0 0.0
    %3198 = vmatprep.subr.mxu0 0.0
    %3199 = vmatpush1.msra.mxu0 0.0
    %3200 = vmatprep.subr.mxu0 0.0
    %3201 = vmatpush1.msra.mxu0 0.0
    %3202 = vmatprep.subr.mxu0 0.0
    %3203 = vmatpush1.msra.mxu0 0.0
    %3204 = vmatprep.subr.mxu0 0.0
    %3205 = vmatpush1.msra.mxu0 0.0
    %3206 = vmatprep.subr.mxu0 0.0
    %3207 = vmatpush1.msra.mxu0 0.0
    %3208 = vmatprep.subr.mxu0 0.0
    %3209 = vmatpush1.msra.mxu0 0.0
    %3210 = vmatprep.subr.mxu0 0.0
    %3211 = vmatpush1.msra.mxu0 0.0
    %3212 = vmatprep.subr.mxu0 0.0
    %3213 = vmatpush1.msra.mxu0 0.0
    %3214 = vmatprep.subr.mxu0 0.0
    %3215 = vmatpush1.msra.mxu0 0.0
    %3216 = vmatprep.subr.mxu0 0.0
    %3217 = vmatpush1.msra.mxu0 0.0
    %3218 = vmatprep.subr.mxu0 0.0
    %3219 = vmatpush1.msra.mxu0 0.0
    %3220 = vmatprep.subr.mxu0 0.0
    %3221 = vmatpush1.msra.mxu0 0.0
    %3222 = vmatprep.subr.mxu0 0.0
    %3223 = vmatpush1.msra.mxu0 0.0
    %3224 = vmatprep.subr.mxu0 0.0
    %3225 = vmatpush1.msra.mxu0 0.0
    %3226 = vmatprep.subr.mxu0 0.0
    %3227 = vmatpush1.msra.mxu0 0.0
    %3228 = vmatprep.subr.mxu0 0.0
    %3229 = vmatpush1.msra.mxu0 0.0
    %3230 = vmatprep.subr.mxu0 0.0
    %3231 = vmatpush1.msra.mxu0 0.0
    %3232 = vmatprep.subr.mxu0 0.0
    %3233 = vmatpush1.msra.mxu0 0.0
    %3234 = vmatprep.subr.mxu0 0.0
    %3235 = vmatpush1.msra.mxu0 0.0
    %3236 = vmatprep.subr.mxu0 0.0
    %3237 = vmatpush1.msra.mxu0 0.0
    %3238 = vmatprep.subr.mxu0 0.0
    %3239 = vmatpush1.msra.mxu0 0.0
    %3240 = vmatprep.subr.mxu0 0.0
    %3241 = vmatpush1.msra.mxu0 0.0
    %3242 = vmatprep.subr.mxu0 0.0
    %3243 = vmatpush1.msra.mxu0 0.0
    %3244 = vmatprep.subr.mxu0 0.0
    %3245 = vmatpush1.msra.mxu0 0.0
    %3246 = vmatprep.subr.mxu0 0.0
    %3247 = vmatpush1.msra.mxu0 0.0
    %3248 = vmatprep.subr.mxu0 0.0
    %3249 = vmatpush1.msra.mxu0 0.0
    %3250 = vmatprep.subr.mxu0 0.0
    %3251 = vmatpush1.msra.mxu0 0.0
    %3252 = vmatprep.subr.mxu0 0.0
    %3253 = vmatpush1.msra.mxu0 0.0
    %3254 = vmatprep.mubr.f32.mxu0 0.0
    %3255 = vmatmul.mubr.f32.gmra.mrb[0].mxu0 %v3188
    %v3256 = vpop.f32.mrb[0].mxu0
    %v3257 = vadd.f32 0.0, %v3256
    %v3258 = vpop.f32.mrb[0].mxu0
    %3259 = vdwg.mxu0
    %3260 = vrot.lane.b32.xlu0 %v2183, 48
    %v3261 = vpop.permute.xlu0 %3260
    %v3264 = vsel %vm165, %v3183, 0
    %3266 = vmatprep.subr.mxu0 0.0
    %3267 = vmatpush1.msra.mxu0 %v3261
    %3268 = vmatprep.subr.mxu0 0.0
    %3269 = vmatpush1.msra.mxu0 0.0
    %3270 = vmatprep.subr.mxu0 0.0
    %3271 = vmatpush1.msra.mxu0 0.0
    %3272 = vmatprep.subr.mxu0 0.0
    %3273 = vmatpush1.msra.mxu0 0.0
    %3274 = vmatprep.subr.mxu0 0.0
    %3275 = vmatpush1.msra.mxu0 0.0
    %3276 = vmatprep.subr.mxu0 0.0
    %3277 = vmatpush1.msra.mxu0 0.0
    %3278 = vmatprep.subr.mxu0 0.0
    %3279 = vmatpush1.msra.mxu0 0.0
    %3280 = vmatprep.subr.mxu0 0.0
    %3281 = vmatpush1.msra.mxu0 0.0
    %3282 = vmatprep.subr.mxu0 0.0
    %3283 = vmatpush1.msra.mxu0 0.0
    %3284 = vmatprep.subr.mxu0 0.0
    %3285 = vmatpush1.msra.mxu0 0.0
    %3286 = vmatprep.subr.mxu0 0.0
    %3287 = vmatpush1.msra.mxu0 0.0
    %3288 = vmatprep.subr.mxu0 0.0
    %3289 = vmatpush1.msra.mxu0 0.0
    %3290 = vmatprep.subr.mxu0 0.0
    %3291 = vmatpush1.msra.mxu0 0.0
    %3292 = vmatprep.subr.mxu0 0.0
    %3293 = vmatpush1.msra.mxu0 0.0
    %3294 = vmatprep.subr.mxu0 0.0
    %3295 = vmatpush1.msra.mxu0 0.0
    %3296 = vmatprep.subr.mxu0 0.0
    %3297 = vmatpush1.msra.mxu0 0.0
    %3298 = vmatprep.subr.mxu0 0.0
    %3299 = vmatpush1.msra.mxu0 0.0
    %3300 = vmatprep.subr.mxu0 0.0
    %3301 = vmatpush1.msra.mxu0 0.0
    %3302 = vmatprep.subr.mxu0 0.0
    %3303 = vmatpush1.msra.mxu0 0.0
    %3304 = vmatprep.subr.mxu0 0.0
    %3305 = vmatpush1.msra.mxu0 0.0
    %3306 = vmatprep.subr.mxu0 0.0
    %3307 = vmatpush1.msra.mxu0 0.0
    %3308 = vmatprep.subr.mxu0 0.0
    %3309 = vmatpush1.msra.mxu0 0.0
    %3310 = vmatprep.subr.mxu0 0.0
    %3311 = vmatpush1.msra.mxu0 0.0
    %3312 = vmatprep.subr.mxu0 0.0
    %3313 = vmatpush1.msra.mxu0 0.0
    %3314 = vmatprep.subr.mxu0 0.0
    %3315 = vmatpush1.msra.mxu0 0.0
    %3316 = vmatprep.subr.mxu0 0.0
    %3317 = vmatpush1.msra.mxu0 0.0
    %3318 = vmatprep.subr.mxu0 0.0
    %3319 = vmatpush1.msra.mxu0 0.0
    %3320 = vmatprep.subr.mxu0 0.0
    %3321 = vmatpush1.msra.mxu0 0.0
    %3322 = vmatprep.subr.mxu0 0.0
    %3323 = vmatpush1.msra.mxu0 0.0
    %3324 = vmatprep.subr.mxu0 0.0
    %3325 = vmatpush1.msra.mxu0 0.0
    %3326 = vmatprep.subr.mxu0 0.0
    %3327 = vmatpush1.msra.mxu0 0.0
    %3328 = vmatprep.subr.mxu0 0.0
    %3329 = vmatpush1.msra.mxu0 0.0
    %3330 = vmatprep.mubr.f32.mxu0 0.0
    %3331 = vmatmul.mubr.f32.gmra.mrb[0].mxu0 %v3264
    %v3332 = vpop.f32.mrb[0].mxu0
    %v3333 = vadd.f32 0.0, %v3332
    %v3334 = vpop.f32.mrb[0].mxu0
    %3335 = vdwg.mxu0
    %v3337 = vsel %vm165, %v3257, 0
    %v3340 = vsel %vm165, %v3333, 0
    %3342 = vmatprep.subr.mxu0 0.0
    %3343 = vmatpush1.msra.mxu0 %v2065
    %3344 = vmatprep.subr.mxu0 0.0
    %3345 = vmatpush1.msra.mxu0 0.0
    %3346 = vmatprep.subr.mxu0 0.0
    %3347 = vmatpush1.msra.mxu0 0.0
    %3348 = vmatprep.subr.mxu0 0.0
    %3349 = vmatpush1.msra.mxu0 0.0
    %3350 = vmatprep.subr.mxu0 0.0
    %3351 = vmatpush1.msra.mxu0 0.0
    %3352 = vmatprep.subr.mxu0 0.0
    %3353 = vmatpush1.msra.mxu0 0.0
    %3354 = vmatprep.subr.mxu0 0.0
    %3355 = vmatpush1.msra.mxu0 0.0
    %3356 = vmatprep.subr.mxu0 0.0
    %3357 = vmatpush1.msra.mxu0 0.0
    %3358 = vmatprep.subr.mxu0 0.0
    %3359 = vmatpush1.msra.mxu0 0.0
    %3360 = vmatprep.subr.mxu0 0.0
    %3361 = vmatpush1.msra.mxu0 0.0
    %3362 = vmatprep.subr.mxu0 0.0
    %3363 = vmatpush1.msra.mxu0 0.0
    %3364 = vmatprep.subr.mxu0 0.0
    %3365 = vmatpush1.msra.mxu0 0.0
    %3366 = vmatprep.subr.mxu0 0.0
    %3367 = vmatpush1.msra.mxu0 0.0
    %3368 = vmatprep.subr.mxu0 0.0
    %3369 = vmatpush1.msra.mxu0 0.0
    %3370 = vmatprep.subr.mxu0 0.0
    %3371 = vmatpush1.msra.mxu0 0.0
    %3372 = vmatprep.subr.mxu0 0.0
    %3373 = vmatpush1.msra.mxu0 0.0
    %3374 = vmatprep.subr.mxu0 0.0
    %3375 = vmatpush1.msra.mxu0 0.0
    %3376 = vmatprep.subr.mxu0 0.0
    %3377 = vmatpush1.msra.mxu0 0.0
    %3378 = vmatprep.subr.mxu0 0.0
    %3379 = vmatpush1.msra.mxu0 0.0
    %3380 = vmatprep.subr.mxu0 0.0
    %3381 = vmatpush1.msra.mxu0 0.0
    %3382 = vmatprep.subr.mxu0 0.0
    %3383 = vmatpush1.msra.mxu0 0.0
    %3384 = vmatprep.subr.mxu0 0.0
    %3385 = vmatpush1.msra.mxu0 0.0
    %3386 = vmatprep.subr.mxu0 0.0
    %3387 = vmatpush1.msra.mxu0 0.0
    %3388 = vmatprep.subr.mxu0 0.0
    %3389 = vmatpush1.msra.mxu0 0.0
    %3390 = vmatprep.subr.mxu0 0.0
    %3391 = vmatpush1.msra.mxu0 0.0
    %3392 = vmatprep.subr.mxu0 0.0
    %3393 = vmatpush1.msra.mxu0 0.0
    %3394 = vmatprep.subr.mxu0 0.0
    %3395 = vmatpush1.msra.mxu0 0.0
    %3396 = vmatprep.subr.mxu0 0.0
    %3397 = vmatpush1.msra.mxu0 0.0
    %3398 = vmatprep.subr.mxu0 0.0
    %3399 = vmatpush1.msra.mxu0 0.0
    %3400 = vmatprep.subr.mxu0 0.0
    %3401 = vmatpush1.msra.mxu0 0.0
    %3402 = vmatprep.subr.mxu0 0.0
    %3403 = vmatpush1.msra.mxu0 0.0
    %3404 = vmatprep.subr.mxu0 0.0
    %3405 = vmatpush1.msra.mxu0 0.0
    %3406 = vmatprep.mubr.f32.mxu0 0.0
    %3407 = vmatmul.mubr.f32.gmra.mrb[0].mxu0 %v3337
    %v3408 = vpop.f32.mrb[0].mxu0
    %v3409 = vadd.f32 0.0, %v3408
    %v3410 = vpop.f32.mrb[0].mxu0
    %3411 = vmatprep.mubr.f32.mxu0 0.0
    %3412 = vmatmul.mubr.f32.gmra.mrb[0].mxu0 %v3340
    %v3413 = vpop.f32.mrb[0].mxu0
    %v3414 = vadd.f32 0.0, %v3413
    %v3415 = vpop.f32.mrb[0].mxu0
    %3416 = vdwg.mxu0
    %v3417 = vadd.f32 %v2998, %v3409
    %v3418 = vadd.f32 %v3003, %v3414
    %3419 = vrot.lane.b32.xlu0 %v2178, 104
    %v3420 = vpop.permute.xlu0 %3419
    %3421 = vrot.lane.b32.xlu0 %v2178, 72
    %v3422 = vpop.permute.xlu0 %3421
    %v3423 = vsel %vm165, %v3420, 0
    %v3425 = vsel %vm165, %v3422, 0
    %3427 = vmatprep.subr.mxu0 0.0
    %3428 = vmatpush1.xpose.msra.mxu0 %v3425
    %3429 = vmatprep.subr.mxu0 0.0
    %3430 = vmatpush1.xpose.msra.mxu0 0.0
    %3431 = vmatprep.subr.mxu0 0.0
    %3432 = vmatpush1.xpose.msra.mxu0 0.0
    %3433 = vmatprep.subr.mxu0 0.0
    %3434 = vmatpush1.xpose.msra.mxu0 0.0
    %3435 = vmatprep.subr.mxu0 0.0
    %3436 = vmatpush1.xpose.msra.mxu0 0.0
    %3437 = vmatprep.subr.mxu0 0.0
    %3438 = vmatpush1.xpose.msra.mxu0 0.0
    %3439 = vmatprep.subr.mxu0 0.0
    %3440 = vmatpush1.xpose.msra.mxu0 0.0
    %3441 = vmatprep.subr.mxu0 0.0
    %3442 = vmatpush1.xpose.msra.mxu0 0.0
    %3443 = vmatprep.subr.mxu0 0.0
    %3444 = vmatpush1.xpose.msra.mxu0 0.0
    %3445 = vmatprep.subr.mxu0 0.0
    %3446 = vmatpush1.xpose.msra.mxu0 0.0
    %3447 = vmatprep.subr.mxu0 0.0
    %3448 = vmatpush1.xpose.msra.mxu0 0.0
    %3449 = vmatprep.subr.mxu0 0.0
    %3450 = vmatpush1.xpose.msra.mxu0 0.0
    %3451 = vmatprep.subr.mxu0 0.0
    %3452 = vmatpush1.xpose.msra.mxu0 0.0
    %3453 = vmatprep.subr.mxu0 0.0
    %3454 = vmatpush1.xpose.msra.mxu0 0.0
    %3455 = vmatprep.subr.mxu0 0.0
    %3456 = vmatpush1.xpose.msra.mxu0 0.0
    %3457 = vmatprep.subr.mxu0 0.0
    %3458 = vmatpush1.xpose.msra.mxu0 0.0
    %3459 = vmatprep.subr.mxu0 0.0
    %3460 = vmatpush1.xpose.msra.mxu0 0.0
    %3461 = vmatprep.subr.mxu0 0.0
    %3462 = vmatpush1.xpose.msra.mxu0 0.0
    %3463 = vmatprep.subr.mxu0 0.0
    %3464 = vmatpush1.xpose.msra.mxu0 0.0
    %3465 = vmatprep.subr.mxu0 0.0
    %3466 = vmatpush1.xpose.msra.mxu0 0.0
    %3467 = vmatprep.subr.mxu0 0.0
    %3468 = vmatpush1.xpose.msra.mxu0 0.0
    %3469 = vmatprep.subr.mxu0 0.0
    %3470 = vmatpush1.xpose.msra.mxu0 0.0
    %3471 = vmatprep.subr.mxu0 0.0
    %3472 = vmatpush1.xpose.msra.mxu0 0.0
    %3473 = vmatprep.subr.mxu0 0.0
    %3474 = vmatpush1.xpose.msra.mxu0 0.0
    %3475 = vmatprep.subr.mxu0 0.0
    %3476 = vmatpush1.xpose.msra.mxu0 0.0
    %3477 = vmatprep.subr.mxu0 0.0
    %3478 = vmatpush1.xpose.msra.mxu0 0.0
    %3479 = vmatprep.subr.mxu0 0.0
    %3480 = vmatpush1.xpose.msra.mxu0 0.0
    %3481 = vmatprep.subr.mxu0 0.0
    %3482 = vmatpush1.xpose.msra.mxu0 0.0
    %3483 = vmatprep.subr.mxu0 0.0
    %3484 = vmatpush1.xpose.msra.mxu0 0.0
    %3485 = vmatprep.subr.mxu0 0.0
    %3486 = vmatpush1.xpose.msra.mxu0 0.0
    %3487 = vmatprep.subr.mxu0 0.0
    %3488 = vmatpush1.xpose.msra.mxu0 0.0
    %3489 = vmatprep.subr.mxu0 0.0
    %3490 = vmatpush1.xpose.msra.mxu0 0.0
    %3491 = vmatprep.mubr.f32.mxu0 0.0
    %3492 = vmatmul.mubr.f32.gmra.mrb[0].mxu0 %v3423
    %v3493 = vpop.f32.mrb[0].mxu0
    %v3494 = vadd.f32 0.0, %v3493
    %v3495 = vpop.f32.mrb[0].mxu0
    %3496 = vdwg.mxu0
    %3497 = vrot.lane.b32.xlu0 %v2183, 104
    %v3498 = vpop.permute.xlu0 %3497
    %3499 = vrot.lane.b32.xlu0 %v2183, 72
    %v3500 = vpop.permute.xlu0 %3499
    %v3501 = vsel %vm165, %v3498, 0
    %v3503 = vsel %vm165, %v3500, 0
    %3505 = vmatprep.subr.mxu0 0.0
    %3506 = vmatpush1.xpose.msra.mxu0 %v3503
    %3507 = vmatprep.subr.mxu0 0.0
    %3508 = vmatpush1.xpose.msra.mxu0 0.0
    %3509 = vmatprep.subr.mxu0 0.0
    %3510 = vmatpush1.xpose.msra.mxu0 0.0
    %3511 = vmatprep.subr.mxu0 0.0
    %3512 = vmatpush1.xpose.msra.mxu0 0.0
    %3513 = vmatprep.subr.mxu0 0.0
    %3514 = vmatpush1.xpose.msra.mxu0 0.0
    %3515 = vmatprep.subr.mxu0 0.0
    %3516 = vmatpush1.xpose.msra.mxu0 0.0
    %3517 = vmatprep.subr.mxu0 0.0
    %3518 = vmatpush1.xpose.msra.mxu0 0.0
    %3519 = vmatprep.subr.mxu0 0.0
    %3520 = vmatpush1.xpose.msra.mxu0 0.0
    %3521 = vmatprep.subr.mxu0 0.0
    %3522 = vmatpush1.xpose.msra.mxu0 0.0
    %3523 = vmatprep.subr.mxu0 0.0
    %3524 = vmatpush1.xpose.msra.mxu0 0.0
    %3525 = vmatprep.subr.mxu0 0.0
    %3526 = vmatpush1.xpose.msra.mxu0 0.0
    %3527 = vmatprep.subr.mxu0 0.0
    %3528 = vmatpush1.xpose.msra.mxu0 0.0
    %3529 = vmatprep.subr.mxu0 0.0
    %3530 = vmatpush1.xpose.msra.mxu0 0.0
    %3531 = vmatprep.subr.mxu0 0.0
    %3532 = vmatpush1.xpose.msra.mxu0 0.0
    %3533 = vmatprep.subr.mxu0 0.0
    %3534 = vmatpush1.xpose.msra.mxu0 0.0
    %3535 = vmatprep.subr.mxu0 0.0
    %3536 = vmatpush1.xpose.msra.mxu0 0.0
    %3537 = vmatprep.subr.mxu0 0.0
    %3538 = vmatpush1.xpose.msra.mxu0 0.0
    %3539 = vmatprep.subr.mxu0 0.0
    %3540 = vmatpush1.xpose.msra.mxu0 0.0
    %3541 = vmatprep.subr.mxu0 0.0
    %3542 = vmatpush1.xpose.msra.mxu0 0.0
    %3543 = vmatprep.subr.mxu0 0.0
    %3544 = vmatpush1.xpose.msra.mxu0 0.0
    %3545 = vmatprep.subr.mxu0 0.0
    %3546 = vmatpush1.xpose.msra.mxu0 0.0
    %3547 = vmatprep.subr.mxu0 0.0
    %3548 = vmatpush1.xpose.msra.mxu0 0.0
    %3549 = vmatprep.subr.mxu0 0.0
    %3550 = vmatpush1.xpose.msra.mxu0 0.0
    %3551 = vmatprep.subr.mxu0 0.0
    %3552 = vmatpush1.xpose.msra.mxu0 0.0
    %3553 = vmatprep.subr.mxu0 0.0
    %3554 = vmatpush1.xpose.msra.mxu0 0.0
    %3555 = vmatprep.subr.mxu0 0.0
    %3556 = vmatpush1.xpose.msra.mxu0 0.0
    %3557 = vmatprep.subr.mxu0 0.0
    %3558 = vmatpush1.xpose.msra.mxu0 0.0
    %3559 = vmatprep.subr.mxu0 0.0
    %3560 = vmatpush1.xpose.msra.mxu0 0.0
    %3561 = vmatprep.subr.mxu0 0.0
    %3562 = vmatpush1.xpose.msra.mxu0 0.0
    %3563 = vmatprep.subr.mxu0 0.0
    %3564 = vmatpush1.xpose.msra.mxu0 0.0
    %3565 = vmatprep.subr.mxu0 0.0
    %3566 = vmatpush1.xpose.msra.mxu0 0.0
    %3567 = vmatprep.subr.mxu0 0.0
    %3568 = vmatpush1.xpose.msra.mxu0 0.0
    %3569 = vmatprep.mubr.f32.mxu0 0.0
    %3570 = vmatmul.mubr.f32.gmra.mrb[0].mxu0 %v3501
    %v3571 = vpop.f32.mrb[0].mxu0
    %v3572 = vadd.f32 0.0, %v3571
    %v3573 = vpop.f32.mrb[0].mxu0
    %3574 = vdwg.mxu0
    %v3575 = vsel %vm165, %v3494, -inf
    %3576 = vmax.xlane.f32.xlu0 %v3575
    %v3577 = vpop.xlane.xlu0 %3576
    %v3578 = vsel %vm165, %v3572, -inf
    %3579 = vmax.xlane.f32.xlu0 %v3578
    %v3580 = vpop.xlane.xlu0 %3579
    %v3581 = vsub.f32 %v3494, %v3577
    %v3582 = vsub.f32 %v3572, %v3580
    %v3583 = vmul.f32 %v3581, 1.442695
    %v3584 = vpow.pop %v3583
    %v3585 = vmul.f32 %v3582, 1.442695
    %v3586 = vpow.pop %v3585
    %v3587 = vsel %vm165, %v3584, 0.0
    %3588 = vadd.xlane.f32.xlu0 %v3587
    %v3589 = vpop.xlane.xlu0 %3588
    %v3590 = vsel %vm165, %v3586, 0.0
    %3591 = vadd.xlane.f32.xlu0 %v3590
    %v3592 = vpop.xlane.xlu0 %3591
    %v3593 = vrcp.pop %v3589
    %v3594 = vmul.f32 %v3584, %v3593
    %v3595 = vrcp.pop %v3592
    %v3596 = vmul.f32 %v3586, %v3595
    %3597 = vrot.lane.b32.xlu0 %v2178, 40
    %v3598 = vpop.permute.xlu0 %3597
    %v3601 = vsel %vm165, %v3594, 0
    %3603 = vmatprep.subr.mxu0 0.0
    %3604 = vmatpush1.msra.mxu0 %v3598
    %3605 = vmatprep.subr.mxu0 0.0
    %3606 = vmatpush1.msra.mxu0 0.0
    %3607 = vmatprep.subr.mxu0 0.0
    %3608 = vmatpush1.msra.mxu0 0.0
    %3609 = vmatprep.subr.mxu0 0.0
    %3610 = vmatpush1.msra.mxu0 0.0
    %3611 = vmatprep.subr.mxu0 0.0
    %3612 = vmatpush1.msra.mxu0 0.0
    %3613 = vmatprep.subr.mxu0 0.0
    %3614 = vmatpush1.msra.mxu0 0.0
    %3615 = vmatprep.subr.mxu0 0.0
    %3616 = vmatpush1.msra.mxu0 0.0
    %3617 = vmatprep.subr.mxu0 0.0
    %3618 = vmatpush1.msra.mxu0 0.0
    %3619 = vmatprep.subr.mxu0 0.0
    %3620 = vmatpush1.msra.mxu0 0.0
    %3621 = vmatprep.subr.mxu0 0.0
    %3622 = vmatpush1.msra.mxu0 0.0
    %3623 = vmatprep.subr.mxu0 0.0
    %3624 = vmatpush1.msra.mxu0 0.0
    %3625 = vmatprep.subr.mxu0 0.0
    %3626 = vmatpush1.msra.mxu0 0.0
    %3627 = vmatprep.subr.mxu0 0.0
    %3628 = vmatpush1.msra.mxu0 0.0
    %3629 = vmatprep.subr.mxu0 0.0
    %3630 = vmatpush1.msra.mxu0 0.0
    %3631 = vmatprep.subr.mxu0 0.0
    %3632 = vmatpush1.msra.mxu0 0.0
    %3633 = vmatprep.subr.mxu0 0.0
    %3634 = vmatpush1.msra.mxu0 0.0
    %3635 = vmatprep.subr.mxu0 0.0
    %3636 = vmatpush1.msra.mxu0 0.0
    %3637 = vmatprep.subr.mxu0 0.0
    %3638 = vmatpush1.msra.mxu0 0.0
    %3639 = vmatprep.subr.mxu0 0.0
    %3640 = vmatpush1.msra.mxu0 0.0
    %3641 = vmatprep.subr.mxu0 0.0
    %3642 = vmatpush1.msra.mxu0 0.0
    %3643 = vmatprep.subr.mxu0 0.0
    %3644 = vmatpush1.msra.mxu0 0.0
    %3645 = vmatprep.subr.mxu0 0.0
    %3646 = vmatpush1.msra.mxu0 0.0
    %3647 = vmatprep.subr.mxu0 0.0
    %3648 = vmatpush1.msra.mxu0 0.0
    %3649 = vmatprep.subr.mxu0 0.0
    %3650 = vmatpush1.msra.mxu0 0.0
    %3651 = vmatprep.subr.mxu0 0.0
    %3652 = vmatpush1.msra.mxu0 0.0
    %3653 = vmatprep.subr.mxu0 0.0
    %3654 = vmatpush1.msra.mxu0 0.0
    %3655 = vmatprep.subr.mxu0 0.0
    %3656 = vmatpush1.msra.mxu0 0.0
    %3657 = vmatprep.subr.mxu0 0.0
    %3658 = vmatpush1.msra.mxu0 0.0
    %3659 = vmatprep.subr.mxu0 0.0
    %3660 = vmatpush1.msra.mxu0 0.0
    %3661 = vmatprep.subr.mxu0 0.0
    %3662 = vmatpush1.msra.mxu0 0.0
    %3663 = vmatprep.subr.mxu0 0.0
    %3664 = vmatpush1.msra.mxu0 0.0
    %3665 = vmatprep.subr.mxu0 0.0
    %3666 = vmatpush1.msra.mxu0 0.0
    %3667 = vmatprep.mubr.f32.mxu0 0.0
    %3668 = vmatmul.mubr.f32.gmra.mrb[0].mxu0 %v3601
    %v3669 = vpop.f32.mrb[0].mxu0
    %v3670 = vadd.f32 0.0, %v3669
    %v3671 = vpop.f32.mrb[0].mxu0
    %3672 = vdwg.mxu0
    %3673 = vrot.lane.b32.xlu0 %v2183, 40
    %v3674 = vpop.permute.xlu0 %3673
    %v3677 = vsel %vm165, %v3596, 0
    %3679 = vmatprep.subr.mxu0 0.0
    %3680 = vmatpush1.msra.mxu0 %v3674
    %3681 = vmatprep.subr.mxu0 0.0
    %3682 = vmatpush1.msra.mxu0 0.0
    %3683 = vmatprep.subr.mxu0 0.0
    %3684 = vmatpush1.msra.mxu0 0.0
    %3685 = vmatprep.subr.mxu0 0.0
    %3686 = vmatpush1.msra.mxu0 0.0
    %3687 = vmatprep.subr.mxu0 0.0
    %3688 = vmatpush1.msra.mxu0 0.0
    %3689 = vmatprep.subr.mxu0 0.0
    %3690 = vmatpush1.msra.mxu0 0.0
    %3691 = vmatprep.subr.mxu0 0.0
    %3692 = vmatpush1.msra.mxu0 0.0
    %3693 = vmatprep.subr.mxu0 0.0
    %3694 = vmatpush1.msra.mxu0 0.0
    %3695 = vmatprep.subr.mxu0 0.0
    %3696 = vmatpush1.msra.mxu0 0.0
    %3697 = vmatprep.subr.mxu0 0.0
    %3698 = vmatpush1.msra.mxu0 0.0
    %3699 = vmatprep.subr.mxu0 0.0
    %3700 = vmatpush1.msra.mxu0 0.0
    %3701 = vmatprep.subr.mxu0 0.0
    %3702 = vmatpush1.msra.mxu0 0.0
    %3703 = vmatprep.subr.mxu0 0.0
    %3704 = vmatpush1.msra.mxu0 0.0
    %3705 = vmatprep.subr.mxu0 0.0
    %3706 = vmatpush1.msra.mxu0 0.0
    %3707 = vmatprep.subr.mxu0 0.0
    %3708 = vmatpush1.msra.mxu0 0.0
    %3709 = vmatprep.subr.mxu0 0.0
    %3710 = vmatpush1.msra.mxu0 0.0
    %3711 = vmatprep.subr.mxu0 0.0
    %3712 = vmatpush1.msra.mxu0 0.0
    %3713 = vmatprep.subr.mxu0 0.0
    %3714 = vmatpush1.msra.mxu0 0.0
    %3715 = vmatprep.subr.mxu0 0.0
    %3716 = vmatpush1.msra.mxu0 0.0
    %3717 = vmatprep.subr.mxu0 0.0
    %3718 = vmatpush1.msra.mxu0 0.0
    %3719 = vmatprep.subr.mxu0 0.0
    %3720 = vmatpush1.msra.mxu0 0.0
    %3721 = vmatprep.subr.mxu0 0.0
    %3722 = vmatpush1.msra.mxu0 0.0
    %3723 = vmatprep.subr.mxu0 0.0
    %3724 = vmatpush1.msra.mxu0 0.0
    %3725 = vmatprep.subr.mxu0 0.0
    %3726 = vmatpush1.msra.mxu0 0.0
    %3727 = vmatprep.subr.mxu0 0.0
    %3728 = vmatpush1.msra.mxu0 0.0
    %3729 = vmatprep.subr.mxu0 0.0
    %3730 = vmatpush1.msra.mxu0 0.0
    %3731 = vmatprep.subr.mxu0 0.0
    %3732 = vmatpush1.msra.mxu0 0.0
    %3733 = vmatprep.subr.mxu0 0.0
    %3734 = vmatpush1.msra.mxu0 0.0
    %3735 = vmatprep.subr.mxu0 0.0
    %3736 = vmatpush1.msra.mxu0 0.0
    %3737 = vmatprep.subr.mxu0 0.0
    %3738 = vmatpush1.msra.mxu0 0.0
    %3739 = vmatprep.subr.mxu0 0.0
    %3740 = vmatpush1.msra.mxu0 0.0
    %3741 = vmatprep.subr.mxu0 0.0
    %3742 = vmatpush1.msra.mxu0 0.0
    %3743 = vmatprep.mubr.f32.mxu0 0.0
    %3744 = vmatmul.mubr.f32.gmra.mrb[0].mxu0 %v3677
    %v3745 = vpop.f32.mrb[0].mxu0
    %v3746 = vadd.f32 0.0, %v3745
    %v3747 = vpop.f32.mrb[0].mxu0
    %3748 = vdwg.mxu0
    %v3750 = vsel %vm165, %v3670, 0
    %v3753 = vsel %vm165, %v3746, 0
    %3755 = vmatprep.subr.mxu0 0.0
    %3756 = vmatpush1.msra.mxu0 %v2066
    %3757 = vmatprep.subr.mxu0 0.0
    %3758 = vmatpush1.msra.mxu0 0.0
    %3759 = vmatprep.subr.mxu0 0.0
    %3760 = vmatpush1.msra.mxu0 0.0
    %3761 = vmatprep.subr.mxu0 0.0
    %3762 = vmatpush1.msra.mxu0 0.0
    %3763 = vmatprep.subr.mxu0 0.0
    %3764 = vmatpush1.msra.mxu0 0.0
    %3765 = vmatprep.subr.mxu0 0.0
    %3766 = vmatpush1.msra.mxu0 0.0
    %3767 = vmatprep.subr.mxu0 0.0
    %3768 = vmatpush1.msra.mxu0 0.0
    %3769 = vmatprep.subr.mxu0 0.0
    %3770 = vmatpush1.msra.mxu0 0.0
    %3771 = vmatprep.subr.mxu0 0.0
    %3772 = vmatpush1.msra.mxu0 0.0
    %3773 = vmatprep.subr.mxu0 0.0
    %3774 = vmatpush1.msra.mxu0 0.0
    %3775 = vmatprep.subr.mxu0 0.0
    %3776 = vmatpush1.msra.mxu0 0.0
    %3777 = vmatprep.subr.mxu0 0.0
    %3778 = vmatpush1.msra.mxu0 0.0
    %3779 = vmatprep.subr.mxu0 0.0
    %3780 = vmatpush1.msra.mxu0 0.0
    %3781 = vmatprep.subr.mxu0 0.0
    %3782 = vmatpush1.msra.mxu0 0.0
    %3783 = vmatprep.subr.mxu0 0.0
    %3784 = vmatpush1.msra.mxu0 0.0
    %3785 = vmatprep.subr.mxu0 0.0
    %3786 = vmatpush1.msra.mxu0 0.0
    %3787 = vmatprep.subr.mxu0 0.0
    %3788 = vmatpush1.msra.mxu0 0.0
    %3789 = vmatprep.subr.mxu0 0.0
    %3790 = vmatpush1.msra.mxu0 0.0
    %3791 = vmatprep.subr.mxu0 0.0
    %3792 = vmatpush1.msra.mxu0 0.0
    %3793 = vmatprep.subr.mxu0 0.0
    %3794 = vmatpush1.msra.mxu0 0.0
    %3795 = vmatprep.subr.mxu0 0.0
    %3796 = vmatpush1.msra.mxu0 0.0
    %3797 = vmatprep.subr.mxu0 0.0
    %3798 = vmatpush1.msra.mxu0 0.0
    %3799 = vmatprep.subr.mxu0 0.0
    %3800 = vmatpush1.msra.mxu0 0.0
    %3801 = vmatprep.subr.mxu0 0.0
    %3802 = vmatpush1.msra.mxu0 0.0
    %3803 = vmatprep.subr.mxu0 0.0
    %3804 = vmatpush1.msra.mxu0 0.0
    %3805 = vmatprep.subr.mxu0 0.0
    %3806 = vmatpush1.msra.mxu0 0.0
    %3807 = vmatprep.subr.mxu0 0.0
    %3808 = vmatpush1.msra.mxu0 0.0
    %3809 = vmatprep.subr.mxu0 0.0
    %3810 = vmatpush1.msra.mxu0 0.0
    %3811 = vmatprep.subr.mxu0 0.0
    %3812 = vmatpush1.msra.mxu0 0.0
    %3813 = vmatprep.subr.mxu0 0.0
    %3814 = vmatpush1.msra.mxu0 0.0
    %3815 = vmatprep.subr.mxu0 0.0
    %3816 = vmatpush1.msra.mxu0 0.0
    %3817 = vmatprep.subr.mxu0 0.0
    %3818 = vmatpush1.msra.mxu0 0.0
    %3819 = vmatprep.mubr.f32.mxu0 0.0
    %3820 = vmatmul.mubr.f32.gmra.mrb[0].mxu0 %v3750
    %v3821 = vpop.f32.mrb[0].mxu0
    %v3822 = vadd.f32 0.0, %v3821
    %v3823 = vpop.f32.mrb[0].mxu0
    %3824 = vmatprep.mubr.f32.mxu0 0.0
    %3825 = vmatmul.mubr.f32.gmra.mrb[0].mxu0 %v3753
    %v3826 = vpop.f32.mrb[0].mxu0
    %v3827 = vadd.f32 0.0, %v3826
    %v3828 = vpop.f32.mrb[0].mxu0
    %3829 = vdwg.mxu0
    %v3830 = vadd.f32 %v3417, %v3822
    %v3831 = vadd.f32 %v3418, %v3827
    %v3832 = vadd.f32 %v2053, %v3830
    %v3833 = vadd.f32 %v2054, %v3831
    %v3834 = vlaneseq
    %v3835 = vshrl.u32 %v3834, 7
    %v3836 = vsub.s32 2, %v3835
    %v3837 = vrot.slane %v2056, %v3836
    %v3838 = vadd.f32 %v3832, %v3837
    %v3839 = vadd.f32 %v3833, %v3837
    %v3840 = vsel %vm41, %v3838, 0.0
    %3841 = vadd.xlane.f32.xlu0 %v3840
    %v3842 = vpop.xlane.xlu0 %3841
    %v3843 = vsel %vm41, %v3839, 0.0
    %3844 = vadd.xlane.f32.xlu0 %v3843
    %v3845 = vpop.xlane.xlu0 %3844
    %v3846 = vmul.f32 %v3842, %v48
    %v3847 = vmul.f32 %v3845, %v48
    %v3848 = vsub.f32 %v3838, %v3846
    %v3849 = vsub.f32 %v3839, %v3847
    %v3850 = vmul.f32 %v3848, %v3848
    %v3851 = vmul.f32 %v3849, %v3849
    %v3852 = vsel %vm41, %v3850, 0.0
    %3853 = vadd.xlane.f32.xlu0 %v3852
    %v3854 = vpop.xlane.xlu0 %3853
    %v3855 = vsel %vm41, %v3851, 0.0
    %3856 = vadd.xlane.f32.xlu0 %v3855
    %v3857 = vpop.xlane.xlu0 %3856
    %v3858 = vmul.f32 %v3854, %v48
    %v3859 = vmul.f32 %v3857, %v48
    %v3860 = vadd.f32 %v3858, 1e-05
    %v3861 = vadd.f32 %v3859, 1e-05
    %v3862 = vrsqrt.pop %v3860
    %v3863 = vrsqrt.pop %v3861
    %v3864 = vmul.f32 %v3848, %v3862
    %v3865 = vmul.f32 %v3849, %v3863
    %v3866 = vlaneseq
    %v3867 = vshrl.u32 %v3866, 7
    %v3868 = vsub.s32 3, %v3867
    %v3869 = vrot.slane %v2056, %v3868
    %v3870 = vmul.f32 %v3864, %v3869
    %v3871 = vmul.f32 %v3865, %v3869
    %v3872 = vlaneseq
    %v3873 = vshrl.u32 %v3872, 7
    %v3874 = vsub.s32 4, %v3873
    %v3875 = vrot.slane %v2056, %v3874
    %v3876 = vadd.f32 %v3870, %v3875
    %v3877 = vadd.f32 %v3871, %v3875
    %s3878 = scalar_lea.vmem %s4, 32
    %v3879 = vld [vmem:[%s3878] sm:$0xff]
    %v3880 = vld [vmem:[%s3878 + $0x8] sm:$0xff]
    %v3881 = vld [vmem:[%s3878 + $0x10] sm:$0xff]
    %v3882 = vld [vmem:[%s3878 + $0x18] sm:$0xff]
    %s3883 = scalar_lea.vmem %s5, 1
    %v3884 = vld [vmem:[%s3883] sm:$0x1]
    %v3886 = vlaneseq
    %v3887 = vshrl.u32 %v3886, 7
    %v3888 = vsub.s32 0, %v3887
    %v3889 = vrot.slane %v3884, %v3888
    %v3892 = vsel %vm41, %v3876, 0
    %v3895 = vsel %vm41, %v3877, 0
    %3897 = vmatprep.subr.mxu0 0.0
    %3898 = vmatpush1.msra.mxu0 %v3879
    %3899 = vmatprep.subr.mxu0 0.0
    %3900 = vmatpush1.msra.mxu0 %v3880
    %3901 = vmatprep.subr.mxu0 0.0
    %3902 = vmatpush1.msra.mxu0 %v3881
    %3903 = vmatprep.subr.mxu0 0.0
    %3904 = vmatpush1.msra.mxu0 %v3882
    %3905 = vmatprep.subr.mxu0 0.0
    %3906 = vmatpush1.msra.mxu0 0.0
    %3907 = vmatprep.subr.mxu0 0.0
    %3908 = vmatpush1.msra.mxu0 0.0
    %3909 = vmatprep.subr.mxu0 0.0
    %3910 = vmatpush1.msra.mxu0 0.0
    %3911 = vmatprep.subr.mxu0 0.0
    %3912 = vmatpush1.msra.mxu0 0.0
    %3913 = vmatprep.subr.mxu0 0.0
    %3914 = vmatpush1.msra.mxu0 0.0
    %3915 = vmatprep.subr.mxu0 0.0
    %3916 = vmatpush1.msra.mxu0 0.0
    %3917 = vmatprep.subr.mxu0 0.0
    %3918 = vmatpush1.msra.mxu0 0.0
    %3919 = vmatprep.subr.mxu0 0.0
    %3920 = vmatpush1.msra.mxu0 0.0
    %3921 = vmatprep.subr.mxu0 0.0
    %3922 = vmatpush1.msra.mxu0 0.0
    %3923 = vmatprep.subr.mxu0 0.0
    %3924 = vmatpush1.msra.mxu0 0.0
    %3925 = vmatprep.subr.mxu0 0.0
    %3926 = vmatpush1.msra.mxu0 0.0
    %3927 = vmatprep.subr.mxu0 0.0
    %3928 = vmatpush1.msra.mxu0 0.0
    %3929 = vmatprep.subr.mxu0 0.0
    %3930 = vmatpush1.msra.mxu0 0.0
    %3931 = vmatprep.subr.mxu0 0.0
    %3932 = vmatpush1.msra.mxu0 0.0
    %3933 = vmatprep.subr.mxu0 0.0
    %3934 = vmatpush1.msra.mxu0 0.0
    %3935 = vmatprep.subr.mxu0 0.0
    %3936 = vmatpush1.msra.mxu0 0.0
    %3937 = vmatprep.subr.mxu0 0.0
    %3938 = vmatpush1.msra.mxu0 0.0
    %3939 = vmatprep.subr.mxu0 0.0
    %3940 = vmatpush1.msra.mxu0 0.0
    %3941 = vmatprep.subr.mxu0 0.0
    %3942 = vmatpush1.msra.mxu0 0.0
    %3943 = vmatprep.subr.mxu0 0.0
    %3944 = vmatpush1.msra.mxu0 0.0
    %3945 = vmatprep.subr.mxu0 0.0
    %3946 = vmatpush1.msra.mxu0 0.0
    %3947 = vmatprep.subr.mxu0 0.0
    %3948 = vmatpush1.msra.mxu0 0.0
    %3949 = vmatprep.subr.mxu0 0.0
    %3950 = vmatpush1.msra.mxu0 0.0
    %3951 = vmatprep.subr.mxu0 0.0
    %3952 = vmatpush1.msra.mxu0 0.0
    %3953 = vmatprep.subr.mxu0 0.0
    %3954 = vmatpush1.msra.mxu0 0.0
    %3955 = vmatprep.subr.mxu0 0.0
    %3956 = vmatpush1.msra.mxu0 0.0
    %3957 = vmatprep.subr.mxu0 0.0
    %3958 = vmatpush1.msra.mxu0 0.0
    %3959 = vmatprep.subr.mxu0 0.0
    %3960 = vmatpush1.msra.mxu0 0.0
    %3961 = vmatprep.mubr.f32.mxu0 0.0
    %3962 = vmatmul.mubr.f32.gmra.mrb[0].mxu0 %v3892
    %v3963 = vpop.f32.mrb[0].mxu0
    %v3964 = vadd.f32 %v3889, %v3963
    %v3965 = vpop.f32.mrb[0].mxu0
    %3966 = vmatprep.mubr.f32.mxu0 0.0
    %3967 = vmatmul.mubr.f32.gmra.mrb[0].mxu0 %v3895
    %v3968 = vpop.f32.mrb[0].mxu0
    %v3969 = vadd.f32 %v3889, %v3968
    %v3970 = vpop.f32.mrb[0].mxu0
    %3971 = vdwg.mxu0
    %v3972 = vmul.f32 %v3964, 0.5
    %v3973 = vmul.f32 %v3969, 0.5
    %v3974 = vmul.f32 %v3964, 0.70710677
    %v3975 = vmul.f32 %v3969, 0.70710677
    %v3976 = verf.f32.pop %v3974
    %v3977 = verf.f32.pop %v3975
    %v3978 = vadd.f32 %v3976, 1.0
    %v3979 = vadd.f32 %v3977, 1.0
    %v3980 = vmul.f32 %v3972, %v3978
    %v3981 = vmul.f32 %v3973, %v3979
    %s3982 = scalar_lea.vmem %s6, 64
    %v3983 = vld [vmem:[%s3982] sm:$0xff]
    %v3984 = vld [vmem:[%s3982 + $0x8] sm:$0xff]
    %v3985 = vld [vmem:[%s3982 + $0x10] sm:$0xff]
    %v3986 = vld [vmem:[%s3982 + $0x18] sm:$0xff]
    %v3987 = vld [vmem:[%s3982 + $0x20] sm:$0xff]
    %v3988 = vld [vmem:[%s3982 + $0x28] sm:$0xff]
    %v3989 = vld [vmem:[%s3982 + $0x30] sm:$0xff]
    %v3990 = vld [vmem:[%s3982 + $0x38] sm:$0xff]
    %v3992 = vsel %vm1965, %v3980, 0
    %v3995 = vsel %vm1965, %v3981, 0
    %3997 = vmatprep.subr.mxu0 0.0
    %3998 = vmatpush1.msra.mxu0 %v3983
    %3999 = vmatprep.subr.mxu0 0.0
    %4000 = vmatpush1.msra.mxu0 %v3984
    %4001 = vmatprep.subr.mxu0 0.0
    %4002 = vmatpush1.msra.mxu0 %v3985
    %4003 = vmatprep.subr.mxu0 0.0
    %4004 = vmatpush1.msra.mxu0 %v3986
    %4005 = vmatprep.subr.mxu0 0.0
    %4006 = vmatpush1.msra.mxu0 %v3987
    %4007 = vmatprep.subr.mxu0 0.0
    %4008 = vmatpush1.msra.mxu0 %v3988
    %4009 = vmatprep.subr.mxu0 0.0
    %4010 = vmatpush1.msra.mxu0 %v3989
    %4011 = vmatprep.subr.mxu0 0.0
    %4012 = vmatpush1.msra.mxu0 %v3990
    %4013 = vmatprep.subr.mxu0 0.0
    %4014 = vmatpush1.msra.mxu0 0.0
    %4015 = vmatprep.subr.mxu0 0.0
    %4016 = vmatpush1.msra.mxu0 0.0
    %4017 = vmatprep.subr.mxu0 0.0
    %4018 = vmatpush1.msra.mxu0 0.0
    %4019 = vmatprep.subr.mxu0 0.0
    %4020 = vmatpush1.msra.mxu0 0.0
    %4021 = vmatprep.subr.mxu0 0.0
    %4022 = vmatpush1.msra.mxu0 0.0
    %4023 = vmatprep.subr.mxu0 0.0
    %4024 = vmatpush1.msra.mxu0 0.0
    %4025 = vmatprep.subr.mxu0 0.0
    %4026 = vmatpush1.msra.mxu0 0.0
    %4027 = vmatprep.subr.mxu0 0.0
    %4028 = vmatpush1.msra.mxu0 0.0
    %4029 = vmatprep.subr.mxu0 0.0
    %4030 = vmatpush1.msra.mxu0 0.0
    %4031 = vmatprep.subr.mxu0 0.0
    %4032 = vmatpush1.msra.mxu0 0.0
    %4033 = vmatprep.subr.mxu0 0.0
    %4034 = vmatpush1.msra.mxu0 0.0
    %4035 = vmatprep.subr.mxu0 0.0
    %4036 = vmatpush1.msra.mxu0 0.0
    %4037 = vmatprep.subr.mxu0 0.0
    %4038 = vmatpush1.msra.mxu0 0.0
    %4039 = vmatprep.subr.mxu0 0.0
    %4040 = vmatpush1.msra.mxu0 0.0
    %4041 = vmatprep.subr.mxu0 0.0
    %4042 = vmatpush1.msra.mxu0 0.0
    %4043 = vmatprep.subr.mxu0 0.0
    %4044 = vmatpush1.msra.mxu0 0.0
    %4045 = vmatprep.subr.mxu0 0.0
    %4046 = vmatpush1.msra.mxu0 0.0
    %4047 = vmatprep.subr.mxu0 0.0
    %4048 = vmatpush1.msra.mxu0 0.0
    %4049 = vmatprep.subr.mxu0 0.0
    %4050 = vmatpush1.msra.mxu0 0.0
    %4051 = vmatprep.subr.mxu0 0.0
    %4052 = vmatpush1.msra.mxu0 0.0
    %4053 = vmatprep.subr.mxu0 0.0
    %4054 = vmatpush1.msra.mxu0 0.0
    %4055 = vmatprep.subr.mxu0 0.0
    %4056 = vmatpush1.msra.mxu0 0.0
    %4057 = vmatprep.subr.mxu0 0.0
    %4058 = vmatpush1.msra.mxu0 0.0
    %4059 = vmatprep.subr.mxu0 0.0
    %4060 = vmatpush1.msra.mxu0 0.0
    %4061 = vmatprep.mubr.f32.mxu0 0.0
    %4062 = vmatmul.mubr.f32.gmra.mrb[0].mxu0 %v3992
    %v4063 = vpop.f32.mrb[0].mxu0
    %v4064 = vadd.f32 0.0, %v4063
    %v4065 = vpop.f32.mrb[0].mxu0
    %4066 = vmatprep.mubr.f32.mxu0 0.0
    %4067 = vmatmul.mubr.f32.gmra.mrb[0].mxu0 %v3995
    %v4068 = vpop.f32.mrb[0].mxu0
    %v4069 = vadd.f32 0.0, %v4068
    %v4070 = vpop.f32.mrb[0].mxu0
    %4071 = vdwg.mxu0
    %v4072 = vadd.f32 %v3838, %v4064
    %v4073 = vadd.f32 %v3839, %v4069
    %v4074 = vlaneseq
    %v4075 = vshrl.u32 %v4074, 7
    %v4076 = vsub.s32 5, %v4075
    %v4077 = vrot.slane %v2056, %v4076
    %v4078 = vadd.f32 %v4072, %v4077
    %v4079 = vadd.f32 %v4073, %v4077
    %v4080 = vld [vmem:[%s7] sm:$0x3]
    %v4081 = vsel %vm41, %v4078, 0.0
    %4082 = vadd.xlane.f32.xlu0 %v4081
    %v4083 = vpop.xlane.xlu0 %4082
    %v4084 = vsel %vm41, %v4079, 0.0
    %4085 = vadd.xlane.f32.xlu0 %v4084
    %v4086 = vpop.xlane.xlu0 %4085
    %v4087 = vmul.f32 %v4083, %v48
    %v4088 = vmul.f32 %v4086, %v48
    %v4089 = vsub.f32 %v4078, %v4087
    %v4090 = vsub.f32 %v4079, %v4088
    %v4091 = vmul.f32 %v4089, %v4089
    %v4092 = vmul.f32 %v4090, %v4090
    %v4093 = vsel %vm41, %v4091, 0.0
    %4094 = vadd.xlane.f32.xlu0 %v4093
    %v4095 = vpop.xlane.xlu0 %4094
    %v4096 = vsel %vm41, %v4092, 0.0
    %4097 = vadd.xlane.f32.xlu0 %v4096
    %v4098 = vpop.xlane.xlu0 %4097
    %v4099 = vmul.f32 %v4095, %v48
    %v4100 = vmul.f32 %v4098, %v48
    %v4101 = vadd.f32 %v4099, 1e-05
    %v4102 = vadd.f32 %v4100, 1e-05
    %v4103 = vrsqrt.pop %v4101
    %v4104 = vrsqrt.pop %v4102
    %v4105 = vmul.f32 %v4089, %v4103
    %v4106 = vmul.f32 %v4090, %v4104
    %v4107 = vlaneseq
    %v4108 = vshrl.u32 %v4107, 7
    %v4109 = vsub.s32 0, %v4108
    %v4110 = vrot.slane %v4080, %v4109
    %v4111 = vmul.f32 %v4105, %v4110
    %v4112 = vmul.f32 %v4106, %v4110
    %v4113 = vlaneseq
    %v4114 = vshrl.u32 %v4113, 7
    %v4115 = vsub.s32 1, %v4114
    %v4116 = vrot.slane %v4080, %v4115
    %v4117 = vadd.f32 %v4111, %v4116
    %v4118 = vadd.f32 %v4112, %v4116
    %4119 = vst.msk [vmem:[#allocation2] sm:$0xff] %vm41, %v4117
    %4120 = vst.msk [vmem:[#allocation2 + $0x8] sm:$0xff] %vm41, %v4118
    // Predicated region
    $region34: #{transformer_forward.1} parent=1 // pred_check
      _
    $region35: #{transformer_forward.1} parent=1 // pred_check_branch
      %4122 = sbr.rel (0) target = $region37
    $region36: #{transformer_forward.1} parent=1 // pred_region
      %s4124 = ssub.s32 256, 256
      %4125 = vsyncadd [#allocation3], %s4124
      %s4126 = sshll.u32 [#allocation2], 4
      %s4127 = int_to_ptr.vmem [resolvable:$true] %s4126
      %4132 = dma.vmem_to_hbm [thread:$0]  %s4127, 256, %s8, [#allocation3], 128, 128, 8
    $region37: #{transformer_forward.1} parent=1 // pred_fallthru
      _
    // Predicated region
    $region38: #{transformer_forward.1} parent=1 // pred_check
      _
    $region39: #{transformer_forward.1} parent=1 // pred_check_branch
      %4134 = sbr.rel (0) target = $region41
    $region40: #{transformer_forward.1} parent=1 // pred_region
      %4135 = dma.done [#allocation3], 256
    $region41: #{transformer_forward.1} parent=1 // pred_fallthru
      _
    %4136 = vsyncpa [#allocation3], 1

</llo_original>
